<compile_context>
chip_gen: v6e
topology: v6e:2x2x1
jax: 0.10.0
libtpu: 0.0.40
codegen_flags: <defaults>
</compile_context>

<pallas_src>
import math

import jax
import jax.numpy as jnp
from jax.experimental import pallas as pl
from jax.experimental.pallas import tpu as pltpu


def _leaky_relu(x, slope=0.2):
    return jnp.where(x > 0, x, slope * x)


def discriminator_kernel(x_ref,
                         w1_ref, b1_ref,
                         w2_ref, b2_ref,
                         w3_ref, b3_ref,
                         w4_ref, b4_ref,
                         out_ref):
    # DBlock 1: Linear(in_features, 1024) + LeakyReLU(0.2)
    # (Dropout(p=0.3) is identity in eval mode.)
    h = jnp.dot(x_ref[...], w1_ref[...], preferred_element_type=jnp.float32)
    h = _leaky_relu(h + b1_ref[...])
    # DBlock 2: Linear(1024, 512) + LeakyReLU(0.2)
    h = jnp.dot(h.astype(jnp.bfloat16), w2_ref[...],
                preferred_element_type=jnp.float32)
    h = _leaky_relu(h + b2_ref[...])
    # DBlock 3: Linear(512, 256) + LeakyReLU(0.2)
    h = jnp.dot(h.astype(jnp.bfloat16), w3_ref[...],
                preferred_element_type=jnp.float32)
    h = _leaky_relu(h + b3_ref[...])
    # DBlock 4: Linear(256, 1) + LeakyReLU(0.2)
    # N=1 matmul would waste the MXU -> VPU multiply + XLU lane reduction.
    h = jnp.sum(h * w4_ref[...], axis=-1, keepdims=True) + b4_ref[...]
    h = _leaky_relu(h)
    # Sigmoid: exp on the EUP, reciprocal on the EUP slot (approx is plenty
    # for a [0, 1] probability output).
    out_ref[...] = pl.reciprocal(1.0 + jnp.exp(-h), approx=True)
    # TODO(synk): Dropout(p=0.3) in *training* mode would need
    # pltpu.prng_seed / pltpu.prng_random_bits masking; this kernel implements
    # inference (eval) semantics where Dropout is the identity.


def discriminator_forward(img, params):
    B = img.shape[0]
    x = img.reshape(B, -1)                           # == img.view(B, -1)
    F = x.shape[1]
    (w1, b1), (w2, b2), (w3, b3), (w4, b4) = params

    # MXU operands in bf16, accumulation + elementwise in f32.
    x_bf = x.astype(jnp.bfloat16)
    w1_bf = w1.astype(jnp.bfloat16)
    w2_bf = w2.astype(jnp.bfloat16)
    w3_bf = w3.astype(jnp.bfloat16)
    w4_row = w4.reshape(1, 256).astype(jnp.float32)  # final layer stays f32 on the VPU
    b1 = b1.reshape(1, 1024).astype(jnp.float32)
    b2 = b2.reshape(1, 512).astype(jnp.float32)
    b3 = b3.reshape(1, 256).astype(jnp.float32)
    b4 = b4.reshape(1, 1).astype(jnp.float32)

    # Batch tile: 256 for large batches (fills the v6e/v7x 256-wide MXU M dim,
    # multiple of 128 for v5e); shrink to a multiple of 8 for tiny batches.
    TM = 256
    if B < TM:
        TM = max(8, ((B + 7) // 8) * 8)
    B_pad = ((B + TM - 1) // TM) * TM
    if B_pad != B:
        x_bf = jnp.pad(x_bf, ((0, B_pad - B), (0, 0)))
    grid = (B_pad // TM,)

    in_specs = [
        pl.BlockSpec((TM, F), lambda i: (i, 0)),      # input tile, pipelined over batch
        pl.BlockSpec((F, 1024), lambda i: (0, 0)),    # weights/biases: constant
        pl.BlockSpec((1, 1024), lambda i: (0, 0)),    #   index_map -> fetched once,
        pl.BlockSpec((1024, 512), lambda i: (0, 0)),  #   VMEM-resident across grid
        pl.BlockSpec((1, 512), lambda i: (0, 0)),
        pl.BlockSpec((512, 256), lambda i: (0, 0)),
        pl.BlockSpec((1, 256), lambda i: (0, 0)),
        pl.BlockSpec((1, 256), lambda i: (0, 0)),
        pl.BlockSpec((1, 1), lambda i: (0, 0)),
    ]
    out_specs = pl.BlockSpec((TM, 1), lambda i: (i, 0))

    # Advisory cost estimate (the kernel is HBM weight-bound at small batch).
    flops = 2 * B_pad * (F * 1024 + 1024 * 512 + 512 * 256 + 256)
    weight_bytes = (w1_bf.size * 2 + w2_bf.size * 2 + w3_bf.size * 2
                    + w4_row.size * 4 + (1024 + 512 + 256 + 1) * 4)
    bytes_accessed = weight_bytes + B_pad * F * 2 + B_pad * 4
    cost = pl.CostEstimate(flops=flops, transcendentals=2 * B_pad,
                           bytes_accessed=bytes_accessed)

    # Right-size the VMEM request (v7x only has 64 MiB per TensorCore).
    # Assume double buffering of every operand plus live f32 activations.
    tile_bytes = 2 * (TM * F * 2) + 2 * (TM * 4) + 3 * (TM * 1024 * 4)
    footprint = 2 * weight_bytes + tile_bytes
    vmem_limit = int(min(max(footprint + (16 << 20), 24 << 20), 48 << 20))

    out = pl.pallas_call(
        discriminator_kernel,
        out_shape=jax.ShapeDtypeStruct((B_pad, 1), jnp.float32),
        grid=grid,
        in_specs=in_specs,
        out_specs=out_specs,
        compiler_params=pltpu.CompilerParams(
            dimension_semantics=("parallel",),
            vmem_limit_bytes=vmem_limit,
        ),
        cost_estimate=cost,
    )(x_bf, w1_bf, b1, w2_bf, b2, w3_bf, b3, w4_row, b4)

    return out[:B]


def init_params(key, in_features):
    """Deterministic init, PyTorch-Linear-style uniform(-1/sqrt(in), 1/sqrt(in)).

    Weights are stored transposed relative to PyTorch, i.e. (in, out), so the
    kernel computes x @ W + b == x @ W_pt.T + b_pt."""
    dims = [(in_features, 1024), (1024, 512), (512, 256), (256, 1)]
    params = []
    for (fan_in, fan_out) in dims:
        key, kw, kb = jax.random.split(key, 3)
        bound = 1.0 / (fan_in ** 0.5)
        w = jax.random.uniform(kw, (fan_in, fan_out), jnp.float32, -bound, bound)
        b = jax.random.uniform(kb, (1, fan_out), jnp.float32, -bound, bound)
        params.append((w, b))
    return params


if __name__ == "__main__":
    key = jax.random.PRNGKey(0)
    k_img, k_par = jax.random.split(key)

    # Small image shape consistent with the module: (C, H, W) = (4, 16, 16).
    img_shape = (4, 16, 16)
    B = 2
    img = jax.random.normal(k_img, (B,) + img_shape, dtype=jnp.float32)  # NCHW

    params = init_params(k_par, in_features=int(math.prod(img_shape)))

    validity = discriminator_forward(img, params)
    jax.block_until_ready(validity)

    assert validity.shape == (B, 1)
    assert bool(jnp.all((validity >= 0.0) & (validity <= 1.0)))
    print("KERNEL_OK")
</pallas_src>

<mosaic_0001>
module attributes {stable_mosaic.version = 11 : i64} {
  func.func @discriminator_kernel(%arg0: i32, %arg1: memref<8x1024xbf16, #tpu.memory_space<vmem>>, %arg2: memref<1024x1024xbf16, #tpu.memory_space<vmem>>, %arg3: memref<1x1024xf32, #tpu.memory_space<vmem>>, %arg4: memref<1024x512xbf16, #tpu.memory_space<vmem>>, %arg5: memref<1x512xf32, #tpu.memory_space<vmem>>, %arg6: memref<512x256xbf16, #tpu.memory_space<vmem>>, %arg7: memref<1x256xf32, #tpu.memory_space<vmem>>, %arg8: memref<1x256xf32, #tpu.memory_space<vmem>>, %arg9: memref<1x1xf32, #tpu.memory_space<vmem>>, %arg10: memref<8x1xf32, #tpu.memory_space<vmem>>) attributes {dimension_semantics = [#tpu.dimension_semantics<parallel>], iteration_bounds = array<i64: 1>, scalar_prefetch = 0 : i64, scratch_operands = 0 : i64, tpu.core_type = #tpu.core_type<tc>, window_params = [{transform_indices = @transform_0, window_bounds = array<i64: 8, 1024>}, {pipeline_mode = #tpu.pipeline_mode<synchronous>, transform_indices = @transform_1, window_bounds = array<i64: 1024, 1024>}, {pipeline_mode = #tpu.pipeline_mode<synchronous>, transform_indices = @transform_2, window_bounds = array<i64: 1, 1024>}, {pipeline_mode = #tpu.pipeline_mode<synchronous>, transform_indices = @transform_3, window_bounds = array<i64: 1024, 512>}, {pipeline_mode = #tpu.pipeline_mode<synchronous>, transform_indices = @transform_4, window_bounds = array<i64: 1, 512>}, {pipeline_mode = #tpu.pipeline_mode<synchronous>, transform_indices = @transform_5, window_bounds = array<i64: 512, 256>}, {pipeline_mode = #tpu.pipeline_mode<synchronous>, transform_indices = @transform_6, window_bounds = array<i64: 1, 256>}, {pipeline_mode = #tpu.pipeline_mode<synchronous>, transform_indices = @transform_7, window_bounds = array<i64: 1, 256>}, {pipeline_mode = #tpu.pipeline_mode<synchronous>, transform_indices = @transform_8, window_bounds = array<i64: 1, 1>}, {transform_indices = @transform_9, window_bounds = array<i64: 8, 1>}]} {
    %c0 = arith.constant 0 : index
    %c0_0 = arith.constant 0 : index
    %0 = vector.load %arg1[%c0, %c0_0] : memref<8x1024xbf16, #tpu.memory_space<vmem>>, vector<8x1024xbf16>
    %c0_1 = arith.constant 0 : index
    %c0_2 = arith.constant 0 : index
    %1 = vector.load %arg2[%c0_1, %c0_2] : memref<1024x1024xbf16, #tpu.memory_space<vmem>>, vector<1024x1024xbf16>
    %cst = arith.constant dense<0.000000e+00> : vector<8x1024xf32>
    %2 = tpu.matmul %0, %1, %cst {dimension_numbers = #tpu.dot_dimension_numbers<[1], [0], [0], [1], [0, 0, 1, 1], [], []>} : vector<8x1024xbf16>, vector<1024x1024xbf16>, vector<8x1024xf32> -> vector<8x1024xf32>
    %c0_3 = arith.constant 0 : index
    %c0_4 = arith.constant 0 : index
    %3 = vector.load %arg3[%c0_3, %c0_4] : memref<1x1024xf32, #tpu.memory_space<vmem>>, vector<1x1024xf32>
    %4 = vector.broadcast %3 : vector<1x1024xf32> to vector<8x1024xf32>
    %5 = arith.addf %2, %4 : vector<8x1024xf32>
    %cst_5 = arith.constant 0.000000e+00 : f32
    %6 = vector.broadcast %cst_5 : f32 to vector<8x1024xf32>
    %7 = arith.cmpf ogt, %5, %6 : vector<8x1024xf32>
    %cst_6 = arith.constant 2.000000e-01 : f32
    %8 = vector.broadcast %cst_6 : f32 to vector<8x1024xf32>
    %9 = arith.mulf %8, %5 : vector<8x1024xf32>
    %10 = arith.select %7, %5, %9 : vector<8x1024xi1>, vector<8x1024xf32>
    %11 = arith.truncf %10 : vector<8x1024xf32> to vector<8x1024xbf16>
    %c0_7 = arith.constant 0 : index
    %c0_8 = arith.constant 0 : index
    %12 = vector.load %arg4[%c0_7, %c0_8] : memref<1024x512xbf16, #tpu.memory_space<vmem>>, vector<1024x512xbf16>
    %cst_9 = arith.constant dense<0.000000e+00> : vector<8x512xf32>
    %13 = tpu.matmul %11, %12, %cst_9 {dimension_numbers = #tpu.dot_dimension_numbers<[1], [0], [0], [1], [0, 0, 1, 1], [], []>} : vector<8x1024xbf16>, vector<1024x512xbf16>, vector<8x512xf32> -> vector<8x512xf32>
    %c0_10 = arith.constant 0 : index
    %c0_11 = arith.constant 0 : index
    %14 = vector.load %arg5[%c0_10, %c0_11] : memref<1x512xf32, #tpu.memory_space<vmem>>, vector<1x512xf32>
    %15 = vector.broadcast %14 : vector<1x512xf32> to vector<8x512xf32>
    %16 = arith.addf %13, %15 : vector<8x512xf32>
    %cst_12 = arith.constant 0.000000e+00 : f32
    %17 = vector.broadcast %cst_12 : f32 to vector<8x512xf32>
    %18 = arith.cmpf ogt, %16, %17 : vector<8x512xf32>
    %cst_13 = arith.constant 2.000000e-01 : f32
    %19 = vector.broadcast %cst_13 : f32 to vector<8x512xf32>
    %20 = arith.mulf %19, %16 : vector<8x512xf32>
    %21 = arith.select %18, %16, %20 : vector<8x512xi1>, vector<8x512xf32>
    %22 = arith.truncf %21 : vector<8x512xf32> to vector<8x512xbf16>
    %c0_14 = arith.constant 0 : index
    %c0_15 = arith.constant 0 : index
    %23 = vector.load %arg6[%c0_14, %c0_15] : memref<512x256xbf16, #tpu.memory_space<vmem>>, vector<512x256xbf16>
    %cst_16 = arith.constant dense<0.000000e+00> : vector<8x256xf32>
    %24 = tpu.matmul %22, %23, %cst_16 {dimension_numbers = #tpu.dot_dimension_numbers<[1], [0], [0], [1], [0, 0, 1, 1], [], []>} : vector<8x512xbf16>, vector<512x256xbf16>, vector<8x256xf32> -> vector<8x256xf32>
    %c0_17 = arith.constant 0 : index
    %c0_18 = arith.constant 0 : index
    %25 = vector.load %arg7[%c0_17, %c0_18] : memref<1x256xf32, #tpu.memory_space<vmem>>, vector<1x256xf32>
    %26 = vector.broadcast %25 : vector<1x256xf32> to vector<8x256xf32>
    %27 = arith.addf %24, %26 : vector<8x256xf32>
    %cst_19 = arith.constant 0.000000e+00 : f32
    %28 = vector.broadcast %cst_19 : f32 to vector<8x256xf32>
    %29 = arith.cmpf ogt, %27, %28 : vector<8x256xf32>
    %cst_20 = arith.constant 2.000000e-01 : f32
    %30 = vector.broadcast %cst_20 : f32 to vector<8x256xf32>
    %31 = arith.mulf %30, %27 : vector<8x256xf32>
    %32 = arith.select %29, %27, %31 : vector<8x256xi1>, vector<8x256xf32>
    %c0_21 = arith.constant 0 : index
    %c0_22 = arith.constant 0 : index
    %33 = vector.load %arg8[%c0_21, %c0_22] : memref<1x256xf32, #tpu.memory_space<vmem>>, vector<1x256xf32>
    %34 = vector.broadcast %33 : vector<1x256xf32> to vector<8x256xf32>
    %35 = arith.mulf %32, %34 : vector<8x256xf32>
    %cst_23 = arith.constant dense<0.000000e+00> : vector<8xf32>
    %36 = vector.multi_reduction <add>, %35, %cst_23 [1] : vector<8x256xf32> to vector<8xf32>
    %37 = vector.shape_cast %36 : vector<8xf32> to vector<8x1xf32>
    %c0_24 = arith.constant 0 : index
    %c0_25 = arith.constant 0 : index
    %38 = vector.load %arg9[%c0_24, %c0_25] : memref<1x1xf32, #tpu.memory_space<vmem>>, vector<1x1xf32>
    %39 = vector.broadcast %38 : vector<1x1xf32> to vector<8x1xf32>
    %40 = arith.addf %37, %39 : vector<8x1xf32>
    %cst_26 = arith.constant 0.000000e+00 : f32
    %41 = vector.broadcast %cst_26 : f32 to vector<8x1xf32>
    %42 = arith.cmpf ogt, %40, %41 : vector<8x1xf32>
    %cst_27 = arith.constant 2.000000e-01 : f32
    %43 = vector.broadcast %cst_27 : f32 to vector<8x1xf32>
    %44 = arith.mulf %43, %40 : vector<8x1xf32>
    %45 = arith.select %42, %40, %44 : vector<8x1xi1>, vector<8x1xf32>
    %cst_28 = arith.constant 0.000000e+00 : f32
    %46 = vector.broadcast %cst_28 : f32 to vector<8x1xf32>
    %47 = arith.subf %46, %45 : vector<8x1xf32>
    %48 = math.exp %47 : vector<8x1xf32>
    %cst_29 = arith.constant 1.000000e+00 : f32
    %49 = vector.broadcast %cst_29 : f32 to vector<8x1xf32>
    %50 = arith.addf %49, %48 : vector<8x1xf32>
    %51 = tpu.reciprocal %50 {approx = true} : vector<8x1xf32> -> vector<8x1xf32>
    %c0_30 = arith.constant 0 : index
    %c0_31 = arith.constant 0 : index
    %52 = vector.load %arg10[%c0_30, %c0_31] : memref<8x1xf32, #tpu.memory_space<vmem>>, vector<8x1xf32>
    tpu.vector_store %arg10[%c0_30, %c0_31], %51 {strides = array<i32>} : memref<8x1xf32, #tpu.memory_space<vmem>>, vector<8x1xf32>,
    return
  }
  func.func @transform_0(%arg0: i32) -> (i32, i32) {
    %c0_i32 = arith.constant 0 : i32
    %c0_i32_0 = arith.constant 0 : i32
    return %arg0, %c0_i32 : i32, i32
  }
  func.func @transform_1(%arg0: i32) -> (i32, i32) {
    %c0_i32 = arith.constant 0 : i32
    %c0_i32_0 = arith.constant 0 : i32
    %c0_i32_1 = arith.constant 0 : i32
    return %c0_i32, %c0_i32_0 : i32, i32
  }
  func.func @transform_2(%arg0: i32) -> (i32, i32) {
    %c0_i32 = arith.constant 0 : i32
    %c0_i32_0 = arith.constant 0 : i32
    %c0_i32_1 = arith.constant 0 : i32
    return %c0_i32, %c0_i32_0 : i32, i32
  }
  func.func @transform_3(%arg0: i32) -> (i32, i32) {
    %c0_i32 = arith.constant 0 : i32
    %c0_i32_0 = arith.constant 0 : i32
    %c0_i32_1 = arith.constant 0 : i32
    return %c0_i32, %c0_i32_0 : i32, i32
  }
  func.func @transform_4(%arg0: i32) -> (i32, i32) {
    %c0_i32 = arith.constant 0 : i32
    %c0_i32_0 = arith.constant 0 : i32
    %c0_i32_1 = arith.constant 0 : i32
    return %c0_i32, %c0_i32_0 : i32, i32
  }
  func.func @transform_5(%arg0: i32) -> (i32, i32) {
    %c0_i32 = arith.constant 0 : i32
    %c0_i32_0 = arith.constant 0 : i32
    %c0_i32_1 = arith.constant 0 : i32
    return %c0_i32, %c0_i32_0 : i32, i32
  }
  func.func @transform_6(%arg0: i32) -> (i32, i32) {
    %c0_i32 = arith.constant 0 : i32
    %c0_i32_0 = arith.constant 0 : i32
    %c0_i32_1 = arith.constant 0 : i32
    return %c0_i32, %c0_i32_0 : i32, i32
  }
  func.func @transform_7(%arg0: i32) -> (i32, i32) {
    %c0_i32 = arith.constant 0 : i32
    %c0_i32_0 = arith.constant 0 : i32
    %c0_i32_1 = arith.constant 0 : i32
    return %c0_i32, %c0_i32_0 : i32, i32
  }
  func.func @transform_8(%arg0: i32) -> (i32, i32) {
    %c0_i32 = arith.constant 0 : i32
    %c0_i32_0 = arith.constant 0 : i32
    %c0_i32_1 = arith.constant 0 : i32
    return %c0_i32, %c0_i32_0 : i32, i32
  }
  func.func @transform_9(%arg0: i32) -> (i32, i32) {
    %c0_i32 = arith.constant 0 : i32
    %c0_i32_0 = arith.constant 0 : i32
    return %arg0, %c0_i32 : i32, i32
  }
}

</mosaic_0001>

<llo_original>
// kernel: tpu_custom_call.1
$region0: #{tpu_custom_call.1}
  #allocation0 [shape = 'u32[]', space=smem, size = 0x4, offset = 0x4, fixed_abs, tag = 'smem constant byte address 0x4 - core index']
  #allocation1 [shape = 'u32[144,128]{1,0:T(1,128)}', space=vmem, size = 0x12000, scoped, tag = 'internal scratch']
  #allocation2 [shape = 'f32[1,1]{1,0:T(1,128)S(1)}', space=vmem, size = 0x200, scoped, tag = 'scoped memory for tpu_custom_call.1']
  %s0 = inlined_call_operand.hbm [shape: bf16[8,1024], index: 0, kind: input, shape index: {}]
  %s1 = inlined_call_operand.hbm [shape: bf16[1024,1024], index: 1, kind: input, shape index: {}]
  %s2 = inlined_call_operand.hbm [shape: f32[1,1024], index: 2, kind: input, shape index: {}]
  %s3 = inlined_call_operand.hbm [shape: bf16[1024,512], index: 3, kind: input, shape index: {}]
  %s4 = inlined_call_operand.hbm [shape: f32[1,512], index: 4, kind: input, shape index: {}]
  %s5 = inlined_call_operand.hbm [shape: bf16[512,256], index: 5, kind: input, shape index: {}]
  %s6 = inlined_call_operand.hbm [shape: f32[1,256], index: 6, kind: input, shape index: {}]
  %s7 = inlined_call_operand.hbm [shape: f32[1,256], index: 7, kind: input, shape index: {}]
  %s8 = inlined_call_operand.<no memory space> [shape: f32[1,1], index: 8, kind: input, shape index: {}]
  %s9 = inlined_call_operand.vmem [shape: f32[8,1], index: 9, kind: output, shape index: {}]
  %s10 = sld [smem:[#allocation0]]
  $region78: #{tpu_custom_call.1} parent=0
    _
  %s12 = ssub.s32 1, %s10
  %s13 = scalar_select 0, %s12, %s10
  %v14 = vstv %s8
  %15 = vst [vmem:[#allocation2] sm:$0x1] %v14
  $region1: #{tpu_custom_call.1} parent=0
    #allocation3 [shape = 'u8[16384]{0}', space=vmem, size = 0x4000, scoped, tag = 'input window, operand 0, single buffered']
    #allocation4 [shape = 's32[1]{0}', space=sflag, size = 0x4, scoped, tag = 'scoped memory for tpu_custom_call.1']
    #allocation5 [shape = 'u8[2097152]{0}', space=vmem, size = 0x200000, scoped, tag = 'input window, operand 1, single buffered']
    #allocation6 [shape = 's32[1]{0}', space=sflag, size = 0x4, scoped, tag = 'scoped memory for tpu_custom_call.1']
    #allocation7 [shape = 'u8[4096]{0}', space=vmem, size = 0x1000, scoped, tag = 'input window, operand 2, single buffered']
    #allocation8 [shape = 'u8[1048576]{0}', space=vmem, size = 0x100000, scoped, tag = 'input window, operand 3, single buffered']
    #allocation9 [shape = 's32[1]{0}', space=sflag, size = 0x4, scoped, tag = 'scoped memory for tpu_custom_call.1']
    #allocation10 [shape = 'u8[2048]{0}', space=vmem, size = 0x800, scoped, tag = 'input window, operand 4, single buffered']
    #allocation11 [shape = 'u8[262144]{0}', space=vmem, size = 0x40000, scoped, tag = 'input window, operand 5, single buffered']
    #allocation12 [shape = 's32[1]{0}', space=sflag, size = 0x4, scoped, tag = 'scoped memory for tpu_custom_call.1']
    #allocation13 [shape = 'u8[1024]{0}', space=vmem, size = 0x400, scoped, tag = 'input window, operand 6, single buffered']
    #allocation14 [shape = 'u8[1024]{0}', space=vmem, size = 0x400, scoped, tag = 'input window, operand 7, single buffered']
    #allocation15 [shape = 's32[1]{0}', space=sflag, size = 0x4, scoped, tag = 'scoped memory for tpu_custom_call.1']
    %16 = vsyncpa [#allocation4], 0
    %17 = vsyncpa [#allocation6], 0
    %18 = vsyncpa [#allocation9], 0
    %19 = vsyncpa [#allocation12], 0
    %20 = vsyncpa [#allocation15], 0
    // Predicated region
    $region2: #{tpu_custom_call.1} parent=1 // pred_check
      _
    $region3: #{tpu_custom_call.1} parent=1 // pred_check_branch
      %22 = sbr.rel (0) target = $region5
    $region4: #{tpu_custom_call.1} parent=1 // pred_region
      %s24 = ssub.s32 512, 512
      %25 = vsyncadd [#allocation4], %s24
      %s27 = sshll.u32 [#allocation3], 4
      %s28 = int_to_ptr.vmem [resolvable:$true] %s27
      %30 = dma.hbm_to_vmem [thread:$0]  %s0, 512, %s28, [#allocation4]
    $region5: #{tpu_custom_call.1} parent=1 // pred_fallthru
      _
    // Predicated region
    $region6: #{tpu_custom_call.1} parent=1 // pred_check
      _
    $region7: #{tpu_custom_call.1} parent=1 // pred_check_branch
      %32 = sbr.rel (0) target = $region9
    $region8: #{tpu_custom_call.1} parent=1 // pred_region
      %s34 = ssub.s32 65536, 65536
      %35 = vsyncadd [#allocation6], %s34
      %s36 = sshll.u32 [#allocation5], 4
      %s37 = int_to_ptr.vmem [resolvable:$true] %s36
      %42 = dma.hbm_to_vmem [thread:$0]  %s1, 65536, %s37, [#allocation6], 512, 512, 32
    $region9: #{tpu_custom_call.1} parent=1 // pred_fallthru
      _
    // Predicated region
    $region10: #{tpu_custom_call.1} parent=1 // pred_check
      _
    $region11: #{tpu_custom_call.1} parent=1 // pred_check_branch
      %44 = sbr.rel (0) target = $region13
    $region12: #{tpu_custom_call.1} parent=1 // pred_region
      %s46 = ssub.s32 128, 128
      %47 = vsyncadd [#allocation6], %s46
      %s49 = sshll.u32 [#allocation7], 4
      %s50 = int_to_ptr.vmem [resolvable:$true] %s49
      %52 = dma.hbm_to_vmem [thread:$0]  %s2, 128, %s50, [#allocation6]
    $region13: #{tpu_custom_call.1} parent=1 // pred_fallthru
      _
    // Predicated region
    $region14: #{tpu_custom_call.1} parent=1 // pred_check
      _
    $region15: #{tpu_custom_call.1} parent=1 // pred_check_branch
      %54 = sbr.rel (0) target = $region17
    $region16: #{tpu_custom_call.1} parent=1 // pred_region
      %s56 = ssub.s32 32768, 32768
      %57 = vsyncadd [#allocation9], %s56
      %s58 = sshll.u32 [#allocation8], 4
      %s59 = int_to_ptr.vmem [resolvable:$true] %s58
      %64 = dma.hbm_to_vmem [thread:$0]  %s3, 32768, %s59, [#allocation9], 256, 256, 16
    $region17: #{tpu_custom_call.1} parent=1 // pred_fallthru
      _
    // Predicated region
    $region18: #{tpu_custom_call.1} parent=1 // pred_check
      _
    $region19: #{tpu_custom_call.1} parent=1 // pred_check_branch
      %66 = sbr.rel (0) target = $region21
    $region20: #{tpu_custom_call.1} parent=1 // pred_region
      %s68 = ssub.s32 64, 64
      %69 = vsyncadd [#allocation9], %s68
      %s71 = sshll.u32 [#allocation10], 4
      %s72 = int_to_ptr.vmem [resolvable:$true] %s71
      %74 = dma.hbm_to_vmem [thread:$0]  %s4, 64, %s72, [#allocation9]
    $region21: #{tpu_custom_call.1} parent=1 // pred_fallthru
      _
    // Predicated region
    $region22: #{tpu_custom_call.1} parent=1 // pred_check
      _
    $region23: #{tpu_custom_call.1} parent=1 // pred_check_branch
      %76 = sbr.rel (0) target = $region25
    $region24: #{tpu_custom_call.1} parent=1 // pred_region
      %s78 = ssub.s32 8192, 8192
      %79 = vsyncadd [#allocation12], %s78
      %s80 = sshll.u32 [#allocation11], 4
      %s81 = int_to_ptr.vmem [resolvable:$true] %s80
      %86 = dma.hbm_to_vmem [thread:$0]  %s5, 8192, %s81, [#allocation12], 128, 128, 8
    $region25: #{tpu_custom_call.1} parent=1 // pred_fallthru
      _
    // Predicated region
    $region26: #{tpu_custom_call.1} parent=1 // pred_check
      _
    $region27: #{tpu_custom_call.1} parent=1 // pred_check_branch
      %88 = sbr.rel (0) target = $region29
    $region28: #{tpu_custom_call.1} parent=1 // pred_region
      %s90 = ssub.s32 32, 32
      %91 = vsyncadd [#allocation12], %s90
      %s93 = sshll.u32 [#allocation13], 4
      %s94 = int_to_ptr.vmem [resolvable:$true] %s93
      %96 = dma.hbm_to_vmem [thread:$0]  %s6, 32, %s94, [#allocation12]
    $region29: #{tpu_custom_call.1} parent=1 // pred_fallthru
      _
    // Predicated region
    $region30: #{tpu_custom_call.1} parent=1 // pred_check
      _
    $region31: #{tpu_custom_call.1} parent=1 // pred_check_branch
      %98 = sbr.rel (0) target = $region33
    $region32: #{tpu_custom_call.1} parent=1 // pred_region
      %s100 = ssub.s32 32, 32
      %101 = vsyncadd [#allocation15], %s100
      %s103 = sshll.u32 [#allocation14], 4
      %s104 = int_to_ptr.vmem [resolvable:$true] %s103
      %106 = dma.hbm_to_vmem [thread:$0]  %s7, 32, %s104, [#allocation15]
    $region33: #{tpu_custom_call.1} parent=1 // pred_fallthru
      _
    // Predicated region
    $region34: #{tpu_custom_call.1} parent=1 // pred_check
      _
    $region35: #{tpu_custom_call.1} parent=1 // pred_check_branch
      %108 = sbr.rel (0) target = $region37
    $region36: #{tpu_custom_call.1} parent=1 // pred_region
      _
    $region37: #{tpu_custom_call.1} parent=1 // pred_fallthru
      _
    // Predicated region
    $region38: #{tpu_custom_call.1} parent=1 // pred_check
      _
    $region39: #{tpu_custom_call.1} parent=1 // pred_check_branch
      %110 = sbr.rel (0) target = $region41
    $region40: #{tpu_custom_call.1} parent=1 // pred_region
      %111 = dma.done [#allocation4], 512
    $region41: #{tpu_custom_call.1} parent=1 // pred_fallthru
      _
    // Predicated region
    $region42: #{tpu_custom_call.1} parent=1 // pred_check
      _
    $region43: #{tpu_custom_call.1} parent=1 // pred_check_branch
      %113 = sbr.rel (0) target = $region45
    $region44: #{tpu_custom_call.1} parent=1 // pred_region
      %114 = dma.done [#allocation6], 65536
    $region45: #{tpu_custom_call.1} parent=1 // pred_fallthru
      _
    // Predicated region
    $region46: #{tpu_custom_call.1} parent=1 // pred_check
      _
    $region47: #{tpu_custom_call.1} parent=1 // pred_check_branch
      %116 = sbr.rel (0) target = $region49
    $region48: #{tpu_custom_call.1} parent=1 // pred_region
      %117 = dma.done [#allocation6], 128
    $region49: #{tpu_custom_call.1} parent=1 // pred_fallthru
      _
    // Predicated region
    $region50: #{tpu_custom_call.1} parent=1 // pred_check
      _
    $region51: #{tpu_custom_call.1} parent=1 // pred_check_branch
      %119 = sbr.rel (0) target = $region53
    $region52: #{tpu_custom_call.1} parent=1 // pred_region
      %120 = dma.done [#allocation9], 32768
    $region53: #{tpu_custom_call.1} parent=1 // pred_fallthru
      _
    // Predicated region
    $region54: #{tpu_custom_call.1} parent=1 // pred_check
      _
    $region55: #{tpu_custom_call.1} parent=1 // pred_check_branch
      %122 = sbr.rel (0) target = $region57
    $region56: #{tpu_custom_call.1} parent=1 // pred_region
      %123 = dma.done [#allocation9], 64
    $region57: #{tpu_custom_call.1} parent=1 // pred_fallthru
      _
    // Predicated region
    $region58: #{tpu_custom_call.1} parent=1 // pred_check
      _
    $region59: #{tpu_custom_call.1} parent=1 // pred_check_branch
      %125 = sbr.rel (0) target = $region61
    $region60: #{tpu_custom_call.1} parent=1 // pred_region
      %126 = dma.done [#allocation12], 8192
    $region61: #{tpu_custom_call.1} parent=1 // pred_fallthru
      _
    // Predicated region
    $region62: #{tpu_custom_call.1} parent=1 // pred_check
      _
    $region63: #{tpu_custom_call.1} parent=1 // pred_check_branch
      %128 = sbr.rel (0) target = $region65
    $region64: #{tpu_custom_call.1} parent=1 // pred_region
      %129 = dma.done [#allocation12], 32
    $region65: #{tpu_custom_call.1} parent=1 // pred_fallthru
      _
    // Predicated region
    $region66: #{tpu_custom_call.1} parent=1 // pred_check
      _
    $region67: #{tpu_custom_call.1} parent=1 // pred_check_branch
      %131 = sbr.rel (0) target = $region69
    $region68: #{tpu_custom_call.1} parent=1 // pred_region
      %132 = dma.done [#allocation15], 32
    $region69: #{tpu_custom_call.1} parent=1 // pred_fallthru
      _
    %v133 = vld [vmem:[#allocation3] sm:$0xff]
    %v134 = vld [vmem:[#allocation3 + $0x8] sm:$0xff]
    %v135 = vld [vmem:[#allocation3 + $0x10] sm:$0xff]
    %v136 = vld [vmem:[#allocation3 + $0x18] sm:$0xff]
    %v137 = vld [vmem:[#allocation5] sm:$0xff]
    %v138 = vld [vmem:[#allocation5 + $0x8] sm:$0xff]
    %v139 = vld [vmem:[#allocation5 + $0x10] sm:$0xff]
    %v140 = vld [vmem:[#allocation5 + $0x18] sm:$0xff]
    %v141 = vld [vmem:[#allocation5 + $0x20] sm:$0xff]
    %v142 = vld [vmem:[#allocation5 + $0x28] sm:$0xff]
    %v143 = vld [vmem:[#allocation5 + $0x30] sm:$0xff]
    %v144 = vld [vmem:[#allocation5 + $0x38] sm:$0xff]
    %v145 = vld [vmem:[#allocation5 + $0x40] sm:$0xff]
    %v146 = vld [vmem:[#allocation5 + $0x48] sm:$0xff]
    %v147 = vld [vmem:[#allocation5 + $0x50] sm:$0xff]
    %v148 = vld [vmem:[#allocation5 + $0x58] sm:$0xff]
    %v149 = vld [vmem:[#allocation5 + $0x60] sm:$0xff]
    %v150 = vld [vmem:[#allocation5 + $0x68] sm:$0xff]
    %v151 = vld [vmem:[#allocation5 + $0x70] sm:$0xff]
    %v152 = vld [vmem:[#allocation5 + $0x78] sm:$0xff]
    %v153 = vld [vmem:[#allocation5 + $0x80] sm:$0xff]
    %v154 = vld [vmem:[#allocation5 + $0x88] sm:$0xff]
    %v155 = vld [vmem:[#allocation5 + $0x90] sm:$0xff]
    %v156 = vld [vmem:[#allocation5 + $0x98] sm:$0xff]
    %v157 = vld [vmem:[#allocation5 + $0xa0] sm:$0xff]
    %v158 = vld [vmem:[#allocation5 + $0xa8] sm:$0xff]
    %v159 = vld [vmem:[#allocation5 + $0xb0] sm:$0xff]
    %v160 = vld [vmem:[#allocation5 + $0xb8] sm:$0xff]
    %v161 = vld [vmem:[#allocation5 + $0xc0] sm:$0xff]
    %v162 = vld [vmem:[#allocation5 + $0xc8] sm:$0xff]
    %v163 = vld [vmem:[#allocation5 + $0xd0] sm:$0xff]
    %v164 = vld [vmem:[#allocation5 + $0xd8] sm:$0xff]
    %v165 = vld [vmem:[#allocation5 + $0xe0] sm:$0xff]
    %v166 = vld [vmem:[#allocation5 + $0xe8] sm:$0xff]
    %v167 = vld [vmem:[#allocation5 + $0xf0] sm:$0xff]
    %v168 = vld [vmem:[#allocation5 + $0xf8] sm:$0xff]
    %v169 = vld [vmem:[#allocation5 + $0x100] sm:$0xff]
    %v170 = vld [vmem:[#allocation5 + $0x108] sm:$0xff]
    %v171 = vld [vmem:[#allocation5 + $0x110] sm:$0xff]
    %v172 = vld [vmem:[#allocation5 + $0x118] sm:$0xff]
    %v173 = vld [vmem:[#allocation5 + $0x120] sm:$0xff]
    %v174 = vld [vmem:[#allocation5 + $0x128] sm:$0xff]
    %v175 = vld [vmem:[#allocation5 + $0x130] sm:$0xff]
    %v176 = vld [vmem:[#allocation5 + $0x138] sm:$0xff]
    %v177 = vld [vmem:[#allocation5 + $0x140] sm:$0xff]
    %v178 = vld [vmem:[#allocation5 + $0x148] sm:$0xff]
    %v179 = vld [vmem:[#allocation5 + $0x150] sm:$0xff]
    %v180 = vld [vmem:[#allocation5 + $0x158] sm:$0xff]
    %v181 = vld [vmem:[#allocation5 + $0x160] sm:$0xff]
    %v182 = vld [vmem:[#allocation5 + $0x168] sm:$0xff]
    %v183 = vld [vmem:[#allocation5 + $0x170] sm:$0xff]
    %v184 = vld [vmem:[#allocation5 + $0x178] sm:$0xff]
    %v185 = vld [vmem:[#allocation5 + $0x180] sm:$0xff]
    %v186 = vld [vmem:[#allocation5 + $0x188] sm:$0xff]
    %v187 = vld [vmem:[#allocation5 + $0x190] sm:$0xff]
    %v188 = vld [vmem:[#allocation5 + $0x198] sm:$0xff]
    %v189 = vld [vmem:[#allocation5 + $0x1a0] sm:$0xff]
    %v190 = vld [vmem:[#allocation5 + $0x1a8] sm:$0xff]
    %v191 = vld [vmem:[#allocation5 + $0x1b0] sm:$0xff]
    %v192 = vld [vmem:[#allocation5 + $0x1b8] sm:$0xff]
    %v193 = vld [vmem:[#allocation5 + $0x1c0] sm:$0xff]
    %v194 = vld [vmem:[#allocation5 + $0x1c8] sm:$0xff]
    %v195 = vld [vmem:[#allocation5 + $0x1d0] sm:$0xff]
    %v196 = vld [vmem:[#allocation5 + $0x1d8] sm:$0xff]
    %v197 = vld [vmem:[#allocation5 + $0x1e0] sm:$0xff]
    %v198 = vld [vmem:[#allocation5 + $0x1e8] sm:$0xff]
    %v199 = vld [vmem:[#allocation5 + $0x1f0] sm:$0xff]
    %v200 = vld [vmem:[#allocation5 + $0x1f8] sm:$0xff]
    %v201 = vld [vmem:[#allocation5 + $0x200] sm:$0xff]
    %v202 = vld [vmem:[#allocation5 + $0x208] sm:$0xff]
    %v203 = vld [vmem:[#allocation5 + $0x210] sm:$0xff]
    %v204 = vld [vmem:[#allocation5 + $0x218] sm:$0xff]
    %v205 = vld [vmem:[#allocation5 + $0x220] sm:$0xff]
    %v206 = vld [vmem:[#allocation5 + $0x228] sm:$0xff]
    %v207 = vld [vmem:[#allocation5 + $0x230] sm:$0xff]
    %v208 = vld [vmem:[#allocation5 + $0x238] sm:$0xff]
    %v209 = vld [vmem:[#allocation5 + $0x240] sm:$0xff]
    %v210 = vld [vmem:[#allocation5 + $0x248] sm:$0xff]
    %v211 = vld [vmem:[#allocation5 + $0x250] sm:$0xff]
    %v212 = vld [vmem:[#allocation5 + $0x258] sm:$0xff]
    %v213 = vld [vmem:[#allocation5 + $0x260] sm:$0xff]
    %v214 = vld [vmem:[#allocation5 + $0x268] sm:$0xff]
    %v215 = vld [vmem:[#allocation5 + $0x270] sm:$0xff]
    %v216 = vld [vmem:[#allocation5 + $0x278] sm:$0xff]
    %v217 = vld [vmem:[#allocation5 + $0x280] sm:$0xff]
    %v218 = vld [vmem:[#allocation5 + $0x288] sm:$0xff]
    %v219 = vld [vmem:[#allocation5 + $0x290] sm:$0xff]
    %v220 = vld [vmem:[#allocation5 + $0x298] sm:$0xff]
    %v221 = vld [vmem:[#allocation5 + $0x2a0] sm:$0xff]
    %v222 = vld [vmem:[#allocation5 + $0x2a8] sm:$0xff]
    %v223 = vld [vmem:[#allocation5 + $0x2b0] sm:$0xff]
    %v224 = vld [vmem:[#allocation5 + $0x2b8] sm:$0xff]
    %v225 = vld [vmem:[#allocation5 + $0x2c0] sm:$0xff]
    %v226 = vld [vmem:[#allocation5 + $0x2c8] sm:$0xff]
    %v227 = vld [vmem:[#allocation5 + $0x2d0] sm:$0xff]
    %v228 = vld [vmem:[#allocation5 + $0x2d8] sm:$0xff]
    %v229 = vld [vmem:[#allocation5 + $0x2e0] sm:$0xff]
    %v230 = vld [vmem:[#allocation5 + $0x2e8] sm:$0xff]
    %v231 = vld [vmem:[#allocation5 + $0x2f0] sm:$0xff]
    %v232 = vld [vmem:[#allocation5 + $0x2f8] sm:$0xff]
    %v233 = vld [vmem:[#allocation5 + $0x300] sm:$0xff]
    %v234 = vld [vmem:[#allocation5 + $0x308] sm:$0xff]
    %v235 = vld [vmem:[#allocation5 + $0x310] sm:$0xff]
    %v236 = vld [vmem:[#allocation5 + $0x318] sm:$0xff]
    %v237 = vld [vmem:[#allocation5 + $0x320] sm:$0xff]
    %v238 = vld [vmem:[#allocation5 + $0x328] sm:$0xff]
    %v239 = vld [vmem:[#allocation5 + $0x330] sm:$0xff]
    %v240 = vld [vmem:[#allocation5 + $0x338] sm:$0xff]
    %v241 = vld [vmem:[#allocation5 + $0x340] sm:$0xff]
    %v242 = vld [vmem:[#allocation5 + $0x348] sm:$0xff]
    %v243 = vld [vmem:[#allocation5 + $0x350] sm:$0xff]
    %v244 = vld [vmem:[#allocation5 + $0x358] sm:$0xff]
    %v245 = vld [vmem:[#allocation5 + $0x360] sm:$0xff]
    %v246 = vld [vmem:[#allocation5 + $0x368] sm:$0xff]
    %v247 = vld [vmem:[#allocation5 + $0x370] sm:$0xff]
    %v248 = vld [vmem:[#allocation5 + $0x378] sm:$0xff]
    %v249 = vld [vmem:[#allocation5 + $0x380] sm:$0xff]
    %v250 = vld [vmem:[#allocation5 + $0x388] sm:$0xff]
    %v251 = vld [vmem:[#allocation5 + $0x390] sm:$0xff]
    %v252 = vld [vmem:[#allocation5 + $0x398] sm:$0xff]
    %v253 = vld [vmem:[#allocation5 + $0x3a0] sm:$0xff]
    %v254 = vld [vmem:[#allocation5 + $0x3a8] sm:$0xff]
    %v255 = vld [vmem:[#allocation5 + $0x3b0] sm:$0xff]
    %v256 = vld [vmem:[#allocation5 + $0x3b8] sm:$0xff]
    %v257 = vld [vmem:[#allocation5 + $0x3c0] sm:$0xff]
    %v258 = vld [vmem:[#allocation5 + $0x3c8] sm:$0xff]
    %v259 = vld [vmem:[#allocation5 + $0x3d0] sm:$0xff]
    %v260 = vld [vmem:[#allocation5 + $0x3d8] sm:$0xff]
    %v261 = vld [vmem:[#allocation5 + $0x3e0] sm:$0xff]
    %v262 = vld [vmem:[#allocation5 + $0x3e8] sm:$0xff]
    %v263 = vld [vmem:[#allocation5 + $0x3f0] sm:$0xff]
    %v264 = vld [vmem:[#allocation5 + $0x3f8] sm:$0xff]
    %v265 = vld [vmem:[#allocation5 + $0x400] sm:$0xff]
    %v266 = vld [vmem:[#allocation5 + $0x408] sm:$0xff]
    %v267 = vld [vmem:[#allocation5 + $0x410] sm:$0xff]
    %v268 = vld [vmem:[#allocation5 + $0x418] sm:$0xff]
    %v269 = vld [vmem:[#allocation5 + $0x420] sm:$0xff]
    %v270 = vld [vmem:[#allocation5 + $0x428] sm:$0xff]
    %v271 = vld [vmem:[#allocation5 + $0x430] sm:$0xff]
    %v272 = vld [vmem:[#allocation5 + $0x438] sm:$0xff]
    %v273 = vld [vmem:[#allocation5 + $0x440] sm:$0xff]
    %v274 = vld [vmem:[#allocation5 + $0x448] sm:$0xff]
    %v275 = vld [vmem:[#allocation5 + $0x450] sm:$0xff]
    %v276 = vld [vmem:[#allocation5 + $0x458] sm:$0xff]
    %v277 = vld [vmem:[#allocation5 + $0x460] sm:$0xff]
    %v278 = vld [vmem:[#allocation5 + $0x468] sm:$0xff]
    %v279 = vld [vmem:[#allocation5 + $0x470] sm:$0xff]
    %v280 = vld [vmem:[#allocation5 + $0x478] sm:$0xff]
    %v281 = vld [vmem:[#allocation5 + $0x480] sm:$0xff]
    %v282 = vld [vmem:[#allocation5 + $0x488] sm:$0xff]
    %v283 = vld [vmem:[#allocation5 + $0x490] sm:$0xff]
    %v284 = vld [vmem:[#allocation5 + $0x498] sm:$0xff]
    %v285 = vld [vmem:[#allocation5 + $0x4a0] sm:$0xff]
    %v286 = vld [vmem:[#allocation5 + $0x4a8] sm:$0xff]
    %v287 = vld [vmem:[#allocation5 + $0x4b0] sm:$0xff]
    %v288 = vld [vmem:[#allocation5 + $0x4b8] sm:$0xff]
    %v289 = vld [vmem:[#allocation5 + $0x4c0] sm:$0xff]
    %v290 = vld [vmem:[#allocation5 + $0x4c8] sm:$0xff]
    %v291 = vld [vmem:[#allocation5 + $0x4d0] sm:$0xff]
    %v292 = vld [vmem:[#allocation5 + $0x4d8] sm:$0xff]
    %v293 = vld [vmem:[#allocation5 + $0x4e0] sm:$0xff]
    %v294 = vld [vmem:[#allocation5 + $0x4e8] sm:$0xff]
    %v295 = vld [vmem:[#allocation5 + $0x4f0] sm:$0xff]
    %v296 = vld [vmem:[#allocation5 + $0x4f8] sm:$0xff]
    %v297 = vld [vmem:[#allocation5 + $0x500] sm:$0xff]
    %v298 = vld [vmem:[#allocation5 + $0x508] sm:$0xff]
    %v299 = vld [vmem:[#allocation5 + $0x510] sm:$0xff]
    %v300 = vld [vmem:[#allocation5 + $0x518] sm:$0xff]
    %v301 = vld [vmem:[#allocation5 + $0x520] sm:$0xff]
    %v302 = vld [vmem:[#allocation5 + $0x528] sm:$0xff]
    %v303 = vld [vmem:[#allocation5 + $0x530] sm:$0xff]
    %v304 = vld [vmem:[#allocation5 + $0x538] sm:$0xff]
    %v305 = vld [vmem:[#allocation5 + $0x540] sm:$0xff]
    %v306 = vld [vmem:[#allocation5 + $0x548] sm:$0xff]
    %v307 = vld [vmem:[#allocation5 + $0x550] sm:$0xff]
    %v308 = vld [vmem:[#allocation5 + $0x558] sm:$0xff]
    %v309 = vld [vmem:[#allocation5 + $0x560] sm:$0xff]
    %v310 = vld [vmem:[#allocation5 + $0x568] sm:$0xff]
    %v311 = vld [vmem:[#allocation5 + $0x570] sm:$0xff]
    %v312 = vld [vmem:[#allocation5 + $0x578] sm:$0xff]
    %v313 = vld [vmem:[#allocation5 + $0x580] sm:$0xff]
    %v314 = vld [vmem:[#allocation5 + $0x588] sm:$0xff]
    %v315 = vld [vmem:[#allocation5 + $0x590] sm:$0xff]
    %v316 = vld [vmem:[#allocation5 + $0x598] sm:$0xff]
    %v317 = vld [vmem:[#allocation5 + $0x5a0] sm:$0xff]
    %v318 = vld [vmem:[#allocation5 + $0x5a8] sm:$0xff]
    %v319 = vld [vmem:[#allocation5 + $0x5b0] sm:$0xff]
    %v320 = vld [vmem:[#allocation5 + $0x5b8] sm:$0xff]
    %v321 = vld [vmem:[#allocation5 + $0x5c0] sm:$0xff]
    %v322 = vld [vmem:[#allocation5 + $0x5c8] sm:$0xff]
    %v323 = vld [vmem:[#allocation5 + $0x5d0] sm:$0xff]
    %v324 = vld [vmem:[#allocation5 + $0x5d8] sm:$0xff]
    %v325 = vld [vmem:[#allocation5 + $0x5e0] sm:$0xff]
    %v326 = vld [vmem:[#allocation5 + $0x5e8] sm:$0xff]
    %v327 = vld [vmem:[#allocation5 + $0x5f0] sm:$0xff]
    %v328 = vld [vmem:[#allocation5 + $0x5f8] sm:$0xff]
    %v329 = vld [vmem:[#allocation5 + $0x600] sm:$0xff]
    %v330 = vld [vmem:[#allocation5 + $0x608] sm:$0xff]
    %v331 = vld [vmem:[#allocation5 + $0x610] sm:$0xff]
    %v332 = vld [vmem:[#allocation5 + $0x618] sm:$0xff]
    %v333 = vld [vmem:[#allocation5 + $0x620] sm:$0xff]
    %v334 = vld [vmem:[#allocation5 + $0x628] sm:$0xff]
    %v335 = vld [vmem:[#allocation5 + $0x630] sm:$0xff]
    %v336 = vld [vmem:[#allocation5 + $0x638] sm:$0xff]
    %v337 = vld [vmem:[#allocation5 + $0x640] sm:$0xff]
    %v338 = vld [vmem:[#allocation5 + $0x648] sm:$0xff]
    %v339 = vld [vmem:[#allocation5 + $0x650] sm:$0xff]
    %v340 = vld [vmem:[#allocation5 + $0x658] sm:$0xff]
    %v341 = vld [vmem:[#allocation5 + $0x660] sm:$0xff]
    %v342 = vld [vmem:[#allocation5 + $0x668] sm:$0xff]
    %v343 = vld [vmem:[#allocation5 + $0x670] sm:$0xff]
    %v344 = vld [vmem:[#allocation5 + $0x678] sm:$0xff]
    %v345 = vld [vmem:[#allocation5 + $0x680] sm:$0xff]
    %v346 = vld [vmem:[#allocation5 + $0x688] sm:$0xff]
    %v347 = vld [vmem:[#allocation5 + $0x690] sm:$0xff]
    %v348 = vld [vmem:[#allocation5 + $0x698] sm:$0xff]
    %v349 = vld [vmem:[#allocation5 + $0x6a0] sm:$0xff]
    %v350 = vld [vmem:[#allocation5 + $0x6a8] sm:$0xff]
    %v351 = vld [vmem:[#allocation5 + $0x6b0] sm:$0xff]
    %v352 = vld [vmem:[#allocation5 + $0x6b8] sm:$0xff]
    %v353 = vld [vmem:[#allocation5 + $0x6c0] sm:$0xff]
    %v354 = vld [vmem:[#allocation5 + $0x6c8] sm:$0xff]
    %v355 = vld [vmem:[#allocation5 + $0x6d0] sm:$0xff]
    %v356 = vld [vmem:[#allocation5 + $0x6d8] sm:$0xff]
    %v357 = vld [vmem:[#allocation5 + $0x6e0] sm:$0xff]
    %v358 = vld [vmem:[#allocation5 + $0x6e8] sm:$0xff]
    %v359 = vld [vmem:[#allocation5 + $0x6f0] sm:$0xff]
    %v360 = vld [vmem:[#allocation5 + $0x6f8] sm:$0xff]
    %v361 = vld [vmem:[#allocation5 + $0x700] sm:$0xff]
    %v362 = vld [vmem:[#allocation5 + $0x708] sm:$0xff]
    %v363 = vld [vmem:[#allocation5 + $0x710] sm:$0xff]
    %v364 = vld [vmem:[#allocation5 + $0x718] sm:$0xff]
    %v365 = vld [vmem:[#allocation5 + $0x720] sm:$0xff]
    %v366 = vld [vmem:[#allocation5 + $0x728] sm:$0xff]
    %v367 = vld [vmem:[#allocation5 + $0x730] sm:$0xff]
    %v368 = vld [vmem:[#allocation5 + $0x738] sm:$0xff]
    %v369 = vld [vmem:[#allocation5 + $0x740] sm:$0xff]
    %v370 = vld [vmem:[#allocation5 + $0x748] sm:$0xff]
    %v371 = vld [vmem:[#allocation5 + $0x750] sm:$0xff]
    %v372 = vld [vmem:[#allocation5 + $0x758] sm:$0xff]
    %v373 = vld [vmem:[#allocation5 + $0x760] sm:$0xff]
    %v374 = vld [vmem:[#allocation5 + $0x768] sm:$0xff]
    %v375 = vld [vmem:[#allocation5 + $0x770] sm:$0xff]
    %v376 = vld [vmem:[#allocation5 + $0x778] sm:$0xff]
    %v377 = vld [vmem:[#allocation5 + $0x780] sm:$0xff]
    %v378 = vld [vmem:[#allocation5 + $0x788] sm:$0xff]
    %v379 = vld [vmem:[#allocation5 + $0x790] sm:$0xff]
    %v380 = vld [vmem:[#allocation5 + $0x798] sm:$0xff]
    %v381 = vld [vmem:[#allocation5 + $0x7a0] sm:$0xff]
    %v382 = vld [vmem:[#allocation5 + $0x7a8] sm:$0xff]
    %v383 = vld [vmem:[#allocation5 + $0x7b0] sm:$0xff]
    %v384 = vld [vmem:[#allocation5 + $0x7b8] sm:$0xff]
    %v385 = vld [vmem:[#allocation5 + $0x7c0] sm:$0xff]
    %v386 = vld [vmem:[#allocation5 + $0x7c8] sm:$0xff]
    %v387 = vld [vmem:[#allocation5 + $0x7d0] sm:$0xff]
    %v388 = vld [vmem:[#allocation5 + $0x7d8] sm:$0xff]
    %v389 = vld [vmem:[#allocation5 + $0x7e0] sm:$0xff]
    %v390 = vld [vmem:[#allocation5 + $0x7e8] sm:$0xff]
    %v391 = vld [vmem:[#allocation5 + $0x7f0] sm:$0xff]
    %v392 = vld [vmem:[#allocation5 + $0x7f8] sm:$0xff]
    %v393 = vld [vmem:[#allocation5 + $0x800] sm:$0xff]
    %v394 = vld [vmem:[#allocation5 + $0x808] sm:$0xff]
    %v395 = vld [vmem:[#allocation5 + $0x810] sm:$0xff]
    %v396 = vld [vmem:[#allocation5 + $0x818] sm:$0xff]
    %v397 = vld [vmem:[#allocation5 + $0x820] sm:$0xff]
    %v398 = vld [vmem:[#allocation5 + $0x828] sm:$0xff]
    %v399 = vld [vmem:[#allocation5 + $0x830] sm:$0xff]
    %v400 = vld [vmem:[#allocation5 + $0x838] sm:$0xff]
    %v401 = vld [vmem:[#allocation5 + $0x840] sm:$0xff]
    %v402 = vld [vmem:[#allocation5 + $0x848] sm:$0xff]
    %v403 = vld [vmem:[#allocation5 + $0x850] sm:$0xff]
    %v404 = vld [vmem:[#allocation5 + $0x858] sm:$0xff]
    %v405 = vld [vmem:[#allocation5 + $0x860] sm:$0xff]
    %v406 = vld [vmem:[#allocation5 + $0x868] sm:$0xff]
    %v407 = vld [vmem:[#allocation5 + $0x870] sm:$0xff]
    %v408 = vld [vmem:[#allocation5 + $0x878] sm:$0xff]
    %v409 = vld [vmem:[#allocation5 + $0x880] sm:$0xff]
    %v410 = vld [vmem:[#allocation5 + $0x888] sm:$0xff]
    %v411 = vld [vmem:[#allocation5 + $0x890] sm:$0xff]
    %v412 = vld [vmem:[#allocation5 + $0x898] sm:$0xff]
    %v413 = vld [vmem:[#allocation5 + $0x8a0] sm:$0xff]
    %v414 = vld [vmem:[#allocation5 + $0x8a8] sm:$0xff]
    %v415 = vld [vmem:[#allocation5 + $0x8b0] sm:$0xff]
    %v416 = vld [vmem:[#allocation5 + $0x8b8] sm:$0xff]
    %v417 = vld [vmem:[#allocation5 + $0x8c0] sm:$0xff]
    %v418 = vld [vmem:[#allocation5 + $0x8c8] sm:$0xff]
    %v419 = vld [vmem:[#allocation5 + $0x8d0] sm:$0xff]
    %v420 = vld [vmem:[#allocation5 + $0x8d8] sm:$0xff]
    %v421 = vld [vmem:[#allocation5 + $0x8e0] sm:$0xff]
    %v422 = vld [vmem:[#allocation5 + $0x8e8] sm:$0xff]
    %v423 = vld [vmem:[#allocation5 + $0x8f0] sm:$0xff]
    %v424 = vld [vmem:[#allocation5 + $0x8f8] sm:$0xff]
    %v425 = vld [vmem:[#allocation5 + $0x900] sm:$0xff]
    %v426 = vld [vmem:[#allocation5 + $0x908] sm:$0xff]
    %v427 = vld [vmem:[#allocation5 + $0x910] sm:$0xff]
    %v428 = vld [vmem:[#allocation5 + $0x918] sm:$0xff]
    %v429 = vld [vmem:[#allocation5 + $0x920] sm:$0xff]
    %v430 = vld [vmem:[#allocation5 + $0x928] sm:$0xff]
    %v431 = vld [vmem:[#allocation5 + $0x930] sm:$0xff]
    %v432 = vld [vmem:[#allocation5 + $0x938] sm:$0xff]
    %v433 = vld [vmem:[#allocation5 + $0x940] sm:$0xff]
    %v434 = vld [vmem:[#allocation5 + $0x948] sm:$0xff]
    %v435 = vld [vmem:[#allocation5 + $0x950] sm:$0xff]
    %v436 = vld [vmem:[#allocation5 + $0x958] sm:$0xff]
    %v437 = vld [vmem:[#allocation5 + $0x960] sm:$0xff]
    %v438 = vld [vmem:[#allocation5 + $0x968] sm:$0xff]
    %v439 = vld [vmem:[#allocation5 + $0x970] sm:$0xff]
    %v440 = vld [vmem:[#allocation5 + $0x978] sm:$0xff]
    %v441 = vld [vmem:[#allocation5 + $0x980] sm:$0xff]
    %v442 = vld [vmem:[#allocation5 + $0x988] sm:$0xff]
    %v443 = vld [vmem:[#allocation5 + $0x990] sm:$0xff]
    %v444 = vld [vmem:[#allocation5 + $0x998] sm:$0xff]
    %v445 = vld [vmem:[#allocation5 + $0x9a0] sm:$0xff]
    %v446 = vld [vmem:[#allocation5 + $0x9a8] sm:$0xff]
    %v447 = vld [vmem:[#allocation5 + $0x9b0] sm:$0xff]
    %v448 = vld [vmem:[#allocation5 + $0x9b8] sm:$0xff]
    %v449 = vld [vmem:[#allocation5 + $0x9c0] sm:$0xff]
    %v450 = vld [vmem:[#allocation5 + $0x9c8] sm:$0xff]
    %v451 = vld [vmem:[#allocation5 + $0x9d0] sm:$0xff]
    %v452 = vld [vmem:[#allocation5 + $0x9d8] sm:$0xff]
    %v453 = vld [vmem:[#allocation5 + $0x9e0] sm:$0xff]
    %v454 = vld [vmem:[#allocation5 + $0x9e8] sm:$0xff]
    %v455 = vld [vmem:[#allocation5 + $0x9f0] sm:$0xff]
    %v456 = vld [vmem:[#allocation5 + $0x9f8] sm:$0xff]
    %v457 = vld [vmem:[#allocation5 + $0xa00] sm:$0xff]
    %v458 = vld [vmem:[#allocation5 + $0xa08] sm:$0xff]
    %v459 = vld [vmem:[#allocation5 + $0xa10] sm:$0xff]
    %v460 = vld [vmem:[#allocation5 + $0xa18] sm:$0xff]
    %v461 = vld [vmem:[#allocation5 + $0xa20] sm:$0xff]
    %v462 = vld [vmem:[#allocation5 + $0xa28] sm:$0xff]
    %v463 = vld [vmem:[#allocation5 + $0xa30] sm:$0xff]
    %v464 = vld [vmem:[#allocation5 + $0xa38] sm:$0xff]
    %v465 = vld [vmem:[#allocation5 + $0xa40] sm:$0xff]
    %v466 = vld [vmem:[#allocation5 + $0xa48] sm:$0xff]
    %v467 = vld [vmem:[#allocation5 + $0xa50] sm:$0xff]
    %v468 = vld [vmem:[#allocation5 + $0xa58] sm:$0xff]
    %v469 = vld [vmem:[#allocation5 + $0xa60] sm:$0xff]
    %v470 = vld [vmem:[#allocation5 + $0xa68] sm:$0xff]
    %v471 = vld [vmem:[#allocation5 + $0xa70] sm:$0xff]
    %v472 = vld [vmem:[#allocation5 + $0xa78] sm:$0xff]
    %v473 = vld [vmem:[#allocation5 + $0xa80] sm:$0xff]
    %v474 = vld [vmem:[#allocation5 + $0xa88] sm:$0xff]
    %v475 = vld [vmem:[#allocation5 + $0xa90] sm:$0xff]
    %v476 = vld [vmem:[#allocation5 + $0xa98] sm:$0xff]
    %v477 = vld [vmem:[#allocation5 + $0xaa0] sm:$0xff]
    %v478 = vld [vmem:[#allocation5 + $0xaa8] sm:$0xff]
    %v479 = vld [vmem:[#allocation5 + $0xab0] sm:$0xff]
    %v480 = vld [vmem:[#allocation5 + $0xab8] sm:$0xff]
    %v481 = vld [vmem:[#allocation5 + $0xac0] sm:$0xff]
    %v482 = vld [vmem:[#allocation5 + $0xac8] sm:$0xff]
    %v483 = vld [vmem:[#allocation5 + $0xad0] sm:$0xff]
    %v484 = vld [vmem:[#allocation5 + $0xad8] sm:$0xff]
    %v485 = vld [vmem:[#allocation5 + $0xae0] sm:$0xff]
    %v486 = vld [vmem:[#allocation5 + $0xae8] sm:$0xff]
    %v487 = vld [vmem:[#allocation5 + $0xaf0] sm:$0xff]
    %v488 = vld [vmem:[#allocation5 + $0xaf8] sm:$0xff]
    %v489 = vld [vmem:[#allocation5 + $0xb00] sm:$0xff]
    %v490 = vld [vmem:[#allocation5 + $0xb08] sm:$0xff]
    %v491 = vld [vmem:[#allocation5 + $0xb10] sm:$0xff]
    %v492 = vld [vmem:[#allocation5 + $0xb18] sm:$0xff]
    %v493 = vld [vmem:[#allocation5 + $0xb20] sm:$0xff]
    %v494 = vld [vmem:[#allocation5 + $0xb28] sm:$0xff]
    %v495 = vld [vmem:[#allocation5 + $0xb30] sm:$0xff]
    %v496 = vld [vmem:[#allocation5 + $0xb38] sm:$0xff]
    %v497 = vld [vmem:[#allocation5 + $0xb40] sm:$0xff]
    %v498 = vld [vmem:[#allocation5 + $0xb48] sm:$0xff]
    %v499 = vld [vmem:[#allocation5 + $0xb50] sm:$0xff]
    %v500 = vld [vmem:[#allocation5 + $0xb58] sm:$0xff]
    %v501 = vld [vmem:[#allocation5 + $0xb60] sm:$0xff]
    %v502 = vld [vmem:[#allocation5 + $0xb68] sm:$0xff]
    %v503 = vld [vmem:[#allocation5 + $0xb70] sm:$0xff]
    %v504 = vld [vmem:[#allocation5 + $0xb78] sm:$0xff]
    %v505 = vld [vmem:[#allocation5 + $0xb80] sm:$0xff]
    %v506 = vld [vmem:[#allocation5 + $0xb88] sm:$0xff]
    %v507 = vld [vmem:[#allocation5 + $0xb90] sm:$0xff]
    %v508 = vld [vmem:[#allocation5 + $0xb98] sm:$0xff]
    %v509 = vld [vmem:[#allocation5 + $0xba0] sm:$0xff]
    %v510 = vld [vmem:[#allocation5 + $0xba8] sm:$0xff]
    %v511 = vld [vmem:[#allocation5 + $0xbb0] sm:$0xff]
    %v512 = vld [vmem:[#allocation5 + $0xbb8] sm:$0xff]
    %v513 = vld [vmem:[#allocation5 + $0xbc0] sm:$0xff]
    %v514 = vld [vmem:[#allocation5 + $0xbc8] sm:$0xff]
    %v515 = vld [vmem:[#allocation5 + $0xbd0] sm:$0xff]
    %v516 = vld [vmem:[#allocation5 + $0xbd8] sm:$0xff]
    %v517 = vld [vmem:[#allocation5 + $0xbe0] sm:$0xff]
    %v518 = vld [vmem:[#allocation5 + $0xbe8] sm:$0xff]
    %v519 = vld [vmem:[#allocation5 + $0xbf0] sm:$0xff]
    %v520 = vld [vmem:[#allocation5 + $0xbf8] sm:$0xff]
    %v521 = vld [vmem:[#allocation5 + $0xc00] sm:$0xff]
    %v522 = vld [vmem:[#allocation5 + $0xc08] sm:$0xff]
    %v523 = vld [vmem:[#allocation5 + $0xc10] sm:$0xff]
    %v524 = vld [vmem:[#allocation5 + $0xc18] sm:$0xff]
    %v525 = vld [vmem:[#allocation5 + $0xc20] sm:$0xff]
    %v526 = vld [vmem:[#allocation5 + $0xc28] sm:$0xff]
    %v527 = vld [vmem:[#allocation5 + $0xc30] sm:$0xff]
    %v528 = vld [vmem:[#allocation5 + $0xc38] sm:$0xff]
    %v529 = vld [vmem:[#allocation5 + $0xc40] sm:$0xff]
    %v530 = vld [vmem:[#allocation5 + $0xc48] sm:$0xff]
    %v531 = vld [vmem:[#allocation5 + $0xc50] sm:$0xff]
    %v532 = vld [vmem:[#allocation5 + $0xc58] sm:$0xff]
    %v533 = vld [vmem:[#allocation5 + $0xc60] sm:$0xff]
    %v534 = vld [vmem:[#allocation5 + $0xc68] sm:$0xff]
    %v535 = vld [vmem:[#allocation5 + $0xc70] sm:$0xff]
    %v536 = vld [vmem:[#allocation5 + $0xc78] sm:$0xff]
    %v537 = vld [vmem:[#allocation5 + $0xc80] sm:$0xff]
    %v538 = vld [vmem:[#allocation5 + $0xc88] sm:$0xff]
    %v539 = vld [vmem:[#allocation5 + $0xc90] sm:$0xff]
    %v540 = vld [vmem:[#allocation5 + $0xc98] sm:$0xff]
    %v541 = vld [vmem:[#allocation5 + $0xca0] sm:$0xff]
    %v542 = vld [vmem:[#allocation5 + $0xca8] sm:$0xff]
    %v543 = vld [vmem:[#allocation5 + $0xcb0] sm:$0xff]
    %v544 = vld [vmem:[#allocation5 + $0xcb8] sm:$0xff]
    %v545 = vld [vmem:[#allocation5 + $0xcc0] sm:$0xff]
    %v546 = vld [vmem:[#allocation5 + $0xcc8] sm:$0xff]
    %v547 = vld [vmem:[#allocation5 + $0xcd0] sm:$0xff]
    %v548 = vld [vmem:[#allocation5 + $0xcd8] sm:$0xff]
    %v549 = vld [vmem:[#allocation5 + $0xce0] sm:$0xff]
    %v550 = vld [vmem:[#allocation5 + $0xce8] sm:$0xff]
    %v551 = vld [vmem:[#allocation5 + $0xcf0] sm:$0xff]
    %v552 = vld [vmem:[#allocation5 + $0xcf8] sm:$0xff]
    %v553 = vld [vmem:[#allocation5 + $0xd00] sm:$0xff]
    %v554 = vld [vmem:[#allocation5 + $0xd08] sm:$0xff]
    %v555 = vld [vmem:[#allocation5 + $0xd10] sm:$0xff]
    %v556 = vld [vmem:[#allocation5 + $0xd18] sm:$0xff]
    %v557 = vld [vmem:[#allocation5 + $0xd20] sm:$0xff]
    %v558 = vld [vmem:[#allocation5 + $0xd28] sm:$0xff]
    %v559 = vld [vmem:[#allocation5 + $0xd30] sm:$0xff]
    %v560 = vld [vmem:[#allocation5 + $0xd38] sm:$0xff]
    %v561 = vld [vmem:[#allocation5 + $0xd40] sm:$0xff]
    %v562 = vld [vmem:[#allocation5 + $0xd48] sm:$0xff]
    %v563 = vld [vmem:[#allocation5 + $0xd50] sm:$0xff]
    %v564 = vld [vmem:[#allocation5 + $0xd58] sm:$0xff]
    %v565 = vld [vmem:[#allocation5 + $0xd60] sm:$0xff]
    %v566 = vld [vmem:[#allocation5 + $0xd68] sm:$0xff]
    %v567 = vld [vmem:[#allocation5 + $0xd70] sm:$0xff]
    %v568 = vld [vmem:[#allocation5 + $0xd78] sm:$0xff]
    %v569 = vld [vmem:[#allocation5 + $0xd80] sm:$0xff]
    %v570 = vld [vmem:[#allocation5 + $0xd88] sm:$0xff]
    %v571 = vld [vmem:[#allocation5 + $0xd90] sm:$0xff]
    %v572 = vld [vmem:[#allocation5 + $0xd98] sm:$0xff]
    %v573 = vld [vmem:[#allocation5 + $0xda0] sm:$0xff]
    %v574 = vld [vmem:[#allocation5 + $0xda8] sm:$0xff]
    %v575 = vld [vmem:[#allocation5 + $0xdb0] sm:$0xff]
    %v576 = vld [vmem:[#allocation5 + $0xdb8] sm:$0xff]
    %v577 = vld [vmem:[#allocation5 + $0xdc0] sm:$0xff]
    %v578 = vld [vmem:[#allocation5 + $0xdc8] sm:$0xff]
    %v579 = vld [vmem:[#allocation5 + $0xdd0] sm:$0xff]
    %v580 = vld [vmem:[#allocation5 + $0xdd8] sm:$0xff]
    %v581 = vld [vmem:[#allocation5 + $0xde0] sm:$0xff]
    %v582 = vld [vmem:[#allocation5 + $0xde8] sm:$0xff]
    %v583 = vld [vmem:[#allocation5 + $0xdf0] sm:$0xff]
    %v584 = vld [vmem:[#allocation5 + $0xdf8] sm:$0xff]
    %v585 = vld [vmem:[#allocation5 + $0xe00] sm:$0xff]
    %v586 = vld [vmem:[#allocation5 + $0xe08] sm:$0xff]
    %v587 = vld [vmem:[#allocation5 + $0xe10] sm:$0xff]
    %v588 = vld [vmem:[#allocation5 + $0xe18] sm:$0xff]
    %v589 = vld [vmem:[#allocation5 + $0xe20] sm:$0xff]
    %v590 = vld [vmem:[#allocation5 + $0xe28] sm:$0xff]
    %v591 = vld [vmem:[#allocation5 + $0xe30] sm:$0xff]
    %v592 = vld [vmem:[#allocation5 + $0xe38] sm:$0xff]
    %v593 = vld [vmem:[#allocation5 + $0xe40] sm:$0xff]
    %v594 = vld [vmem:[#allocation5 + $0xe48] sm:$0xff]
    %v595 = vld [vmem:[#allocation5 + $0xe50] sm:$0xff]
    %v596 = vld [vmem:[#allocation5 + $0xe58] sm:$0xff]
    %v597 = vld [vmem:[#allocation5 + $0xe60] sm:$0xff]
    %v598 = vld [vmem:[#allocation5 + $0xe68] sm:$0xff]
    %v599 = vld [vmem:[#allocation5 + $0xe70] sm:$0xff]
    %v600 = vld [vmem:[#allocation5 + $0xe78] sm:$0xff]
    %v601 = vld [vmem:[#allocation5 + $0xe80] sm:$0xff]
    %v602 = vld [vmem:[#allocation5 + $0xe88] sm:$0xff]
    %v603 = vld [vmem:[#allocation5 + $0xe90] sm:$0xff]
    %v604 = vld [vmem:[#allocation5 + $0xe98] sm:$0xff]
    %v605 = vld [vmem:[#allocation5 + $0xea0] sm:$0xff]
    %v606 = vld [vmem:[#allocation5 + $0xea8] sm:$0xff]
    %v607 = vld [vmem:[#allocation5 + $0xeb0] sm:$0xff]
    %v608 = vld [vmem:[#allocation5 + $0xeb8] sm:$0xff]
    %v609 = vld [vmem:[#allocation5 + $0xec0] sm:$0xff]
    %v610 = vld [vmem:[#allocation5 + $0xec8] sm:$0xff]
    %v611 = vld [vmem:[#allocation5 + $0xed0] sm:$0xff]
    %v612 = vld [vmem:[#allocation5 + $0xed8] sm:$0xff]
    %v613 = vld [vmem:[#allocation5 + $0xee0] sm:$0xff]
    %v614 = vld [vmem:[#allocation5 + $0xee8] sm:$0xff]
    %v615 = vld [vmem:[#allocation5 + $0xef0] sm:$0xff]
    %v616 = vld [vmem:[#allocation5 + $0xef8] sm:$0xff]
    %v617 = vld [vmem:[#allocation5 + $0xf00] sm:$0xff]
    %v618 = vld [vmem:[#allocation5 + $0xf08] sm:$0xff]
    %v619 = vld [vmem:[#allocation5 + $0xf10] sm:$0xff]
    %v620 = vld [vmem:[#allocation5 + $0xf18] sm:$0xff]
    %v621 = vld [vmem:[#allocation5 + $0xf20] sm:$0xff]
    %v622 = vld [vmem:[#allocation5 + $0xf28] sm:$0xff]
    %v623 = vld [vmem:[#allocation5 + $0xf30] sm:$0xff]
    %v624 = vld [vmem:[#allocation5 + $0xf38] sm:$0xff]
    %v625 = vld [vmem:[#allocation5 + $0xf40] sm:$0xff]
    %v626 = vld [vmem:[#allocation5 + $0xf48] sm:$0xff]
    %v627 = vld [vmem:[#allocation5 + $0xf50] sm:$0xff]
    %v628 = vld [vmem:[#allocation5 + $0xf58] sm:$0xff]
    %v629 = vld [vmem:[#allocation5 + $0xf60] sm:$0xff]
    %v630 = vld [vmem:[#allocation5 + $0xf68] sm:$0xff]
    %v631 = vld [vmem:[#allocation5 + $0xf70] sm:$0xff]
    %v632 = vld [vmem:[#allocation5 + $0xf78] sm:$0xff]
    %v633 = vld [vmem:[#allocation5 + $0xf80] sm:$0xff]
    %v634 = vld [vmem:[#allocation5 + $0xf88] sm:$0xff]
    %v635 = vld [vmem:[#allocation5 + $0xf90] sm:$0xff]
    %v636 = vld [vmem:[#allocation5 + $0xf98] sm:$0xff]
    %v637 = vld [vmem:[#allocation5 + $0xfa0] sm:$0xff]
    %v638 = vld [vmem:[#allocation5 + $0xfa8] sm:$0xff]
    %v639 = vld [vmem:[#allocation5 + $0xfb0] sm:$0xff]
    %v640 = vld [vmem:[#allocation5 + $0xfb8] sm:$0xff]
    %v641 = vld [vmem:[#allocation5 + $0xfc0] sm:$0xff]
    %v642 = vld [vmem:[#allocation5 + $0xfc8] sm:$0xff]
    %v643 = vld [vmem:[#allocation5 + $0xfd0] sm:$0xff]
    %v644 = vld [vmem:[#allocation5 + $0xfd8] sm:$0xff]
    %v645 = vld [vmem:[#allocation5 + $0xfe0] sm:$0xff]
    %v646 = vld [vmem:[#allocation5 + $0xfe8] sm:$0xff]
    %v647 = vld [vmem:[#allocation5 + $0xff0] sm:$0xff]
    %v648 = vld [vmem:[#allocation5 + $0xff8] sm:$0xff]
    %v649 = vld [vmem:[#allocation7] sm:$0xff]
    %v651 = vlaneseq
    %v652 = vshrl.u32 %v651, 7
    %v653 = vsub.s32 0, %v652
    %v654 = vrot.slane %v649, %v653
    %v655 = vlaneseq
    %v656 = vshrl.u32 %v655, 7
    %v657 = vsub.s32 1, %v656
    %v658 = vrot.slane %v649, %v657
    %v659 = vlaneseq
    %v660 = vshrl.u32 %v659, 7
    %v661 = vsub.s32 2, %v660
    %v662 = vrot.slane %v649, %v661
    %v663 = vlaneseq
    %v664 = vshrl.u32 %v663, 7
    %v665 = vsub.s32 3, %v664
    %v666 = vrot.slane %v649, %v665
    %v667 = vlaneseq
    %v668 = vshrl.u32 %v667, 7
    %v669 = vsub.s32 4, %v668
    %v670 = vrot.slane %v649, %v669
    %v671 = vlaneseq
    %v672 = vshrl.u32 %v671, 7
    %v673 = vsub.s32 5, %v672
    %v674 = vrot.slane %v649, %v673
    %v675 = vlaneseq
    %v676 = vshrl.u32 %v675, 7
    %v677 = vsub.s32 6, %v676
    %v678 = vrot.slane %v649, %v677
    %v679 = vlaneseq
    %v680 = vshrl.u32 %v679, 7
    %v681 = vsub.s32 7, %v680
    %v682 = vrot.slane %v649, %v681
    %v695 = vunpack.c.l.b16 %v133
    %v696 = vunpack.c.h.b16 %v133
    %v697 = vunpack.c.l.b16 %v134
    %v698 = vunpack.c.h.b16 %v134
    %v699 = vunpack.c.l.b16 %v135
    %v700 = vunpack.c.h.b16 %v135
    %v701 = vunpack.c.l.b16 %v136
    %v702 = vunpack.c.h.b16 %v136
    %v703 = vpack.c.b16 %v695, %v695
    %v704 = vpack.c.b16 %v696, %v696
    %v705 = vpack.c.b16 %v697, %v697
    %v706 = vpack.c.b16 %v698, %v698
    %v707 = vpack.c.b16 %v699, %v699
    %v708 = vpack.c.b16 %v700, %v700
    %v709 = vpack.c.b16 %v701, %v701
    %v710 = vpack.c.b16 %v702, %v702
    %v1231 = vunpack.c.l.b16 %v137
    %v1232 = vunpack.c.h.b16 %v137
    %v1233 = vunpack.c.l.b16 %v138
    %v1234 = vunpack.c.h.b16 %v138
    %v1235 = vunpack.c.l.b16 %v139
    %v1236 = vunpack.c.h.b16 %v139
    %v1237 = vunpack.c.l.b16 %v140
    %v1238 = vunpack.c.h.b16 %v140
    %v1239 = vunpack.c.l.b16 %v141
    %v1240 = vunpack.c.h.b16 %v141
    %v1241 = vunpack.c.l.b16 %v142
    %v1242 = vunpack.c.h.b16 %v142
    %v1243 = vunpack.c.l.b16 %v143
    %v1244 = vunpack.c.h.b16 %v143
    %v1245 = vunpack.c.l.b16 %v144
    %v1246 = vunpack.c.h.b16 %v144
    %v1247 = vunpack.c.l.b16 %v145
    %v1248 = vunpack.c.h.b16 %v145
    %v1249 = vunpack.c.l.b16 %v146
    %v1250 = vunpack.c.h.b16 %v146
    %v1251 = vunpack.c.l.b16 %v147
    %v1252 = vunpack.c.h.b16 %v147
    %v1253 = vunpack.c.l.b16 %v148
    %v1254 = vunpack.c.h.b16 %v148
    %v1255 = vunpack.c.l.b16 %v149
    %v1256 = vunpack.c.h.b16 %v149
    %v1257 = vunpack.c.l.b16 %v150
    %v1258 = vunpack.c.h.b16 %v150
    %v1259 = vunpack.c.l.b16 %v151
    %v1260 = vunpack.c.h.b16 %v151
    %v1261 = vunpack.c.l.b16 %v152
    %v1262 = vunpack.c.h.b16 %v152
    %v1263 = vunpack.c.l.b16 %v153
    %v1264 = vunpack.c.h.b16 %v153
    %v1265 = vunpack.c.l.b16 %v154
    %v1266 = vunpack.c.h.b16 %v154
    %v1267 = vunpack.c.l.b16 %v155
    %v1268 = vunpack.c.h.b16 %v155
    %v1269 = vunpack.c.l.b16 %v156
    %v1270 = vunpack.c.h.b16 %v156
    %v1271 = vunpack.c.l.b16 %v157
    %v1272 = vunpack.c.h.b16 %v157
    %v1273 = vunpack.c.l.b16 %v158
    %v1274 = vunpack.c.h.b16 %v158
    %v1275 = vunpack.c.l.b16 %v159
    %v1276 = vunpack.c.h.b16 %v159
    %v1277 = vunpack.c.l.b16 %v160
    %v1278 = vunpack.c.h.b16 %v160
    %v1279 = vunpack.c.l.b16 %v161
    %v1280 = vunpack.c.h.b16 %v161
    %v1281 = vunpack.c.l.b16 %v162
    %v1282 = vunpack.c.h.b16 %v162
    %v1283 = vunpack.c.l.b16 %v163
    %v1284 = vunpack.c.h.b16 %v163
    %v1285 = vunpack.c.l.b16 %v164
    %v1286 = vunpack.c.h.b16 %v164
    %v1287 = vunpack.c.l.b16 %v165
    %v1288 = vunpack.c.h.b16 %v165
    %v1289 = vunpack.c.l.b16 %v166
    %v1290 = vunpack.c.h.b16 %v166
    %v1291 = vunpack.c.l.b16 %v167
    %v1292 = vunpack.c.h.b16 %v167
    %v1293 = vunpack.c.l.b16 %v168
    %v1294 = vunpack.c.h.b16 %v168
    %v1295 = vunpack.c.l.b16 %v169
    %v1296 = vunpack.c.h.b16 %v169
    %v1297 = vunpack.c.l.b16 %v170
    %v1298 = vunpack.c.h.b16 %v170
    %v1299 = vunpack.c.l.b16 %v171
    %v1300 = vunpack.c.h.b16 %v171
    %v1301 = vunpack.c.l.b16 %v172
    %v1302 = vunpack.c.h.b16 %v172
    %v1303 = vunpack.c.l.b16 %v173
    %v1304 = vunpack.c.h.b16 %v173
    %v1305 = vunpack.c.l.b16 %v174
    %v1306 = vunpack.c.h.b16 %v174
    %v1307 = vunpack.c.l.b16 %v175
    %v1308 = vunpack.c.h.b16 %v175
    %v1309 = vunpack.c.l.b16 %v176
    %v1310 = vunpack.c.h.b16 %v176
    %v1311 = vunpack.c.l.b16 %v177
    %v1312 = vunpack.c.h.b16 %v177
    %v1313 = vunpack.c.l.b16 %v178
    %v1314 = vunpack.c.h.b16 %v178
    %v1315 = vunpack.c.l.b16 %v179
    %v1316 = vunpack.c.h.b16 %v179
    %v1317 = vunpack.c.l.b16 %v180
    %v1318 = vunpack.c.h.b16 %v180
    %v1319 = vunpack.c.l.b16 %v181
    %v1320 = vunpack.c.h.b16 %v181
    %v1321 = vunpack.c.l.b16 %v182
    %v1322 = vunpack.c.h.b16 %v182
    %v1323 = vunpack.c.l.b16 %v183
    %v1324 = vunpack.c.h.b16 %v183
    %v1325 = vunpack.c.l.b16 %v184
    %v1326 = vunpack.c.h.b16 %v184
    %v1327 = vunpack.c.l.b16 %v185
    %v1328 = vunpack.c.h.b16 %v185
    %v1329 = vunpack.c.l.b16 %v186
    %v1330 = vunpack.c.h.b16 %v186
    %v1331 = vunpack.c.l.b16 %v187
    %v1332 = vunpack.c.h.b16 %v187
    %v1333 = vunpack.c.l.b16 %v188
    %v1334 = vunpack.c.h.b16 %v188
    %v1335 = vunpack.c.l.b16 %v189
    %v1336 = vunpack.c.h.b16 %v189
    %v1337 = vunpack.c.l.b16 %v190
    %v1338 = vunpack.c.h.b16 %v190
    %v1339 = vunpack.c.l.b16 %v191
    %v1340 = vunpack.c.h.b16 %v191
    %v1341 = vunpack.c.l.b16 %v192
    %v1342 = vunpack.c.h.b16 %v192
    %v1343 = vunpack.c.l.b16 %v193
    %v1344 = vunpack.c.h.b16 %v193
    %v1345 = vunpack.c.l.b16 %v194
    %v1346 = vunpack.c.h.b16 %v194
    %v1347 = vunpack.c.l.b16 %v195
    %v1348 = vunpack.c.h.b16 %v195
    %v1349 = vunpack.c.l.b16 %v196
    %v1350 = vunpack.c.h.b16 %v196
    %v1351 = vunpack.c.l.b16 %v197
    %v1352 = vunpack.c.h.b16 %v197
    %v1353 = vunpack.c.l.b16 %v198
    %v1354 = vunpack.c.h.b16 %v198
    %v1355 = vunpack.c.l.b16 %v199
    %v1356 = vunpack.c.h.b16 %v199
    %v1357 = vunpack.c.l.b16 %v200
    %v1358 = vunpack.c.h.b16 %v200
    %v1359 = vunpack.c.l.b16 %v201
    %v1360 = vunpack.c.h.b16 %v201
    %v1361 = vunpack.c.l.b16 %v202
    %v1362 = vunpack.c.h.b16 %v202
    %v1363 = vunpack.c.l.b16 %v203
    %v1364 = vunpack.c.h.b16 %v203
    %v1365 = vunpack.c.l.b16 %v204
    %v1366 = vunpack.c.h.b16 %v204
    %v1367 = vunpack.c.l.b16 %v205
    %v1368 = vunpack.c.h.b16 %v205
    %v1369 = vunpack.c.l.b16 %v206
    %v1370 = vunpack.c.h.b16 %v206
    %v1371 = vunpack.c.l.b16 %v207
    %v1372 = vunpack.c.h.b16 %v207
    %v1373 = vunpack.c.l.b16 %v208
    %v1374 = vunpack.c.h.b16 %v208
    %v1375 = vunpack.c.l.b16 %v209
    %v1376 = vunpack.c.h.b16 %v209
    %v1377 = vunpack.c.l.b16 %v210
    %v1378 = vunpack.c.h.b16 %v210
    %v1379 = vunpack.c.l.b16 %v211
    %v1380 = vunpack.c.h.b16 %v211
    %v1381 = vunpack.c.l.b16 %v212
    %v1382 = vunpack.c.h.b16 %v212
    %v1383 = vunpack.c.l.b16 %v213
    %v1384 = vunpack.c.h.b16 %v213
    %v1385 = vunpack.c.l.b16 %v214
    %v1386 = vunpack.c.h.b16 %v214
    %v1387 = vunpack.c.l.b16 %v215
    %v1388 = vunpack.c.h.b16 %v215
    %v1389 = vunpack.c.l.b16 %v216
    %v1390 = vunpack.c.h.b16 %v216
    %v1391 = vunpack.c.l.b16 %v217
    %v1392 = vunpack.c.h.b16 %v217
    %v1393 = vunpack.c.l.b16 %v218
    %v1394 = vunpack.c.h.b16 %v218
    %v1395 = vunpack.c.l.b16 %v219
    %v1396 = vunpack.c.h.b16 %v219
    %v1397 = vunpack.c.l.b16 %v220
    %v1398 = vunpack.c.h.b16 %v220
    %v1399 = vunpack.c.l.b16 %v221
    %v1400 = vunpack.c.h.b16 %v221
    %v1401 = vunpack.c.l.b16 %v222
    %v1402 = vunpack.c.h.b16 %v222
    %v1403 = vunpack.c.l.b16 %v223
    %v1404 = vunpack.c.h.b16 %v223
    %v1405 = vunpack.c.l.b16 %v224
    %v1406 = vunpack.c.h.b16 %v224
    %v1407 = vunpack.c.l.b16 %v225
    %v1408 = vunpack.c.h.b16 %v225
    %v1409 = vunpack.c.l.b16 %v226
    %v1410 = vunpack.c.h.b16 %v226
    %v1411 = vunpack.c.l.b16 %v227
    %v1412 = vunpack.c.h.b16 %v227
    %v1413 = vunpack.c.l.b16 %v228
    %v1414 = vunpack.c.h.b16 %v228
    %v1415 = vunpack.c.l.b16 %v229
    %v1416 = vunpack.c.h.b16 %v229
    %v1417 = vunpack.c.l.b16 %v230
    %v1418 = vunpack.c.h.b16 %v230
    %v1419 = vunpack.c.l.b16 %v231
    %v1420 = vunpack.c.h.b16 %v231
    %v1421 = vunpack.c.l.b16 %v232
    %v1422 = vunpack.c.h.b16 %v232
    %v1423 = vunpack.c.l.b16 %v233
    %v1424 = vunpack.c.h.b16 %v233
    %v1425 = vunpack.c.l.b16 %v234
    %v1426 = vunpack.c.h.b16 %v234
    %v1427 = vunpack.c.l.b16 %v235
    %v1428 = vunpack.c.h.b16 %v235
    %v1429 = vunpack.c.l.b16 %v236
    %v1430 = vunpack.c.h.b16 %v236
    %v1431 = vunpack.c.l.b16 %v237
    %v1432 = vunpack.c.h.b16 %v237
    %v1433 = vunpack.c.l.b16 %v238
    %v1434 = vunpack.c.h.b16 %v238
    %v1435 = vunpack.c.l.b16 %v239
    %v1436 = vunpack.c.h.b16 %v239
    %v1437 = vunpack.c.l.b16 %v240
    %v1438 = vunpack.c.h.b16 %v240
    %v1439 = vunpack.c.l.b16 %v241
    %v1440 = vunpack.c.h.b16 %v241
    %v1441 = vunpack.c.l.b16 %v242
    %v1442 = vunpack.c.h.b16 %v242
    %v1443 = vunpack.c.l.b16 %v243
    %v1444 = vunpack.c.h.b16 %v243
    %v1445 = vunpack.c.l.b16 %v244
    %v1446 = vunpack.c.h.b16 %v244
    %v1447 = vunpack.c.l.b16 %v245
    %v1448 = vunpack.c.h.b16 %v245
    %v1449 = vunpack.c.l.b16 %v246
    %v1450 = vunpack.c.h.b16 %v246
    %v1451 = vunpack.c.l.b16 %v247
    %v1452 = vunpack.c.h.b16 %v247
    %v1453 = vunpack.c.l.b16 %v248
    %v1454 = vunpack.c.h.b16 %v248
    %v1455 = vunpack.c.l.b16 %v249
    %v1456 = vunpack.c.h.b16 %v249
    %v1457 = vunpack.c.l.b16 %v250
    %v1458 = vunpack.c.h.b16 %v250
    %v1459 = vunpack.c.l.b16 %v251
    %v1460 = vunpack.c.h.b16 %v251
    %v1461 = vunpack.c.l.b16 %v252
    %v1462 = vunpack.c.h.b16 %v252
    %v1463 = vunpack.c.l.b16 %v253
    %v1464 = vunpack.c.h.b16 %v253
    %v1465 = vunpack.c.l.b16 %v254
    %v1466 = vunpack.c.h.b16 %v254
    %v1467 = vunpack.c.l.b16 %v255
    %v1468 = vunpack.c.h.b16 %v255
    %v1469 = vunpack.c.l.b16 %v256
    %v1470 = vunpack.c.h.b16 %v256
    %v1471 = vunpack.c.l.b16 %v257
    %v1472 = vunpack.c.h.b16 %v257
    %v1473 = vunpack.c.l.b16 %v258
    %v1474 = vunpack.c.h.b16 %v258
    %v1475 = vunpack.c.l.b16 %v259
    %v1476 = vunpack.c.h.b16 %v259
    %v1477 = vunpack.c.l.b16 %v260
    %v1478 = vunpack.c.h.b16 %v260
    %v1479 = vunpack.c.l.b16 %v261
    %v1480 = vunpack.c.h.b16 %v261
    %v1481 = vunpack.c.l.b16 %v262
    %v1482 = vunpack.c.h.b16 %v262
    %v1483 = vunpack.c.l.b16 %v263
    %v1484 = vunpack.c.h.b16 %v263
    %v1485 = vunpack.c.l.b16 %v264
    %v1486 = vunpack.c.h.b16 %v264
    %v1487 = vunpack.c.l.b16 %v265
    %v1488 = vunpack.c.h.b16 %v265
    %v1489 = vunpack.c.l.b16 %v266
    %v1490 = vunpack.c.h.b16 %v266
    %v1491 = vunpack.c.l.b16 %v267
    %v1492 = vunpack.c.h.b16 %v267
    %v1493 = vunpack.c.l.b16 %v268
    %v1494 = vunpack.c.h.b16 %v268
    %v1495 = vunpack.c.l.b16 %v269
    %v1496 = vunpack.c.h.b16 %v269
    %v1497 = vunpack.c.l.b16 %v270
    %v1498 = vunpack.c.h.b16 %v270
    %v1499 = vunpack.c.l.b16 %v271
    %v1500 = vunpack.c.h.b16 %v271
    %v1501 = vunpack.c.l.b16 %v272
    %v1502 = vunpack.c.h.b16 %v272
    %v1503 = vunpack.c.l.b16 %v273
    %v1504 = vunpack.c.h.b16 %v273
    %v1505 = vunpack.c.l.b16 %v274
    %v1506 = vunpack.c.h.b16 %v274
    %v1507 = vunpack.c.l.b16 %v275
    %v1508 = vunpack.c.h.b16 %v275
    %v1509 = vunpack.c.l.b16 %v276
    %v1510 = vunpack.c.h.b16 %v276
    %v1511 = vunpack.c.l.b16 %v277
    %v1512 = vunpack.c.h.b16 %v277
    %v1513 = vunpack.c.l.b16 %v278
    %v1514 = vunpack.c.h.b16 %v278
    %v1515 = vunpack.c.l.b16 %v279
    %v1516 = vunpack.c.h.b16 %v279
    %v1517 = vunpack.c.l.b16 %v280
    %v1518 = vunpack.c.h.b16 %v280
    %v1519 = vunpack.c.l.b16 %v281
    %v1520 = vunpack.c.h.b16 %v281
    %v1521 = vunpack.c.l.b16 %v282
    %v1522 = vunpack.c.h.b16 %v282
    %v1523 = vunpack.c.l.b16 %v283
    %v1524 = vunpack.c.h.b16 %v283
    %v1525 = vunpack.c.l.b16 %v284
    %v1526 = vunpack.c.h.b16 %v284
    %v1527 = vunpack.c.l.b16 %v285
    %v1528 = vunpack.c.h.b16 %v285
    %v1529 = vunpack.c.l.b16 %v286
    %v1530 = vunpack.c.h.b16 %v286
    %v1531 = vunpack.c.l.b16 %v287
    %v1532 = vunpack.c.h.b16 %v287
    %v1533 = vunpack.c.l.b16 %v288
    %v1534 = vunpack.c.h.b16 %v288
    %v1535 = vunpack.c.l.b16 %v289
    %v1536 = vunpack.c.h.b16 %v289
    %v1537 = vunpack.c.l.b16 %v290
    %v1538 = vunpack.c.h.b16 %v290
    %v1539 = vunpack.c.l.b16 %v291
    %v1540 = vunpack.c.h.b16 %v291
    %v1541 = vunpack.c.l.b16 %v292
    %v1542 = vunpack.c.h.b16 %v292
    %v1543 = vunpack.c.l.b16 %v293
    %v1544 = vunpack.c.h.b16 %v293
    %v1545 = vunpack.c.l.b16 %v294
    %v1546 = vunpack.c.h.b16 %v294
    %v1547 = vunpack.c.l.b16 %v295
    %v1548 = vunpack.c.h.b16 %v295
    %v1549 = vunpack.c.l.b16 %v296
    %v1550 = vunpack.c.h.b16 %v296
    %v1551 = vunpack.c.l.b16 %v297
    %v1552 = vunpack.c.h.b16 %v297
    %v1553 = vunpack.c.l.b16 %v298
    %v1554 = vunpack.c.h.b16 %v298
    %v1555 = vunpack.c.l.b16 %v299
    %v1556 = vunpack.c.h.b16 %v299
    %v1557 = vunpack.c.l.b16 %v300
    %v1558 = vunpack.c.h.b16 %v300
    %v1559 = vunpack.c.l.b16 %v301
    %v1560 = vunpack.c.h.b16 %v301
    %v1561 = vunpack.c.l.b16 %v302
    %v1562 = vunpack.c.h.b16 %v302
    %v1563 = vunpack.c.l.b16 %v303
    %v1564 = vunpack.c.h.b16 %v303
    %v1565 = vunpack.c.l.b16 %v304
    %v1566 = vunpack.c.h.b16 %v304
    %v1567 = vunpack.c.l.b16 %v305
    %v1568 = vunpack.c.h.b16 %v305
    %v1569 = vunpack.c.l.b16 %v306
    %v1570 = vunpack.c.h.b16 %v306
    %v1571 = vunpack.c.l.b16 %v307
    %v1572 = vunpack.c.h.b16 %v307
    %v1573 = vunpack.c.l.b16 %v308
    %v1574 = vunpack.c.h.b16 %v308
    %v1575 = vunpack.c.l.b16 %v309
    %v1576 = vunpack.c.h.b16 %v309
    %v1577 = vunpack.c.l.b16 %v310
    %v1578 = vunpack.c.h.b16 %v310
    %v1579 = vunpack.c.l.b16 %v311
    %v1580 = vunpack.c.h.b16 %v311
    %v1581 = vunpack.c.l.b16 %v312
    %v1582 = vunpack.c.h.b16 %v312
    %v1583 = vunpack.c.l.b16 %v313
    %v1584 = vunpack.c.h.b16 %v313
    %v1585 = vunpack.c.l.b16 %v314
    %v1586 = vunpack.c.h.b16 %v314
    %v1587 = vunpack.c.l.b16 %v315
    %v1588 = vunpack.c.h.b16 %v315
    %v1589 = vunpack.c.l.b16 %v316
    %v1590 = vunpack.c.h.b16 %v316
    %v1591 = vunpack.c.l.b16 %v317
    %v1592 = vunpack.c.h.b16 %v317
    %v1593 = vunpack.c.l.b16 %v318
    %v1594 = vunpack.c.h.b16 %v318
    %v1595 = vunpack.c.l.b16 %v319
    %v1596 = vunpack.c.h.b16 %v319
    %v1597 = vunpack.c.l.b16 %v320
    %v1598 = vunpack.c.h.b16 %v320
    %v1599 = vunpack.c.l.b16 %v321
    %v1600 = vunpack.c.h.b16 %v321
    %v1601 = vunpack.c.l.b16 %v322
    %v1602 = vunpack.c.h.b16 %v322
    %v1603 = vunpack.c.l.b16 %v323
    %v1604 = vunpack.c.h.b16 %v323
    %v1605 = vunpack.c.l.b16 %v324
    %v1606 = vunpack.c.h.b16 %v324
    %v1607 = vunpack.c.l.b16 %v325
    %v1608 = vunpack.c.h.b16 %v325
    %v1609 = vunpack.c.l.b16 %v326
    %v1610 = vunpack.c.h.b16 %v326
    %v1611 = vunpack.c.l.b16 %v327
    %v1612 = vunpack.c.h.b16 %v327
    %v1613 = vunpack.c.l.b16 %v328
    %v1614 = vunpack.c.h.b16 %v328
    %v1615 = vunpack.c.l.b16 %v329
    %v1616 = vunpack.c.h.b16 %v329
    %v1617 = vunpack.c.l.b16 %v330
    %v1618 = vunpack.c.h.b16 %v330
    %v1619 = vunpack.c.l.b16 %v331
    %v1620 = vunpack.c.h.b16 %v331
    %v1621 = vunpack.c.l.b16 %v332
    %v1622 = vunpack.c.h.b16 %v332
    %v1623 = vunpack.c.l.b16 %v333
    %v1624 = vunpack.c.h.b16 %v333
    %v1625 = vunpack.c.l.b16 %v334
    %v1626 = vunpack.c.h.b16 %v334
    %v1627 = vunpack.c.l.b16 %v335
    %v1628 = vunpack.c.h.b16 %v335
    %v1629 = vunpack.c.l.b16 %v336
    %v1630 = vunpack.c.h.b16 %v336
    %v1631 = vunpack.c.l.b16 %v337
    %v1632 = vunpack.c.h.b16 %v337
    %v1633 = vunpack.c.l.b16 %v338
    %v1634 = vunpack.c.h.b16 %v338
    %v1635 = vunpack.c.l.b16 %v339
    %v1636 = vunpack.c.h.b16 %v339
    %v1637 = vunpack.c.l.b16 %v340
    %v1638 = vunpack.c.h.b16 %v340
    %v1639 = vunpack.c.l.b16 %v341
    %v1640 = vunpack.c.h.b16 %v341
    %v1641 = vunpack.c.l.b16 %v342
    %v1642 = vunpack.c.h.b16 %v342
    %v1643 = vunpack.c.l.b16 %v343
    %v1644 = vunpack.c.h.b16 %v343
    %v1645 = vunpack.c.l.b16 %v344
    %v1646 = vunpack.c.h.b16 %v344
    %v1647 = vunpack.c.l.b16 %v345
    %v1648 = vunpack.c.h.b16 %v345
    %v1649 = vunpack.c.l.b16 %v346
    %v1650 = vunpack.c.h.b16 %v346
    %v1651 = vunpack.c.l.b16 %v347
    %v1652 = vunpack.c.h.b16 %v347
    %v1653 = vunpack.c.l.b16 %v348
    %v1654 = vunpack.c.h.b16 %v348
    %v1655 = vunpack.c.l.b16 %v349
    %v1656 = vunpack.c.h.b16 %v349
    %v1657 = vunpack.c.l.b16 %v350
    %v1658 = vunpack.c.h.b16 %v350
    %v1659 = vunpack.c.l.b16 %v351
    %v1660 = vunpack.c.h.b16 %v351
    %v1661 = vunpack.c.l.b16 %v352
    %v1662 = vunpack.c.h.b16 %v352
    %v1663 = vunpack.c.l.b16 %v353
    %v1664 = vunpack.c.h.b16 %v353
    %v1665 = vunpack.c.l.b16 %v354
    %v1666 = vunpack.c.h.b16 %v354
    %v1667 = vunpack.c.l.b16 %v355
    %v1668 = vunpack.c.h.b16 %v355
    %v1669 = vunpack.c.l.b16 %v356
    %v1670 = vunpack.c.h.b16 %v356
    %v1671 = vunpack.c.l.b16 %v357
    %v1672 = vunpack.c.h.b16 %v357
    %v1673 = vunpack.c.l.b16 %v358
    %v1674 = vunpack.c.h.b16 %v358
    %v1675 = vunpack.c.l.b16 %v359
    %v1676 = vunpack.c.h.b16 %v359
    %v1677 = vunpack.c.l.b16 %v360
    %v1678 = vunpack.c.h.b16 %v360
    %v1679 = vunpack.c.l.b16 %v361
    %v1680 = vunpack.c.h.b16 %v361
    %v1681 = vunpack.c.l.b16 %v362
    %v1682 = vunpack.c.h.b16 %v362
    %v1683 = vunpack.c.l.b16 %v363
    %v1684 = vunpack.c.h.b16 %v363
    %v1685 = vunpack.c.l.b16 %v364
    %v1686 = vunpack.c.h.b16 %v364
    %v1687 = vunpack.c.l.b16 %v365
    %v1688 = vunpack.c.h.b16 %v365
    %v1689 = vunpack.c.l.b16 %v366
    %v1690 = vunpack.c.h.b16 %v366
    %v1691 = vunpack.c.l.b16 %v367
    %v1692 = vunpack.c.h.b16 %v367
    %v1693 = vunpack.c.l.b16 %v368
    %v1694 = vunpack.c.h.b16 %v368
    %v1695 = vunpack.c.l.b16 %v369
    %v1696 = vunpack.c.h.b16 %v369
    %v1697 = vunpack.c.l.b16 %v370
    %v1698 = vunpack.c.h.b16 %v370
    %v1699 = vunpack.c.l.b16 %v371
    %v1700 = vunpack.c.h.b16 %v371
    %v1701 = vunpack.c.l.b16 %v372
    %v1702 = vunpack.c.h.b16 %v372
    %v1703 = vunpack.c.l.b16 %v373
    %v1704 = vunpack.c.h.b16 %v373
    %v1705 = vunpack.c.l.b16 %v374
    %v1706 = vunpack.c.h.b16 %v374
    %v1707 = vunpack.c.l.b16 %v375
    %v1708 = vunpack.c.h.b16 %v375
    %v1709 = vunpack.c.l.b16 %v376
    %v1710 = vunpack.c.h.b16 %v376
    %v1711 = vunpack.c.l.b16 %v377
    %v1712 = vunpack.c.h.b16 %v377
    %v1713 = vunpack.c.l.b16 %v378
    %v1714 = vunpack.c.h.b16 %v378
    %v1715 = vunpack.c.l.b16 %v379
    %v1716 = vunpack.c.h.b16 %v379
    %v1717 = vunpack.c.l.b16 %v380
    %v1718 = vunpack.c.h.b16 %v380
    %v1719 = vunpack.c.l.b16 %v381
    %v1720 = vunpack.c.h.b16 %v381
    %v1721 = vunpack.c.l.b16 %v382
    %v1722 = vunpack.c.h.b16 %v382
    %v1723 = vunpack.c.l.b16 %v383
    %v1724 = vunpack.c.h.b16 %v383
    %v1725 = vunpack.c.l.b16 %v384
    %v1726 = vunpack.c.h.b16 %v384
    %v1727 = vunpack.c.l.b16 %v385
    %v1728 = vunpack.c.h.b16 %v385
    %v1729 = vunpack.c.l.b16 %v386
    %v1730 = vunpack.c.h.b16 %v386
    %v1731 = vunpack.c.l.b16 %v387
    %v1732 = vunpack.c.h.b16 %v387
    %v1733 = vunpack.c.l.b16 %v388
    %v1734 = vunpack.c.h.b16 %v388
    %v1735 = vunpack.c.l.b16 %v389
    %v1736 = vunpack.c.h.b16 %v389
    %v1737 = vunpack.c.l.b16 %v390
    %v1738 = vunpack.c.h.b16 %v390
    %v1739 = vunpack.c.l.b16 %v391
    %v1740 = vunpack.c.h.b16 %v391
    %v1741 = vunpack.c.l.b16 %v392
    %v1742 = vunpack.c.h.b16 %v392
    %v1743 = vunpack.c.l.b16 %v393
    %v1744 = vunpack.c.h.b16 %v393
    %v1745 = vunpack.c.l.b16 %v394
    %v1746 = vunpack.c.h.b16 %v394
    %v1747 = vunpack.c.l.b16 %v395
    %v1748 = vunpack.c.h.b16 %v395
    %v1749 = vunpack.c.l.b16 %v396
    %v1750 = vunpack.c.h.b16 %v396
    %v1751 = vunpack.c.l.b16 %v397
    %v1752 = vunpack.c.h.b16 %v397
    %v1753 = vunpack.c.l.b16 %v398
    %v1754 = vunpack.c.h.b16 %v398
    %v1755 = vunpack.c.l.b16 %v399
    %v1756 = vunpack.c.h.b16 %v399
    %v1757 = vunpack.c.l.b16 %v400
    %v1758 = vunpack.c.h.b16 %v400
    %v1759 = vunpack.c.l.b16 %v401
    %v1760 = vunpack.c.h.b16 %v401
    %v1761 = vunpack.c.l.b16 %v402
    %v1762 = vunpack.c.h.b16 %v402
    %v1763 = vunpack.c.l.b16 %v403
    %v1764 = vunpack.c.h.b16 %v403
    %v1765 = vunpack.c.l.b16 %v404
    %v1766 = vunpack.c.h.b16 %v404
    %v1767 = vunpack.c.l.b16 %v405
    %v1768 = vunpack.c.h.b16 %v405
    %v1769 = vunpack.c.l.b16 %v406
    %v1770 = vunpack.c.h.b16 %v406
    %v1771 = vunpack.c.l.b16 %v407
    %v1772 = vunpack.c.h.b16 %v407
    %v1773 = vunpack.c.l.b16 %v408
    %v1774 = vunpack.c.h.b16 %v408
    %v1775 = vunpack.c.l.b16 %v409
    %v1776 = vunpack.c.h.b16 %v409
    %v1777 = vunpack.c.l.b16 %v410
    %v1778 = vunpack.c.h.b16 %v410
    %v1779 = vunpack.c.l.b16 %v411
    %v1780 = vunpack.c.h.b16 %v411
    %v1781 = vunpack.c.l.b16 %v412
    %v1782 = vunpack.c.h.b16 %v412
    %v1783 = vunpack.c.l.b16 %v413
    %v1784 = vunpack.c.h.b16 %v413
    %v1785 = vunpack.c.l.b16 %v414
    %v1786 = vunpack.c.h.b16 %v414
    %v1787 = vunpack.c.l.b16 %v415
    %v1788 = vunpack.c.h.b16 %v415
    %v1789 = vunpack.c.l.b16 %v416
    %v1790 = vunpack.c.h.b16 %v416
    %v1791 = vunpack.c.l.b16 %v417
    %v1792 = vunpack.c.h.b16 %v417
    %v1793 = vunpack.c.l.b16 %v418
    %v1794 = vunpack.c.h.b16 %v418
    %v1795 = vunpack.c.l.b16 %v419
    %v1796 = vunpack.c.h.b16 %v419
    %v1797 = vunpack.c.l.b16 %v420
    %v1798 = vunpack.c.h.b16 %v420
    %v1799 = vunpack.c.l.b16 %v421
    %v1800 = vunpack.c.h.b16 %v421
    %v1801 = vunpack.c.l.b16 %v422
    %v1802 = vunpack.c.h.b16 %v422
    %v1803 = vunpack.c.l.b16 %v423
    %v1804 = vunpack.c.h.b16 %v423
    %v1805 = vunpack.c.l.b16 %v424
    %v1806 = vunpack.c.h.b16 %v424
    %v1807 = vunpack.c.l.b16 %v425
    %v1808 = vunpack.c.h.b16 %v425
    %v1809 = vunpack.c.l.b16 %v426
    %v1810 = vunpack.c.h.b16 %v426
    %v1811 = vunpack.c.l.b16 %v427
    %v1812 = vunpack.c.h.b16 %v427
    %v1813 = vunpack.c.l.b16 %v428
    %v1814 = vunpack.c.h.b16 %v428
    %v1815 = vunpack.c.l.b16 %v429
    %v1816 = vunpack.c.h.b16 %v429
    %v1817 = vunpack.c.l.b16 %v430
    %v1818 = vunpack.c.h.b16 %v430
    %v1819 = vunpack.c.l.b16 %v431
    %v1820 = vunpack.c.h.b16 %v431
    %v1821 = vunpack.c.l.b16 %v432
    %v1822 = vunpack.c.h.b16 %v432
    %v1823 = vunpack.c.l.b16 %v433
    %v1824 = vunpack.c.h.b16 %v433
    %v1825 = vunpack.c.l.b16 %v434
    %v1826 = vunpack.c.h.b16 %v434
    %v1827 = vunpack.c.l.b16 %v435
    %v1828 = vunpack.c.h.b16 %v435
    %v1829 = vunpack.c.l.b16 %v436
    %v1830 = vunpack.c.h.b16 %v436
    %v1831 = vunpack.c.l.b16 %v437
    %v1832 = vunpack.c.h.b16 %v437
    %v1833 = vunpack.c.l.b16 %v438
    %v1834 = vunpack.c.h.b16 %v438
    %v1835 = vunpack.c.l.b16 %v439
    %v1836 = vunpack.c.h.b16 %v439
    %v1837 = vunpack.c.l.b16 %v440
    %v1838 = vunpack.c.h.b16 %v440
    %v1839 = vunpack.c.l.b16 %v441
    %v1840 = vunpack.c.h.b16 %v441
    %v1841 = vunpack.c.l.b16 %v442
    %v1842 = vunpack.c.h.b16 %v442
    %v1843 = vunpack.c.l.b16 %v443
    %v1844 = vunpack.c.h.b16 %v443
    %v1845 = vunpack.c.l.b16 %v444
    %v1846 = vunpack.c.h.b16 %v444
    %v1847 = vunpack.c.l.b16 %v445
    %v1848 = vunpack.c.h.b16 %v445
    %v1849 = vunpack.c.l.b16 %v446
    %v1850 = vunpack.c.h.b16 %v446
    %v1851 = vunpack.c.l.b16 %v447
    %v1852 = vunpack.c.h.b16 %v447
    %v1853 = vunpack.c.l.b16 %v448
    %v1854 = vunpack.c.h.b16 %v448
    %v1855 = vunpack.c.l.b16 %v449
    %v1856 = vunpack.c.h.b16 %v449
    %v1857 = vunpack.c.l.b16 %v450
    %v1858 = vunpack.c.h.b16 %v450
    %v1859 = vunpack.c.l.b16 %v451
    %v1860 = vunpack.c.h.b16 %v451
    %v1861 = vunpack.c.l.b16 %v452
    %v1862 = vunpack.c.h.b16 %v452
    %v1863 = vunpack.c.l.b16 %v453
    %v1864 = vunpack.c.h.b16 %v453
    %v1865 = vunpack.c.l.b16 %v454
    %v1866 = vunpack.c.h.b16 %v454
    %v1867 = vunpack.c.l.b16 %v455
    %v1868 = vunpack.c.h.b16 %v455
    %v1869 = vunpack.c.l.b16 %v456
    %v1870 = vunpack.c.h.b16 %v456
    %v1871 = vunpack.c.l.b16 %v457
    %v1872 = vunpack.c.h.b16 %v457
    %v1873 = vunpack.c.l.b16 %v458
    %v1874 = vunpack.c.h.b16 %v458
    %v1875 = vunpack.c.l.b16 %v459
    %v1876 = vunpack.c.h.b16 %v459
    %v1877 = vunpack.c.l.b16 %v460
    %v1878 = vunpack.c.h.b16 %v460
    %v1879 = vunpack.c.l.b16 %v461
    %v1880 = vunpack.c.h.b16 %v461
    %v1881 = vunpack.c.l.b16 %v462
    %v1882 = vunpack.c.h.b16 %v462
    %v1883 = vunpack.c.l.b16 %v463
    %v1884 = vunpack.c.h.b16 %v463
    %v1885 = vunpack.c.l.b16 %v464
    %v1886 = vunpack.c.h.b16 %v464
    %v1887 = vunpack.c.l.b16 %v465
    %v1888 = vunpack.c.h.b16 %v465
    %v1889 = vunpack.c.l.b16 %v466
    %v1890 = vunpack.c.h.b16 %v466
    %v1891 = vunpack.c.l.b16 %v467
    %v1892 = vunpack.c.h.b16 %v467
    %v1893 = vunpack.c.l.b16 %v468
    %v1894 = vunpack.c.h.b16 %v468
    %v1895 = vunpack.c.l.b16 %v469
    %v1896 = vunpack.c.h.b16 %v469
    %v1897 = vunpack.c.l.b16 %v470
    %v1898 = vunpack.c.h.b16 %v470
    %v1899 = vunpack.c.l.b16 %v471
    %v1900 = vunpack.c.h.b16 %v471
    %v1901 = vunpack.c.l.b16 %v472
    %v1902 = vunpack.c.h.b16 %v472
    %v1903 = vunpack.c.l.b16 %v473
    %v1904 = vunpack.c.h.b16 %v473
    %v1905 = vunpack.c.l.b16 %v474
    %v1906 = vunpack.c.h.b16 %v474
    %v1907 = vunpack.c.l.b16 %v475
    %v1908 = vunpack.c.h.b16 %v475
    %v1909 = vunpack.c.l.b16 %v476
    %v1910 = vunpack.c.h.b16 %v476
    %v1911 = vunpack.c.l.b16 %v477
    %v1912 = vunpack.c.h.b16 %v477
    %v1913 = vunpack.c.l.b16 %v478
    %v1914 = vunpack.c.h.b16 %v478
    %v1915 = vunpack.c.l.b16 %v479
    %v1916 = vunpack.c.h.b16 %v479
    %v1917 = vunpack.c.l.b16 %v480
    %v1918 = vunpack.c.h.b16 %v480
    %v1919 = vunpack.c.l.b16 %v481
    %v1920 = vunpack.c.h.b16 %v481
    %v1921 = vunpack.c.l.b16 %v482
    %v1922 = vunpack.c.h.b16 %v482
    %v1923 = vunpack.c.l.b16 %v483
    %v1924 = vunpack.c.h.b16 %v483
    %v1925 = vunpack.c.l.b16 %v484
    %v1926 = vunpack.c.h.b16 %v484
    %v1927 = vunpack.c.l.b16 %v485
    %v1928 = vunpack.c.h.b16 %v485
    %v1929 = vunpack.c.l.b16 %v486
    %v1930 = vunpack.c.h.b16 %v486
    %v1931 = vunpack.c.l.b16 %v487
    %v1932 = vunpack.c.h.b16 %v487
    %v1933 = vunpack.c.l.b16 %v488
    %v1934 = vunpack.c.h.b16 %v488
    %v1935 = vunpack.c.l.b16 %v489
    %v1936 = vunpack.c.h.b16 %v489
    %v1937 = vunpack.c.l.b16 %v490
    %v1938 = vunpack.c.h.b16 %v490
    %v1939 = vunpack.c.l.b16 %v491
    %v1940 = vunpack.c.h.b16 %v491
    %v1941 = vunpack.c.l.b16 %v492
    %v1942 = vunpack.c.h.b16 %v492
    %v1943 = vunpack.c.l.b16 %v493
    %v1944 = vunpack.c.h.b16 %v493
    %v1945 = vunpack.c.l.b16 %v494
    %v1946 = vunpack.c.h.b16 %v494
    %v1947 = vunpack.c.l.b16 %v495
    %v1948 = vunpack.c.h.b16 %v495
    %v1949 = vunpack.c.l.b16 %v496
    %v1950 = vunpack.c.h.b16 %v496
    %v1951 = vunpack.c.l.b16 %v497
    %v1952 = vunpack.c.h.b16 %v497
    %v1953 = vunpack.c.l.b16 %v498
    %v1954 = vunpack.c.h.b16 %v498
    %v1955 = vunpack.c.l.b16 %v499
    %v1956 = vunpack.c.h.b16 %v499
    %v1957 = vunpack.c.l.b16 %v500
    %v1958 = vunpack.c.h.b16 %v500
    %v1959 = vunpack.c.l.b16 %v501
    %v1960 = vunpack.c.h.b16 %v501
    %v1961 = vunpack.c.l.b16 %v502
    %v1962 = vunpack.c.h.b16 %v502
    %v1963 = vunpack.c.l.b16 %v503
    %v1964 = vunpack.c.h.b16 %v503
    %v1965 = vunpack.c.l.b16 %v504
    %v1966 = vunpack.c.h.b16 %v504
    %v1967 = vunpack.c.l.b16 %v505
    %v1968 = vunpack.c.h.b16 %v505
    %v1969 = vunpack.c.l.b16 %v506
    %v1970 = vunpack.c.h.b16 %v506
    %v1971 = vunpack.c.l.b16 %v507
    %v1972 = vunpack.c.h.b16 %v507
    %v1973 = vunpack.c.l.b16 %v508
    %v1974 = vunpack.c.h.b16 %v508
    %v1975 = vunpack.c.l.b16 %v509
    %v1976 = vunpack.c.h.b16 %v509
    %v1977 = vunpack.c.l.b16 %v510
    %v1978 = vunpack.c.h.b16 %v510
    %v1979 = vunpack.c.l.b16 %v511
    %v1980 = vunpack.c.h.b16 %v511
    %v1981 = vunpack.c.l.b16 %v512
    %v1982 = vunpack.c.h.b16 %v512
    %v1983 = vunpack.c.l.b16 %v513
    %v1984 = vunpack.c.h.b16 %v513
    %v1985 = vunpack.c.l.b16 %v514
    %v1986 = vunpack.c.h.b16 %v514
    %v1987 = vunpack.c.l.b16 %v515
    %v1988 = vunpack.c.h.b16 %v515
    %v1989 = vunpack.c.l.b16 %v516
    %v1990 = vunpack.c.h.b16 %v516
    %v1991 = vunpack.c.l.b16 %v517
    %v1992 = vunpack.c.h.b16 %v517
    %v1993 = vunpack.c.l.b16 %v518
    %v1994 = vunpack.c.h.b16 %v518
    %v1995 = vunpack.c.l.b16 %v519
    %v1996 = vunpack.c.h.b16 %v519
    %v1997 = vunpack.c.l.b16 %v520
    %v1998 = vunpack.c.h.b16 %v520
    %v1999 = vunpack.c.l.b16 %v521
    %v2000 = vunpack.c.h.b16 %v521
    %v2001 = vunpack.c.l.b16 %v522
    %v2002 = vunpack.c.h.b16 %v522
    %v2003 = vunpack.c.l.b16 %v523
    %v2004 = vunpack.c.h.b16 %v523
    %v2005 = vunpack.c.l.b16 %v524
    %v2006 = vunpack.c.h.b16 %v524
    %v2007 = vunpack.c.l.b16 %v525
    %v2008 = vunpack.c.h.b16 %v525
    %v2009 = vunpack.c.l.b16 %v526
    %v2010 = vunpack.c.h.b16 %v526
    %v2011 = vunpack.c.l.b16 %v527
    %v2012 = vunpack.c.h.b16 %v527
    %v2013 = vunpack.c.l.b16 %v528
    %v2014 = vunpack.c.h.b16 %v528
    %v2015 = vunpack.c.l.b16 %v529
    %v2016 = vunpack.c.h.b16 %v529
    %v2017 = vunpack.c.l.b16 %v530
    %v2018 = vunpack.c.h.b16 %v530
    %v2019 = vunpack.c.l.b16 %v531
    %v2020 = vunpack.c.h.b16 %v531
    %v2021 = vunpack.c.l.b16 %v532
    %v2022 = vunpack.c.h.b16 %v532
    %v2023 = vunpack.c.l.b16 %v533
    %v2024 = vunpack.c.h.b16 %v533
    %v2025 = vunpack.c.l.b16 %v534
    %v2026 = vunpack.c.h.b16 %v534
    %v2027 = vunpack.c.l.b16 %v535
    %v2028 = vunpack.c.h.b16 %v535
    %v2029 = vunpack.c.l.b16 %v536
    %v2030 = vunpack.c.h.b16 %v536
    %v2031 = vunpack.c.l.b16 %v537
    %v2032 = vunpack.c.h.b16 %v537
    %v2033 = vunpack.c.l.b16 %v538
    %v2034 = vunpack.c.h.b16 %v538
    %v2035 = vunpack.c.l.b16 %v539
    %v2036 = vunpack.c.h.b16 %v539
    %v2037 = vunpack.c.l.b16 %v540
    %v2038 = vunpack.c.h.b16 %v540
    %v2039 = vunpack.c.l.b16 %v541
    %v2040 = vunpack.c.h.b16 %v541
    %v2041 = vunpack.c.l.b16 %v542
    %v2042 = vunpack.c.h.b16 %v542
    %v2043 = vunpack.c.l.b16 %v543
    %v2044 = vunpack.c.h.b16 %v543
    %v2045 = vunpack.c.l.b16 %v544
    %v2046 = vunpack.c.h.b16 %v544
    %v2047 = vunpack.c.l.b16 %v545
    %v2048 = vunpack.c.h.b16 %v545
    %v2049 = vunpack.c.l.b16 %v546
    %v2050 = vunpack.c.h.b16 %v546
    %v2051 = vunpack.c.l.b16 %v547
    %v2052 = vunpack.c.h.b16 %v547
    %v2053 = vunpack.c.l.b16 %v548
    %v2054 = vunpack.c.h.b16 %v548
    %v2055 = vunpack.c.l.b16 %v549
    %v2056 = vunpack.c.h.b16 %v549
    %v2057 = vunpack.c.l.b16 %v550
    %v2058 = vunpack.c.h.b16 %v550
    %v2059 = vunpack.c.l.b16 %v551
    %v2060 = vunpack.c.h.b16 %v551
    %v2061 = vunpack.c.l.b16 %v552
    %v2062 = vunpack.c.h.b16 %v552
    %v2063 = vunpack.c.l.b16 %v553
    %v2064 = vunpack.c.h.b16 %v553
    %v2065 = vunpack.c.l.b16 %v554
    %v2066 = vunpack.c.h.b16 %v554
    %v2067 = vunpack.c.l.b16 %v555
    %v2068 = vunpack.c.h.b16 %v555
    %v2069 = vunpack.c.l.b16 %v556
    %v2070 = vunpack.c.h.b16 %v556
    %v2071 = vunpack.c.l.b16 %v557
    %v2072 = vunpack.c.h.b16 %v557
    %v2073 = vunpack.c.l.b16 %v558
    %v2074 = vunpack.c.h.b16 %v558
    %v2075 = vunpack.c.l.b16 %v559
    %v2076 = vunpack.c.h.b16 %v559
    %v2077 = vunpack.c.l.b16 %v560
    %v2078 = vunpack.c.h.b16 %v560
    %v2079 = vunpack.c.l.b16 %v561
    %v2080 = vunpack.c.h.b16 %v561
    %v2081 = vunpack.c.l.b16 %v562
    %v2082 = vunpack.c.h.b16 %v562
    %v2083 = vunpack.c.l.b16 %v563
    %v2084 = vunpack.c.h.b16 %v563
    %v2085 = vunpack.c.l.b16 %v564
    %v2086 = vunpack.c.h.b16 %v564
    %v2087 = vunpack.c.l.b16 %v565
    %v2088 = vunpack.c.h.b16 %v565
    %v2089 = vunpack.c.l.b16 %v566
    %v2090 = vunpack.c.h.b16 %v566
    %v2091 = vunpack.c.l.b16 %v567
    %v2092 = vunpack.c.h.b16 %v567
    %v2093 = vunpack.c.l.b16 %v568
    %v2094 = vunpack.c.h.b16 %v568
    %v2095 = vunpack.c.l.b16 %v569
    %v2096 = vunpack.c.h.b16 %v569
    %v2097 = vunpack.c.l.b16 %v570
    %v2098 = vunpack.c.h.b16 %v570
    %v2099 = vunpack.c.l.b16 %v571
    %v2100 = vunpack.c.h.b16 %v571
    %v2101 = vunpack.c.l.b16 %v572
    %v2102 = vunpack.c.h.b16 %v572
    %v2103 = vunpack.c.l.b16 %v573
    %v2104 = vunpack.c.h.b16 %v573
    %v2105 = vunpack.c.l.b16 %v574
    %v2106 = vunpack.c.h.b16 %v574
    %v2107 = vunpack.c.l.b16 %v575
    %v2108 = vunpack.c.h.b16 %v575
    %v2109 = vunpack.c.l.b16 %v576
    %v2110 = vunpack.c.h.b16 %v576
    %v2111 = vunpack.c.l.b16 %v577
    %v2112 = vunpack.c.h.b16 %v577
    %v2113 = vunpack.c.l.b16 %v578
    %v2114 = vunpack.c.h.b16 %v578
    %v2115 = vunpack.c.l.b16 %v579
    %v2116 = vunpack.c.h.b16 %v579
    %v2117 = vunpack.c.l.b16 %v580
    %v2118 = vunpack.c.h.b16 %v580
    %v2119 = vunpack.c.l.b16 %v581
    %v2120 = vunpack.c.h.b16 %v581
    %v2121 = vunpack.c.l.b16 %v582
    %v2122 = vunpack.c.h.b16 %v582
    %v2123 = vunpack.c.l.b16 %v583
    %v2124 = vunpack.c.h.b16 %v583
    %v2125 = vunpack.c.l.b16 %v584
    %v2126 = vunpack.c.h.b16 %v584
    %v2127 = vunpack.c.l.b16 %v585
    %v2128 = vunpack.c.h.b16 %v585
    %v2129 = vunpack.c.l.b16 %v586
    %v2130 = vunpack.c.h.b16 %v586
    %v2131 = vunpack.c.l.b16 %v587
    %v2132 = vunpack.c.h.b16 %v587
    %v2133 = vunpack.c.l.b16 %v588
    %v2134 = vunpack.c.h.b16 %v588
    %v2135 = vunpack.c.l.b16 %v589
    %v2136 = vunpack.c.h.b16 %v589
    %v2137 = vunpack.c.l.b16 %v590
    %v2138 = vunpack.c.h.b16 %v590
    %v2139 = vunpack.c.l.b16 %v591
    %v2140 = vunpack.c.h.b16 %v591
    %v2141 = vunpack.c.l.b16 %v592
    %v2142 = vunpack.c.h.b16 %v592
    %v2143 = vunpack.c.l.b16 %v593
    %v2144 = vunpack.c.h.b16 %v593
    %v2145 = vunpack.c.l.b16 %v594
    %v2146 = vunpack.c.h.b16 %v594
    %v2147 = vunpack.c.l.b16 %v595
    %v2148 = vunpack.c.h.b16 %v595
    %v2149 = vunpack.c.l.b16 %v596
    %v2150 = vunpack.c.h.b16 %v596
    %v2151 = vunpack.c.l.b16 %v597
    %v2152 = vunpack.c.h.b16 %v597
    %v2153 = vunpack.c.l.b16 %v598
    %v2154 = vunpack.c.h.b16 %v598
    %v2155 = vunpack.c.l.b16 %v599
    %v2156 = vunpack.c.h.b16 %v599
    %v2157 = vunpack.c.l.b16 %v600
    %v2158 = vunpack.c.h.b16 %v600
    %v2159 = vunpack.c.l.b16 %v601
    %v2160 = vunpack.c.h.b16 %v601
    %v2161 = vunpack.c.l.b16 %v602
    %v2162 = vunpack.c.h.b16 %v602
    %v2163 = vunpack.c.l.b16 %v603
    %v2164 = vunpack.c.h.b16 %v603
    %v2165 = vunpack.c.l.b16 %v604
    %v2166 = vunpack.c.h.b16 %v604
    %v2167 = vunpack.c.l.b16 %v605
    %v2168 = vunpack.c.h.b16 %v605
    %v2169 = vunpack.c.l.b16 %v606
    %v2170 = vunpack.c.h.b16 %v606
    %v2171 = vunpack.c.l.b16 %v607
    %v2172 = vunpack.c.h.b16 %v607
    %v2173 = vunpack.c.l.b16 %v608
    %v2174 = vunpack.c.h.b16 %v608
    %v2175 = vunpack.c.l.b16 %v609
    %v2176 = vunpack.c.h.b16 %v609
    %v2177 = vunpack.c.l.b16 %v610
    %v2178 = vunpack.c.h.b16 %v610
    %v2179 = vunpack.c.l.b16 %v611
    %v2180 = vunpack.c.h.b16 %v611
    %v2181 = vunpack.c.l.b16 %v612
    %v2182 = vunpack.c.h.b16 %v612
    %v2183 = vunpack.c.l.b16 %v613
    %v2184 = vunpack.c.h.b16 %v613
    %v2185 = vunpack.c.l.b16 %v614
    %v2186 = vunpack.c.h.b16 %v614
    %v2187 = vunpack.c.l.b16 %v615
    %v2188 = vunpack.c.h.b16 %v615
    %v2189 = vunpack.c.l.b16 %v616
    %v2190 = vunpack.c.h.b16 %v616
    %v2191 = vunpack.c.l.b16 %v617
    %v2192 = vunpack.c.h.b16 %v617
    %v2193 = vunpack.c.l.b16 %v618
    %v2194 = vunpack.c.h.b16 %v618
    %v2195 = vunpack.c.l.b16 %v619
    %v2196 = vunpack.c.h.b16 %v619
    %v2197 = vunpack.c.l.b16 %v620
    %v2198 = vunpack.c.h.b16 %v620
    %v2199 = vunpack.c.l.b16 %v621
    %v2200 = vunpack.c.h.b16 %v621
    %v2201 = vunpack.c.l.b16 %v622
    %v2202 = vunpack.c.h.b16 %v622
    %v2203 = vunpack.c.l.b16 %v623
    %v2204 = vunpack.c.h.b16 %v623
    %v2205 = vunpack.c.l.b16 %v624
    %v2206 = vunpack.c.h.b16 %v624
    %v2207 = vunpack.c.l.b16 %v625
    %v2208 = vunpack.c.h.b16 %v625
    %v2209 = vunpack.c.l.b16 %v626
    %v2210 = vunpack.c.h.b16 %v626
    %v2211 = vunpack.c.l.b16 %v627
    %v2212 = vunpack.c.h.b16 %v627
    %v2213 = vunpack.c.l.b16 %v628
    %v2214 = vunpack.c.h.b16 %v628
    %v2215 = vunpack.c.l.b16 %v629
    %v2216 = vunpack.c.h.b16 %v629
    %v2217 = vunpack.c.l.b16 %v630
    %v2218 = vunpack.c.h.b16 %v630
    %v2219 = vunpack.c.l.b16 %v631
    %v2220 = vunpack.c.h.b16 %v631
    %v2221 = vunpack.c.l.b16 %v632
    %v2222 = vunpack.c.h.b16 %v632
    %v2223 = vunpack.c.l.b16 %v633
    %v2224 = vunpack.c.h.b16 %v633
    %v2225 = vunpack.c.l.b16 %v634
    %v2226 = vunpack.c.h.b16 %v634
    %v2227 = vunpack.c.l.b16 %v635
    %v2228 = vunpack.c.h.b16 %v635
    %v2229 = vunpack.c.l.b16 %v636
    %v2230 = vunpack.c.h.b16 %v636
    %v2231 = vunpack.c.l.b16 %v637
    %v2232 = vunpack.c.h.b16 %v637
    %v2233 = vunpack.c.l.b16 %v638
    %v2234 = vunpack.c.h.b16 %v638
    %v2235 = vunpack.c.l.b16 %v639
    %v2236 = vunpack.c.h.b16 %v639
    %v2237 = vunpack.c.l.b16 %v640
    %v2238 = vunpack.c.h.b16 %v640
    %v2239 = vunpack.c.l.b16 %v641
    %v2240 = vunpack.c.h.b16 %v641
    %v2241 = vunpack.c.l.b16 %v642
    %v2242 = vunpack.c.h.b16 %v642
    %v2243 = vunpack.c.l.b16 %v643
    %v2244 = vunpack.c.h.b16 %v643
    %v2245 = vunpack.c.l.b16 %v644
    %v2246 = vunpack.c.h.b16 %v644
    %v2247 = vunpack.c.l.b16 %v645
    %v2248 = vunpack.c.h.b16 %v645
    %v2249 = vunpack.c.l.b16 %v646
    %v2250 = vunpack.c.h.b16 %v646
    %v2251 = vunpack.c.l.b16 %v647
    %v2252 = vunpack.c.h.b16 %v647
    %v2253 = vunpack.c.l.b16 %v648
    %v2254 = vunpack.c.h.b16 %v648
    %v2255 = vpack.c.b16 %v1239, %v1231
    %v2256 = vpack.c.b16 %v1240, %v1232
    %v2257 = vpack.c.b16 %v1241, %v1233
    %v2258 = vpack.c.b16 %v1242, %v1234
    %v2259 = vpack.c.b16 %v1243, %v1235
    %v2260 = vpack.c.b16 %v1244, %v1236
    %v2261 = vpack.c.b16 %v1245, %v1237
    %v2262 = vpack.c.b16 %v1246, %v1238
    %v2263 = vpack.c.b16 %v1255, %v1247
    %v2264 = vpack.c.b16 %v1256, %v1248
    %v2265 = vpack.c.b16 %v1257, %v1249
    %v2266 = vpack.c.b16 %v1258, %v1250
    %v2267 = vpack.c.b16 %v1259, %v1251
    %v2268 = vpack.c.b16 %v1260, %v1252
    %v2269 = vpack.c.b16 %v1261, %v1253
    %v2270 = vpack.c.b16 %v1262, %v1254
    %v2271 = vpack.c.b16 %v1271, %v1263
    %v2272 = vpack.c.b16 %v1272, %v1264
    %v2273 = vpack.c.b16 %v1273, %v1265
    %v2274 = vpack.c.b16 %v1274, %v1266
    %v2275 = vpack.c.b16 %v1275, %v1267
    %v2276 = vpack.c.b16 %v1276, %v1268
    %v2277 = vpack.c.b16 %v1277, %v1269
    %v2278 = vpack.c.b16 %v1278, %v1270
    %v2279 = vpack.c.b16 %v1287, %v1279
    %v2280 = vpack.c.b16 %v1288, %v1280
    %v2281 = vpack.c.b16 %v1289, %v1281
    %v2282 = vpack.c.b16 %v1290, %v1282
    %v2283 = vpack.c.b16 %v1291, %v1283
    %v2284 = vpack.c.b16 %v1292, %v1284
    %v2285 = vpack.c.b16 %v1293, %v1285
    %v2286 = vpack.c.b16 %v1294, %v1286
    %v2287 = vpack.c.b16 %v1303, %v1295
    %v2288 = vpack.c.b16 %v1304, %v1296
    %v2289 = vpack.c.b16 %v1305, %v1297
    %v2290 = vpack.c.b16 %v1306, %v1298
    %v2291 = vpack.c.b16 %v1307, %v1299
    %v2292 = vpack.c.b16 %v1308, %v1300
    %v2293 = vpack.c.b16 %v1309, %v1301
    %v2294 = vpack.c.b16 %v1310, %v1302
    %v2295 = vpack.c.b16 %v1319, %v1311
    %v2296 = vpack.c.b16 %v1320, %v1312
    %v2297 = vpack.c.b16 %v1321, %v1313
    %v2298 = vpack.c.b16 %v1322, %v1314
    %v2299 = vpack.c.b16 %v1323, %v1315
    %v2300 = vpack.c.b16 %v1324, %v1316
    %v2301 = vpack.c.b16 %v1325, %v1317
    %v2302 = vpack.c.b16 %v1326, %v1318
    %v2303 = vpack.c.b16 %v1335, %v1327
    %v2304 = vpack.c.b16 %v1336, %v1328
    %v2305 = vpack.c.b16 %v1337, %v1329
    %v2306 = vpack.c.b16 %v1338, %v1330
    %v2307 = vpack.c.b16 %v1339, %v1331
    %v2308 = vpack.c.b16 %v1340, %v1332
    %v2309 = vpack.c.b16 %v1341, %v1333
    %v2310 = vpack.c.b16 %v1342, %v1334
    %v2311 = vpack.c.b16 %v1351, %v1343
    %v2312 = vpack.c.b16 %v1352, %v1344
    %v2313 = vpack.c.b16 %v1353, %v1345
    %v2314 = vpack.c.b16 %v1354, %v1346
    %v2315 = vpack.c.b16 %v1355, %v1347
    %v2316 = vpack.c.b16 %v1356, %v1348
    %v2317 = vpack.c.b16 %v1357, %v1349
    %v2318 = vpack.c.b16 %v1358, %v1350
    %v2319 = vpack.c.b16 %v1367, %v1359
    %v2320 = vpack.c.b16 %v1368, %v1360
    %v2321 = vpack.c.b16 %v1369, %v1361
    %v2322 = vpack.c.b16 %v1370, %v1362
    %v2323 = vpack.c.b16 %v1371, %v1363
    %v2324 = vpack.c.b16 %v1372, %v1364
    %v2325 = vpack.c.b16 %v1373, %v1365
    %v2326 = vpack.c.b16 %v1374, %v1366
    %v2327 = vpack.c.b16 %v1383, %v1375
    %v2328 = vpack.c.b16 %v1384, %v1376
    %v2329 = vpack.c.b16 %v1385, %v1377
    %v2330 = vpack.c.b16 %v1386, %v1378
    %v2331 = vpack.c.b16 %v1387, %v1379
    %v2332 = vpack.c.b16 %v1388, %v1380
    %v2333 = vpack.c.b16 %v1389, %v1381
    %v2334 = vpack.c.b16 %v1390, %v1382
    %v2335 = vpack.c.b16 %v1399, %v1391
    %v2336 = vpack.c.b16 %v1400, %v1392
    %v2337 = vpack.c.b16 %v1401, %v1393
    %v2338 = vpack.c.b16 %v1402, %v1394
    %v2339 = vpack.c.b16 %v1403, %v1395
    %v2340 = vpack.c.b16 %v1404, %v1396
    %v2341 = vpack.c.b16 %v1405, %v1397
    %v2342 = vpack.c.b16 %v1406, %v1398
    %v2343 = vpack.c.b16 %v1415, %v1407
    %v2344 = vpack.c.b16 %v1416, %v1408
    %v2345 = vpack.c.b16 %v1417, %v1409
    %v2346 = vpack.c.b16 %v1418, %v1410
    %v2347 = vpack.c.b16 %v1419, %v1411
    %v2348 = vpack.c.b16 %v1420, %v1412
    %v2349 = vpack.c.b16 %v1421, %v1413
    %v2350 = vpack.c.b16 %v1422, %v1414
    %v2351 = vpack.c.b16 %v1431, %v1423
    %v2352 = vpack.c.b16 %v1432, %v1424
    %v2353 = vpack.c.b16 %v1433, %v1425
    %v2354 = vpack.c.b16 %v1434, %v1426
    %v2355 = vpack.c.b16 %v1435, %v1427
    %v2356 = vpack.c.b16 %v1436, %v1428
    %v2357 = vpack.c.b16 %v1437, %v1429
    %v2358 = vpack.c.b16 %v1438, %v1430
    %v2359 = vpack.c.b16 %v1447, %v1439
    %v2360 = vpack.c.b16 %v1448, %v1440
    %v2361 = vpack.c.b16 %v1449, %v1441
    %v2362 = vpack.c.b16 %v1450, %v1442
    %v2363 = vpack.c.b16 %v1451, %v1443
    %v2364 = vpack.c.b16 %v1452, %v1444
    %v2365 = vpack.c.b16 %v1453, %v1445
    %v2366 = vpack.c.b16 %v1454, %v1446
    %v2367 = vpack.c.b16 %v1463, %v1455
    %v2368 = vpack.c.b16 %v1464, %v1456
    %v2369 = vpack.c.b16 %v1465, %v1457
    %v2370 = vpack.c.b16 %v1466, %v1458
    %v2371 = vpack.c.b16 %v1467, %v1459
    %v2372 = vpack.c.b16 %v1468, %v1460
    %v2373 = vpack.c.b16 %v1469, %v1461
    %v2374 = vpack.c.b16 %v1470, %v1462
    %v2375 = vpack.c.b16 %v1479, %v1471
    %v2376 = vpack.c.b16 %v1480, %v1472
    %v2377 = vpack.c.b16 %v1481, %v1473
    %v2378 = vpack.c.b16 %v1482, %v1474
    %v2379 = vpack.c.b16 %v1483, %v1475
    %v2380 = vpack.c.b16 %v1484, %v1476
    %v2381 = vpack.c.b16 %v1485, %v1477
    %v2382 = vpack.c.b16 %v1486, %v1478
    %v2383 = vpack.c.b16 %v1495, %v1487
    %v2384 = vpack.c.b16 %v1496, %v1488
    %v2385 = vpack.c.b16 %v1497, %v1489
    %v2386 = vpack.c.b16 %v1498, %v1490
    %v2387 = vpack.c.b16 %v1499, %v1491
    %v2388 = vpack.c.b16 %v1500, %v1492
    %v2389 = vpack.c.b16 %v1501, %v1493
    %v2390 = vpack.c.b16 %v1502, %v1494
    %v2391 = vpack.c.b16 %v1511, %v1503
    %v2392 = vpack.c.b16 %v1512, %v1504
    %v2393 = vpack.c.b16 %v1513, %v1505
    %v2394 = vpack.c.b16 %v1514, %v1506
    %v2395 = vpack.c.b16 %v1515, %v1507
    %v2396 = vpack.c.b16 %v1516, %v1508
    %v2397 = vpack.c.b16 %v1517, %v1509
    %v2398 = vpack.c.b16 %v1518, %v1510
    %v2399 = vpack.c.b16 %v1527, %v1519
    %v2400 = vpack.c.b16 %v1528, %v1520
    %v2401 = vpack.c.b16 %v1529, %v1521
    %v2402 = vpack.c.b16 %v1530, %v1522
    %v2403 = vpack.c.b16 %v1531, %v1523
    %v2404 = vpack.c.b16 %v1532, %v1524
    %v2405 = vpack.c.b16 %v1533, %v1525
    %v2406 = vpack.c.b16 %v1534, %v1526
    %v2407 = vpack.c.b16 %v1543, %v1535
    %v2408 = vpack.c.b16 %v1544, %v1536
    %v2409 = vpack.c.b16 %v1545, %v1537
    %v2410 = vpack.c.b16 %v1546, %v1538
    %v2411 = vpack.c.b16 %v1547, %v1539
    %v2412 = vpack.c.b16 %v1548, %v1540
    %v2413 = vpack.c.b16 %v1549, %v1541
    %v2414 = vpack.c.b16 %v1550, %v1542
    %v2415 = vpack.c.b16 %v1559, %v1551
    %v2416 = vpack.c.b16 %v1560, %v1552
    %v2417 = vpack.c.b16 %v1561, %v1553
    %v2418 = vpack.c.b16 %v1562, %v1554
    %v2419 = vpack.c.b16 %v1563, %v1555
    %v2420 = vpack.c.b16 %v1564, %v1556
    %v2421 = vpack.c.b16 %v1565, %v1557
    %v2422 = vpack.c.b16 %v1566, %v1558
    %v2423 = vpack.c.b16 %v1575, %v1567
    %v2424 = vpack.c.b16 %v1576, %v1568
    %v2425 = vpack.c.b16 %v1577, %v1569
    %v2426 = vpack.c.b16 %v1578, %v1570
    %v2427 = vpack.c.b16 %v1579, %v1571
    %v2428 = vpack.c.b16 %v1580, %v1572
    %v2429 = vpack.c.b16 %v1581, %v1573
    %v2430 = vpack.c.b16 %v1582, %v1574
    %v2431 = vpack.c.b16 %v1591, %v1583
    %v2432 = vpack.c.b16 %v1592, %v1584
    %v2433 = vpack.c.b16 %v1593, %v1585
    %v2434 = vpack.c.b16 %v1594, %v1586
    %v2435 = vpack.c.b16 %v1595, %v1587
    %v2436 = vpack.c.b16 %v1596, %v1588
    %v2437 = vpack.c.b16 %v1597, %v1589
    %v2438 = vpack.c.b16 %v1598, %v1590
    %v2439 = vpack.c.b16 %v1607, %v1599
    %v2440 = vpack.c.b16 %v1608, %v1600
    %v2441 = vpack.c.b16 %v1609, %v1601
    %v2442 = vpack.c.b16 %v1610, %v1602
    %v2443 = vpack.c.b16 %v1611, %v1603
    %v2444 = vpack.c.b16 %v1612, %v1604
    %v2445 = vpack.c.b16 %v1613, %v1605
    %v2446 = vpack.c.b16 %v1614, %v1606
    %v2447 = vpack.c.b16 %v1623, %v1615
    %v2448 = vpack.c.b16 %v1624, %v1616
    %v2449 = vpack.c.b16 %v1625, %v1617
    %v2450 = vpack.c.b16 %v1626, %v1618
    %v2451 = vpack.c.b16 %v1627, %v1619
    %v2452 = vpack.c.b16 %v1628, %v1620
    %v2453 = vpack.c.b16 %v1629, %v1621
    %v2454 = vpack.c.b16 %v1630, %v1622
    %v2455 = vpack.c.b16 %v1639, %v1631
    %v2456 = vpack.c.b16 %v1640, %v1632
    %v2457 = vpack.c.b16 %v1641, %v1633
    %v2458 = vpack.c.b16 %v1642, %v1634
    %v2459 = vpack.c.b16 %v1643, %v1635
    %v2460 = vpack.c.b16 %v1644, %v1636
    %v2461 = vpack.c.b16 %v1645, %v1637
    %v2462 = vpack.c.b16 %v1646, %v1638
    %v2463 = vpack.c.b16 %v1655, %v1647
    %v2464 = vpack.c.b16 %v1656, %v1648
    %v2465 = vpack.c.b16 %v1657, %v1649
    %v2466 = vpack.c.b16 %v1658, %v1650
    %v2467 = vpack.c.b16 %v1659, %v1651
    %v2468 = vpack.c.b16 %v1660, %v1652
    %v2469 = vpack.c.b16 %v1661, %v1653
    %v2470 = vpack.c.b16 %v1662, %v1654
    %v2471 = vpack.c.b16 %v1671, %v1663
    %v2472 = vpack.c.b16 %v1672, %v1664
    %v2473 = vpack.c.b16 %v1673, %v1665
    %v2474 = vpack.c.b16 %v1674, %v1666
    %v2475 = vpack.c.b16 %v1675, %v1667
    %v2476 = vpack.c.b16 %v1676, %v1668
    %v2477 = vpack.c.b16 %v1677, %v1669
    %v2478 = vpack.c.b16 %v1678, %v1670
    %v2479 = vpack.c.b16 %v1687, %v1679
    %v2480 = vpack.c.b16 %v1688, %v1680
    %v2481 = vpack.c.b16 %v1689, %v1681
    %v2482 = vpack.c.b16 %v1690, %v1682
    %v2483 = vpack.c.b16 %v1691, %v1683
    %v2484 = vpack.c.b16 %v1692, %v1684
    %v2485 = vpack.c.b16 %v1693, %v1685
    %v2486 = vpack.c.b16 %v1694, %v1686
    %v2487 = vpack.c.b16 %v1703, %v1695
    %v2488 = vpack.c.b16 %v1704, %v1696
    %v2489 = vpack.c.b16 %v1705, %v1697
    %v2490 = vpack.c.b16 %v1706, %v1698
    %v2491 = vpack.c.b16 %v1707, %v1699
    %v2492 = vpack.c.b16 %v1708, %v1700
    %v2493 = vpack.c.b16 %v1709, %v1701
    %v2494 = vpack.c.b16 %v1710, %v1702
    %v2495 = vpack.c.b16 %v1719, %v1711
    %v2496 = vpack.c.b16 %v1720, %v1712
    %v2497 = vpack.c.b16 %v1721, %v1713
    %v2498 = vpack.c.b16 %v1722, %v1714
    %v2499 = vpack.c.b16 %v1723, %v1715
    %v2500 = vpack.c.b16 %v1724, %v1716
    %v2501 = vpack.c.b16 %v1725, %v1717
    %v2502 = vpack.c.b16 %v1726, %v1718
    %v2503 = vpack.c.b16 %v1735, %v1727
    %v2504 = vpack.c.b16 %v1736, %v1728
    %v2505 = vpack.c.b16 %v1737, %v1729
    %v2506 = vpack.c.b16 %v1738, %v1730
    %v2507 = vpack.c.b16 %v1739, %v1731
    %v2508 = vpack.c.b16 %v1740, %v1732
    %v2509 = vpack.c.b16 %v1741, %v1733
    %v2510 = vpack.c.b16 %v1742, %v1734
    %v2511 = vpack.c.b16 %v1751, %v1743
    %v2512 = vpack.c.b16 %v1752, %v1744
    %v2513 = vpack.c.b16 %v1753, %v1745
    %v2514 = vpack.c.b16 %v1754, %v1746
    %v2515 = vpack.c.b16 %v1755, %v1747
    %v2516 = vpack.c.b16 %v1756, %v1748
    %v2517 = vpack.c.b16 %v1757, %v1749
    %v2518 = vpack.c.b16 %v1758, %v1750
    %v2519 = vpack.c.b16 %v1767, %v1759
    %v2520 = vpack.c.b16 %v1768, %v1760
    %v2521 = vpack.c.b16 %v1769, %v1761
    %v2522 = vpack.c.b16 %v1770, %v1762
    %v2523 = vpack.c.b16 %v1771, %v1763
    %v2524 = vpack.c.b16 %v1772, %v1764
    %v2525 = vpack.c.b16 %v1773, %v1765
    %v2526 = vpack.c.b16 %v1774, %v1766
    %v2527 = vpack.c.b16 %v1783, %v1775
    %v2528 = vpack.c.b16 %v1784, %v1776
    %v2529 = vpack.c.b16 %v1785, %v1777
    %v2530 = vpack.c.b16 %v1786, %v1778
    %v2531 = vpack.c.b16 %v1787, %v1779
    %v2532 = vpack.c.b16 %v1788, %v1780
    %v2533 = vpack.c.b16 %v1789, %v1781
    %v2534 = vpack.c.b16 %v1790, %v1782
    %v2535 = vpack.c.b16 %v1799, %v1791
    %v2536 = vpack.c.b16 %v1800, %v1792
    %v2537 = vpack.c.b16 %v1801, %v1793
    %v2538 = vpack.c.b16 %v1802, %v1794
    %v2539 = vpack.c.b16 %v1803, %v1795
    %v2540 = vpack.c.b16 %v1804, %v1796
    %v2541 = vpack.c.b16 %v1805, %v1797
    %v2542 = vpack.c.b16 %v1806, %v1798
    %v2543 = vpack.c.b16 %v1815, %v1807
    %v2544 = vpack.c.b16 %v1816, %v1808
    %v2545 = vpack.c.b16 %v1817, %v1809
    %v2546 = vpack.c.b16 %v1818, %v1810
    %v2547 = vpack.c.b16 %v1819, %v1811
    %v2548 = vpack.c.b16 %v1820, %v1812
    %v2549 = vpack.c.b16 %v1821, %v1813
    %v2550 = vpack.c.b16 %v1822, %v1814
    %v2551 = vpack.c.b16 %v1831, %v1823
    %v2552 = vpack.c.b16 %v1832, %v1824
    %v2553 = vpack.c.b16 %v1833, %v1825
    %v2554 = vpack.c.b16 %v1834, %v1826
    %v2555 = vpack.c.b16 %v1835, %v1827
    %v2556 = vpack.c.b16 %v1836, %v1828
    %v2557 = vpack.c.b16 %v1837, %v1829
    %v2558 = vpack.c.b16 %v1838, %v1830
    %v2559 = vpack.c.b16 %v1847, %v1839
    %v2560 = vpack.c.b16 %v1848, %v1840
    %v2561 = vpack.c.b16 %v1849, %v1841
    %v2562 = vpack.c.b16 %v1850, %v1842
    %v2563 = vpack.c.b16 %v1851, %v1843
    %v2564 = vpack.c.b16 %v1852, %v1844
    %v2565 = vpack.c.b16 %v1853, %v1845
    %v2566 = vpack.c.b16 %v1854, %v1846
    %v2567 = vpack.c.b16 %v1863, %v1855
    %v2568 = vpack.c.b16 %v1864, %v1856
    %v2569 = vpack.c.b16 %v1865, %v1857
    %v2570 = vpack.c.b16 %v1866, %v1858
    %v2571 = vpack.c.b16 %v1867, %v1859
    %v2572 = vpack.c.b16 %v1868, %v1860
    %v2573 = vpack.c.b16 %v1869, %v1861
    %v2574 = vpack.c.b16 %v1870, %v1862
    %v2575 = vpack.c.b16 %v1879, %v1871
    %v2576 = vpack.c.b16 %v1880, %v1872
    %v2577 = vpack.c.b16 %v1881, %v1873
    %v2578 = vpack.c.b16 %v1882, %v1874
    %v2579 = vpack.c.b16 %v1883, %v1875
    %v2580 = vpack.c.b16 %v1884, %v1876
    %v2581 = vpack.c.b16 %v1885, %v1877
    %v2582 = vpack.c.b16 %v1886, %v1878
    %v2583 = vpack.c.b16 %v1895, %v1887
    %v2584 = vpack.c.b16 %v1896, %v1888
    %v2585 = vpack.c.b16 %v1897, %v1889
    %v2586 = vpack.c.b16 %v1898, %v1890
    %v2587 = vpack.c.b16 %v1899, %v1891
    %v2588 = vpack.c.b16 %v1900, %v1892
    %v2589 = vpack.c.b16 %v1901, %v1893
    %v2590 = vpack.c.b16 %v1902, %v1894
    %v2591 = vpack.c.b16 %v1911, %v1903
    %v2592 = vpack.c.b16 %v1912, %v1904
    %v2593 = vpack.c.b16 %v1913, %v1905
    %v2594 = vpack.c.b16 %v1914, %v1906
    %v2595 = vpack.c.b16 %v1915, %v1907
    %v2596 = vpack.c.b16 %v1916, %v1908
    %v2597 = vpack.c.b16 %v1917, %v1909
    %v2598 = vpack.c.b16 %v1918, %v1910
    %v2599 = vpack.c.b16 %v1927, %v1919
    %v2600 = vpack.c.b16 %v1928, %v1920
    %v2601 = vpack.c.b16 %v1929, %v1921
    %v2602 = vpack.c.b16 %v1930, %v1922
    %v2603 = vpack.c.b16 %v1931, %v1923
    %v2604 = vpack.c.b16 %v1932, %v1924
    %v2605 = vpack.c.b16 %v1933, %v1925
    %v2606 = vpack.c.b16 %v1934, %v1926
    %v2607 = vpack.c.b16 %v1943, %v1935
    %v2608 = vpack.c.b16 %v1944, %v1936
    %v2609 = vpack.c.b16 %v1945, %v1937
    %v2610 = vpack.c.b16 %v1946, %v1938
    %v2611 = vpack.c.b16 %v1947, %v1939
    %v2612 = vpack.c.b16 %v1948, %v1940
    %v2613 = vpack.c.b16 %v1949, %v1941
    %v2614 = vpack.c.b16 %v1950, %v1942
    %v2615 = vpack.c.b16 %v1959, %v1951
    %v2616 = vpack.c.b16 %v1960, %v1952
    %v2617 = vpack.c.b16 %v1961, %v1953
    %v2618 = vpack.c.b16 %v1962, %v1954
    %v2619 = vpack.c.b16 %v1963, %v1955
    %v2620 = vpack.c.b16 %v1964, %v1956
    %v2621 = vpack.c.b16 %v1965, %v1957
    %v2622 = vpack.c.b16 %v1966, %v1958
    %v2623 = vpack.c.b16 %v1975, %v1967
    %v2624 = vpack.c.b16 %v1976, %v1968
    %v2625 = vpack.c.b16 %v1977, %v1969
    %v2626 = vpack.c.b16 %v1978, %v1970
    %v2627 = vpack.c.b16 %v1979, %v1971
    %v2628 = vpack.c.b16 %v1980, %v1972
    %v2629 = vpack.c.b16 %v1981, %v1973
    %v2630 = vpack.c.b16 %v1982, %v1974
    %v2631 = vpack.c.b16 %v1991, %v1983
    %v2632 = vpack.c.b16 %v1992, %v1984
    %v2633 = vpack.c.b16 %v1993, %v1985
    %v2634 = vpack.c.b16 %v1994, %v1986
    %v2635 = vpack.c.b16 %v1995, %v1987
    %v2636 = vpack.c.b16 %v1996, %v1988
    %v2637 = vpack.c.b16 %v1997, %v1989
    %v2638 = vpack.c.b16 %v1998, %v1990
    %v2639 = vpack.c.b16 %v2007, %v1999
    %v2640 = vpack.c.b16 %v2008, %v2000
    %v2641 = vpack.c.b16 %v2009, %v2001
    %v2642 = vpack.c.b16 %v2010, %v2002
    %v2643 = vpack.c.b16 %v2011, %v2003
    %v2644 = vpack.c.b16 %v2012, %v2004
    %v2645 = vpack.c.b16 %v2013, %v2005
    %v2646 = vpack.c.b16 %v2014, %v2006
    %v2647 = vpack.c.b16 %v2023, %v2015
    %v2648 = vpack.c.b16 %v2024, %v2016
    %v2649 = vpack.c.b16 %v2025, %v2017
    %v2650 = vpack.c.b16 %v2026, %v2018
    %v2651 = vpack.c.b16 %v2027, %v2019
    %v2652 = vpack.c.b16 %v2028, %v2020
    %v2653 = vpack.c.b16 %v2029, %v2021
    %v2654 = vpack.c.b16 %v2030, %v2022
    %v2655 = vpack.c.b16 %v2039, %v2031
    %v2656 = vpack.c.b16 %v2040, %v2032
    %v2657 = vpack.c.b16 %v2041, %v2033
    %v2658 = vpack.c.b16 %v2042, %v2034
    %v2659 = vpack.c.b16 %v2043, %v2035
    %v2660 = vpack.c.b16 %v2044, %v2036
    %v2661 = vpack.c.b16 %v2045, %v2037
    %v2662 = vpack.c.b16 %v2046, %v2038
    %v2663 = vpack.c.b16 %v2055, %v2047
    %v2664 = vpack.c.b16 %v2056, %v2048
    %v2665 = vpack.c.b16 %v2057, %v2049
    %v2666 = vpack.c.b16 %v2058, %v2050
    %v2667 = vpack.c.b16 %v2059, %v2051
    %v2668 = vpack.c.b16 %v2060, %v2052
    %v2669 = vpack.c.b16 %v2061, %v2053
    %v2670 = vpack.c.b16 %v2062, %v2054
    %v2671 = vpack.c.b16 %v2071, %v2063
    %v2672 = vpack.c.b16 %v2072, %v2064
    %v2673 = vpack.c.b16 %v2073, %v2065
    %v2674 = vpack.c.b16 %v2074, %v2066
    %v2675 = vpack.c.b16 %v2075, %v2067
    %v2676 = vpack.c.b16 %v2076, %v2068
    %v2677 = vpack.c.b16 %v2077, %v2069
    %v2678 = vpack.c.b16 %v2078, %v2070
    %v2679 = vpack.c.b16 %v2087, %v2079
    %v2680 = vpack.c.b16 %v2088, %v2080
    %v2681 = vpack.c.b16 %v2089, %v2081
    %v2682 = vpack.c.b16 %v2090, %v2082
    %v2683 = vpack.c.b16 %v2091, %v2083
    %v2684 = vpack.c.b16 %v2092, %v2084
    %v2685 = vpack.c.b16 %v2093, %v2085
    %v2686 = vpack.c.b16 %v2094, %v2086
    %v2687 = vpack.c.b16 %v2103, %v2095
    %v2688 = vpack.c.b16 %v2104, %v2096
    %v2689 = vpack.c.b16 %v2105, %v2097
    %v2690 = vpack.c.b16 %v2106, %v2098
    %v2691 = vpack.c.b16 %v2107, %v2099
    %v2692 = vpack.c.b16 %v2108, %v2100
    %v2693 = vpack.c.b16 %v2109, %v2101
    %v2694 = vpack.c.b16 %v2110, %v2102
    %v2695 = vpack.c.b16 %v2119, %v2111
    %v2696 = vpack.c.b16 %v2120, %v2112
    %v2697 = vpack.c.b16 %v2121, %v2113
    %v2698 = vpack.c.b16 %v2122, %v2114
    %v2699 = vpack.c.b16 %v2123, %v2115
    %v2700 = vpack.c.b16 %v2124, %v2116
    %v2701 = vpack.c.b16 %v2125, %v2117
    %v2702 = vpack.c.b16 %v2126, %v2118
    %v2703 = vpack.c.b16 %v2135, %v2127
    %v2704 = vpack.c.b16 %v2136, %v2128
    %v2705 = vpack.c.b16 %v2137, %v2129
    %v2706 = vpack.c.b16 %v2138, %v2130
    %v2707 = vpack.c.b16 %v2139, %v2131
    %v2708 = vpack.c.b16 %v2140, %v2132
    %v2709 = vpack.c.b16 %v2141, %v2133
    %v2710 = vpack.c.b16 %v2142, %v2134
    %v2711 = vpack.c.b16 %v2151, %v2143
    %v2712 = vpack.c.b16 %v2152, %v2144
    %v2713 = vpack.c.b16 %v2153, %v2145
    %v2714 = vpack.c.b16 %v2154, %v2146
    %v2715 = vpack.c.b16 %v2155, %v2147
    %v2716 = vpack.c.b16 %v2156, %v2148
    %v2717 = vpack.c.b16 %v2157, %v2149
    %v2718 = vpack.c.b16 %v2158, %v2150
    %v2719 = vpack.c.b16 %v2167, %v2159
    %v2720 = vpack.c.b16 %v2168, %v2160
    %v2721 = vpack.c.b16 %v2169, %v2161
    %v2722 = vpack.c.b16 %v2170, %v2162
    %v2723 = vpack.c.b16 %v2171, %v2163
    %v2724 = vpack.c.b16 %v2172, %v2164
    %v2725 = vpack.c.b16 %v2173, %v2165
    %v2726 = vpack.c.b16 %v2174, %v2166
    %v2727 = vpack.c.b16 %v2183, %v2175
    %v2728 = vpack.c.b16 %v2184, %v2176
    %v2729 = vpack.c.b16 %v2185, %v2177
    %v2730 = vpack.c.b16 %v2186, %v2178
    %v2731 = vpack.c.b16 %v2187, %v2179
    %v2732 = vpack.c.b16 %v2188, %v2180
    %v2733 = vpack.c.b16 %v2189, %v2181
    %v2734 = vpack.c.b16 %v2190, %v2182
    %v2735 = vpack.c.b16 %v2199, %v2191
    %v2736 = vpack.c.b16 %v2200, %v2192
    %v2737 = vpack.c.b16 %v2201, %v2193
    %v2738 = vpack.c.b16 %v2202, %v2194
    %v2739 = vpack.c.b16 %v2203, %v2195
    %v2740 = vpack.c.b16 %v2204, %v2196
    %v2741 = vpack.c.b16 %v2205, %v2197
    %v2742 = vpack.c.b16 %v2206, %v2198
    %v2743 = vpack.c.b16 %v2215, %v2207
    %v2744 = vpack.c.b16 %v2216, %v2208
    %v2745 = vpack.c.b16 %v2217, %v2209
    %v2746 = vpack.c.b16 %v2218, %v2210
    %v2747 = vpack.c.b16 %v2219, %v2211
    %v2748 = vpack.c.b16 %v2220, %v2212
    %v2749 = vpack.c.b16 %v2221, %v2213
    %v2750 = vpack.c.b16 %v2222, %v2214
    %v2751 = vpack.c.b16 %v2231, %v2223
    %v2752 = vpack.c.b16 %v2232, %v2224
    %v2753 = vpack.c.b16 %v2233, %v2225
    %v2754 = vpack.c.b16 %v2234, %v2226
    %v2755 = vpack.c.b16 %v2235, %v2227
    %v2756 = vpack.c.b16 %v2236, %v2228
    %v2757 = vpack.c.b16 %v2237, %v2229
    %v2758 = vpack.c.b16 %v2238, %v2230
    %v2759 = vpack.c.b16 %v2247, %v2239
    %v2760 = vpack.c.b16 %v2248, %v2240
    %v2761 = vpack.c.b16 %v2249, %v2241
    %v2762 = vpack.c.b16 %v2250, %v2242
    %v2763 = vpack.c.b16 %v2251, %v2243
    %v2764 = vpack.c.b16 %v2252, %v2244
    %v2765 = vpack.c.b16 %v2253, %v2245
    %v2766 = vpack.c.b16 %v2254, %v2246
    %3279 = vmatprep.subr.bf16.mxu0 %v2312
    %3280 = vmatpush1.bf16.msra.mxu0 %v2311
    %3281 = vmatprep.subr.bf16.mxu0 %v2304
    %3282 = vmatpush1.bf16.msra.mxu0 %v2303
    %3283 = vmatprep.subr.bf16.mxu0 %v2296
    %3284 = vmatpush1.bf16.msra.mxu0 %v2295
    %3285 = vmatprep.subr.bf16.mxu0 %v2288
    %3286 = vmatpush1.bf16.msra.mxu0 %v2287
    %3287 = vmatprep.subr.bf16.mxu0 %v2280
    %3288 = vmatpush1.bf16.msra.mxu0 %v2279
    %3289 = vmatprep.subr.bf16.mxu0 %v2272
    %3290 = vmatpush1.bf16.msra.mxu0 %v2271
    %3291 = vmatprep.subr.bf16.mxu0 %v2264
    %3292 = vmatpush1.bf16.msra.mxu0 %v2263
    %3293 = vmatprep.subr.bf16.mxu0 %v2256
    %3294 = vmatpush1.bf16.msra.mxu0 %v2255
    %3295 = vmatprep.subr.bf16.mxu0 %v2376
    %3296 = vmatpush2.bf16.msra.mxu0 %v2375
    %3297 = vmatprep.subr.bf16.mxu0 %v2368
    %3298 = vmatpush2.bf16.msra.mxu0 %v2367
    %3299 = vmatprep.subr.bf16.mxu0 %v2360
    %3300 = vmatpush2.bf16.msra.mxu0 %v2359
    %3301 = vmatprep.subr.bf16.mxu0 %v2352
    %3302 = vmatpush2.bf16.msra.mxu0 %v2351
    %3303 = vmatprep.subr.bf16.mxu0 %v2344
    %3304 = vmatpush2.bf16.msra.mxu0 %v2343
    %3305 = vmatprep.subr.bf16.mxu0 %v2336
    %3306 = vmatpush2.bf16.msra.mxu0 %v2335
    %3307 = vmatprep.subr.bf16.mxu0 %v2328
    %3308 = vmatpush2.bf16.msra.mxu0 %v2327
    %3309 = vmatprep.subr.bf16.mxu0 %v2320
    %3310 = vmatpush2.bf16.msra.mxu0 %v2319
    %3311 = vmatprep.mubr.bf16.mxu0 %v704
    %3312 = vmatmul.mubr.bf16.gmra.mxu0 %v703
    %v3313 = vpop.f32.mrf.mxu0
    %v3314 = vadd.f32 %v654, %v3313
    %v3315 = vpop.f32.mrf.mxu0
    %v3316 = vadd.f32 %v658, %v3315
    %v3317 = vpop.f32.mrf.mxu0
    %v3318 = vpop.f32.mrf.mxu0
    %3319 = vdwg.mxu0
    %3320 = vmatprep.subr.bf16.mxu0 %v2440
    %3321 = vmatpush1.bf16.msra.mxu0 %v2439
    %3322 = vmatprep.subr.bf16.mxu0 %v2432
    %3323 = vmatpush1.bf16.msra.mxu0 %v2431
    %3324 = vmatprep.subr.bf16.mxu0 %v2424
    %3325 = vmatpush1.bf16.msra.mxu0 %v2423
    %3326 = vmatprep.subr.bf16.mxu0 %v2416
    %3327 = vmatpush1.bf16.msra.mxu0 %v2415
    %3328 = vmatprep.subr.bf16.mxu0 %v2408
    %3329 = vmatpush1.bf16.msra.mxu0 %v2407
    %3330 = vmatprep.subr.bf16.mxu0 %v2400
    %3331 = vmatpush1.bf16.msra.mxu0 %v2399
    %3332 = vmatprep.subr.bf16.mxu0 %v2392
    %3333 = vmatpush1.bf16.msra.mxu0 %v2391
    %3334 = vmatprep.subr.bf16.mxu0 %v2384
    %3335 = vmatpush1.bf16.msra.mxu0 %v2383
    %3336 = vmatprep.subr.bf16.mxu0 %v2504
    %3337 = vmatpush2.bf16.msra.mxu0 %v2503
    %3338 = vmatprep.subr.bf16.mxu0 %v2496
    %3339 = vmatpush2.bf16.msra.mxu0 %v2495
    %3340 = vmatprep.subr.bf16.mxu0 %v2488
    %3341 = vmatpush2.bf16.msra.mxu0 %v2487
    %3342 = vmatprep.subr.bf16.mxu0 %v2480
    %3343 = vmatpush2.bf16.msra.mxu0 %v2479
    %3344 = vmatprep.subr.bf16.mxu0 %v2472
    %3345 = vmatpush2.bf16.msra.mxu0 %v2471
    %3346 = vmatprep.subr.bf16.mxu0 %v2464
    %3347 = vmatpush2.bf16.msra.mxu0 %v2463
    %3348 = vmatprep.subr.bf16.mxu0 %v2456
    %3349 = vmatpush2.bf16.msra.mxu0 %v2455
    %3350 = vmatprep.subr.bf16.mxu0 %v2448
    %3351 = vmatpush2.bf16.msra.mxu0 %v2447
    %3352 = vmatprep.mubr.bf16.mxu0 %v706
    %3353 = vmatmul.mubr.bf16.gmra.mxu0 %v705
    %v3354 = vpop.f32.mrf.mxu0
    %v3355 = vadd.f32 %v3314, %v3354
    %v3356 = vpop.f32.mrf.mxu0
    %v3357 = vadd.f32 %v3316, %v3356
    %v3358 = vpop.f32.mrf.mxu0
    %v3359 = vpop.f32.mrf.mxu0
    %3360 = vdwg.mxu0
    %3361 = vmatprep.subr.bf16.mxu0 %v2568
    %3362 = vmatpush1.bf16.msra.mxu0 %v2567
    %3363 = vmatprep.subr.bf16.mxu0 %v2560
    %3364 = vmatpush1.bf16.msra.mxu0 %v2559
    %3365 = vmatprep.subr.bf16.mxu0 %v2552
    %3366 = vmatpush1.bf16.msra.mxu0 %v2551
    %3367 = vmatprep.subr.bf16.mxu0 %v2544
    %3368 = vmatpush1.bf16.msra.mxu0 %v2543
    %3369 = vmatprep.subr.bf16.mxu0 %v2536
    %3370 = vmatpush1.bf16.msra.mxu0 %v2535
    %3371 = vmatprep.subr.bf16.mxu0 %v2528
    %3372 = vmatpush1.bf16.msra.mxu0 %v2527
    %3373 = vmatprep.subr.bf16.mxu0 %v2520
    %3374 = vmatpush1.bf16.msra.mxu0 %v2519
    %3375 = vmatprep.subr.bf16.mxu0 %v2512
    %3376 = vmatpush1.bf16.msra.mxu0 %v2511
    %3377 = vmatprep.subr.bf16.mxu0 %v2632
    %3378 = vmatpush2.bf16.msra.mxu0 %v2631
    %3379 = vmatprep.subr.bf16.mxu0 %v2624
    %3380 = vmatpush2.bf16.msra.mxu0 %v2623
    %3381 = vmatprep.subr.bf16.mxu0 %v2616
    %3382 = vmatpush2.bf16.msra.mxu0 %v2615
    %3383 = vmatprep.subr.bf16.mxu0 %v2608
    %3384 = vmatpush2.bf16.msra.mxu0 %v2607
    %3385 = vmatprep.subr.bf16.mxu0 %v2600
    %3386 = vmatpush2.bf16.msra.mxu0 %v2599
    %3387 = vmatprep.subr.bf16.mxu0 %v2592
    %3388 = vmatpush2.bf16.msra.mxu0 %v2591
    %3389 = vmatprep.subr.bf16.mxu0 %v2584
    %3390 = vmatpush2.bf16.msra.mxu0 %v2583
    %3391 = vmatprep.subr.bf16.mxu0 %v2576
    %3392 = vmatpush2.bf16.msra.mxu0 %v2575
    %3393 = vmatprep.mubr.bf16.mxu0 %v708
    %3394 = vmatmul.mubr.bf16.gmra.mxu0 %v707
    %v3395 = vpop.f32.mrf.mxu0
    %v3396 = vadd.f32 %v3355, %v3395
    %v3397 = vpop.f32.mrf.mxu0
    %v3398 = vadd.f32 %v3357, %v3397
    %v3399 = vpop.f32.mrf.mxu0
    %v3400 = vpop.f32.mrf.mxu0
    %3401 = vdwg.mxu0
    %3402 = vmatprep.subr.bf16.mxu0 %v2696
    %3403 = vmatpush1.bf16.msra.mxu0 %v2695
    %3404 = vmatprep.subr.bf16.mxu0 %v2688
    %3405 = vmatpush1.bf16.msra.mxu0 %v2687
    %3406 = vmatprep.subr.bf16.mxu0 %v2680
    %3407 = vmatpush1.bf16.msra.mxu0 %v2679
    %3408 = vmatprep.subr.bf16.mxu0 %v2672
    %3409 = vmatpush1.bf16.msra.mxu0 %v2671
    %3410 = vmatprep.subr.bf16.mxu0 %v2664
    %3411 = vmatpush1.bf16.msra.mxu0 %v2663
    %3412 = vmatprep.subr.bf16.mxu0 %v2656
    %3413 = vmatpush1.bf16.msra.mxu0 %v2655
    %3414 = vmatprep.subr.bf16.mxu0 %v2648
    %3415 = vmatpush1.bf16.msra.mxu0 %v2647
    %3416 = vmatprep.subr.bf16.mxu0 %v2640
    %3417 = vmatpush1.bf16.msra.mxu0 %v2639
    %3418 = vmatprep.subr.bf16.mxu0 %v2760
    %3419 = vmatpush2.bf16.msra.mxu0 %v2759
    %3420 = vmatprep.subr.bf16.mxu0 %v2752
    %3421 = vmatpush2.bf16.msra.mxu0 %v2751
    %3422 = vmatprep.subr.bf16.mxu0 %v2744
    %3423 = vmatpush2.bf16.msra.mxu0 %v2743
    %3424 = vmatprep.subr.bf16.mxu0 %v2736
    %3425 = vmatpush2.bf16.msra.mxu0 %v2735
    %3426 = vmatprep.subr.bf16.mxu0 %v2728
    %3427 = vmatpush2.bf16.msra.mxu0 %v2727
    %3428 = vmatprep.subr.bf16.mxu0 %v2720
    %3429 = vmatpush2.bf16.msra.mxu0 %v2719
    %3430 = vmatprep.subr.bf16.mxu0 %v2712
    %3431 = vmatpush2.bf16.msra.mxu0 %v2711
    %3432 = vmatprep.subr.bf16.mxu0 %v2704
    %3433 = vmatpush2.bf16.msra.mxu0 %v2703
    %3434 = vmatprep.mubr.bf16.mxu0 %v710
    %3435 = vmatmul.mubr.bf16.gmra.mxu0 %v709
    %v3436 = vpop.f32.mrf.mxu0
    %v3437 = vadd.f32 %v3396, %v3436
    %v3438 = vpop.f32.mrf.mxu0
    %v3439 = vadd.f32 %v3398, %v3438
    %v3440 = vpop.f32.mrf.mxu0
    %v3441 = vpop.f32.mrf.mxu0
    %3442 = vdwg.mxu0
    %3443 = vmatprep.subr.bf16.mxu0 %v2314
    %3444 = vmatpush1.bf16.msra.mxu0 %v2313
    %3445 = vmatprep.subr.bf16.mxu0 %v2306
    %3446 = vmatpush1.bf16.msra.mxu0 %v2305
    %3447 = vmatprep.subr.bf16.mxu0 %v2298
    %3448 = vmatpush1.bf16.msra.mxu0 %v2297
    %3449 = vmatprep.subr.bf16.mxu0 %v2290
    %3450 = vmatpush1.bf16.msra.mxu0 %v2289
    %3451 = vmatprep.subr.bf16.mxu0 %v2282
    %3452 = vmatpush1.bf16.msra.mxu0 %v2281
    %3453 = vmatprep.subr.bf16.mxu0 %v2274
    %3454 = vmatpush1.bf16.msra.mxu0 %v2273
    %3455 = vmatprep.subr.bf16.mxu0 %v2266
    %3456 = vmatpush1.bf16.msra.mxu0 %v2265
    %3457 = vmatprep.subr.bf16.mxu0 %v2258
    %3458 = vmatpush1.bf16.msra.mxu0 %v2257
    %3459 = vmatprep.subr.bf16.mxu0 %v2378
    %3460 = vmatpush2.bf16.msra.mxu0 %v2377
    %3461 = vmatprep.subr.bf16.mxu0 %v2370
    %3462 = vmatpush2.bf16.msra.mxu0 %v2369
    %3463 = vmatprep.subr.bf16.mxu0 %v2362
    %3464 = vmatpush2.bf16.msra.mxu0 %v2361
    %3465 = vmatprep.subr.bf16.mxu0 %v2354
    %3466 = vmatpush2.bf16.msra.mxu0 %v2353
    %3467 = vmatprep.subr.bf16.mxu0 %v2346
    %3468 = vmatpush2.bf16.msra.mxu0 %v2345
    %3469 = vmatprep.subr.bf16.mxu0 %v2338
    %3470 = vmatpush2.bf16.msra.mxu0 %v2337
    %3471 = vmatprep.subr.bf16.mxu0 %v2330
    %3472 = vmatpush2.bf16.msra.mxu0 %v2329
    %3473 = vmatprep.subr.bf16.mxu0 %v2322
    %3474 = vmatpush2.bf16.msra.mxu0 %v2321
    %3475 = vmatprep.mubr.bf16.mxu0 %v704
    %3476 = vmatmul.mubr.bf16.gmra.mxu0 %v703
    %v3477 = vpop.f32.mrf.mxu0
    %v3478 = vadd.f32 %v662, %v3477
    %v3479 = vpop.f32.mrf.mxu0
    %v3480 = vadd.f32 %v666, %v3479
    %v3481 = vpop.f32.mrf.mxu0
    %v3482 = vpop.f32.mrf.mxu0
    %3483 = vdwg.mxu0
    %3484 = vmatprep.subr.bf16.mxu0 %v2442
    %3485 = vmatpush1.bf16.msra.mxu0 %v2441
    %3486 = vmatprep.subr.bf16.mxu0 %v2434
    %3487 = vmatpush1.bf16.msra.mxu0 %v2433
    %3488 = vmatprep.subr.bf16.mxu0 %v2426
    %3489 = vmatpush1.bf16.msra.mxu0 %v2425
    %3490 = vmatprep.subr.bf16.mxu0 %v2418
    %3491 = vmatpush1.bf16.msra.mxu0 %v2417
    %3492 = vmatprep.subr.bf16.mxu0 %v2410
    %3493 = vmatpush1.bf16.msra.mxu0 %v2409
    %3494 = vmatprep.subr.bf16.mxu0 %v2402
    %3495 = vmatpush1.bf16.msra.mxu0 %v2401
    %3496 = vmatprep.subr.bf16.mxu0 %v2394
    %3497 = vmatpush1.bf16.msra.mxu0 %v2393
    %3498 = vmatprep.subr.bf16.mxu0 %v2386
    %3499 = vmatpush1.bf16.msra.mxu0 %v2385
    %3500 = vmatprep.subr.bf16.mxu0 %v2506
    %3501 = vmatpush2.bf16.msra.mxu0 %v2505
    %3502 = vmatprep.subr.bf16.mxu0 %v2498
    %3503 = vmatpush2.bf16.msra.mxu0 %v2497
    %3504 = vmatprep.subr.bf16.mxu0 %v2490
    %3505 = vmatpush2.bf16.msra.mxu0 %v2489
    %3506 = vmatprep.subr.bf16.mxu0 %v2482
    %3507 = vmatpush2.bf16.msra.mxu0 %v2481
    %3508 = vmatprep.subr.bf16.mxu0 %v2474
    %3509 = vmatpush2.bf16.msra.mxu0 %v2473
    %3510 = vmatprep.subr.bf16.mxu0 %v2466
    %3511 = vmatpush2.bf16.msra.mxu0 %v2465
    %3512 = vmatprep.subr.bf16.mxu0 %v2458
    %3513 = vmatpush2.bf16.msra.mxu0 %v2457
    %3514 = vmatprep.subr.bf16.mxu0 %v2450
    %3515 = vmatpush2.bf16.msra.mxu0 %v2449
    %3516 = vmatprep.mubr.bf16.mxu0 %v706
    %3517 = vmatmul.mubr.bf16.gmra.mxu0 %v705
    %v3518 = vpop.f32.mrf.mxu0
    %v3519 = vadd.f32 %v3478, %v3518
    %v3520 = vpop.f32.mrf.mxu0
    %v3521 = vadd.f32 %v3480, %v3520
    %v3522 = vpop.f32.mrf.mxu0
    %v3523 = vpop.f32.mrf.mxu0
    %3524 = vdwg.mxu0
    %3525 = vmatprep.subr.bf16.mxu0 %v2570
    %3526 = vmatpush1.bf16.msra.mxu0 %v2569
    %3527 = vmatprep.subr.bf16.mxu0 %v2562
    %3528 = vmatpush1.bf16.msra.mxu0 %v2561
    %3529 = vmatprep.subr.bf16.mxu0 %v2554
    %3530 = vmatpush1.bf16.msra.mxu0 %v2553
    %3531 = vmatprep.subr.bf16.mxu0 %v2546
    %3532 = vmatpush1.bf16.msra.mxu0 %v2545
    %3533 = vmatprep.subr.bf16.mxu0 %v2538
    %3534 = vmatpush1.bf16.msra.mxu0 %v2537
    %3535 = vmatprep.subr.bf16.mxu0 %v2530
    %3536 = vmatpush1.bf16.msra.mxu0 %v2529
    %3537 = vmatprep.subr.bf16.mxu0 %v2522
    %3538 = vmatpush1.bf16.msra.mxu0 %v2521
    %3539 = vmatprep.subr.bf16.mxu0 %v2514
    %3540 = vmatpush1.bf16.msra.mxu0 %v2513
    %3541 = vmatprep.subr.bf16.mxu0 %v2634
    %3542 = vmatpush2.bf16.msra.mxu0 %v2633
    %3543 = vmatprep.subr.bf16.mxu0 %v2626
    %3544 = vmatpush2.bf16.msra.mxu0 %v2625
    %3545 = vmatprep.subr.bf16.mxu0 %v2618
    %3546 = vmatpush2.bf16.msra.mxu0 %v2617
    %3547 = vmatprep.subr.bf16.mxu0 %v2610
    %3548 = vmatpush2.bf16.msra.mxu0 %v2609
    %3549 = vmatprep.subr.bf16.mxu0 %v2602
    %3550 = vmatpush2.bf16.msra.mxu0 %v2601
    %3551 = vmatprep.subr.bf16.mxu0 %v2594
    %3552 = vmatpush2.bf16.msra.mxu0 %v2593
    %3553 = vmatprep.subr.bf16.mxu0 %v2586
    %3554 = vmatpush2.bf16.msra.mxu0 %v2585
    %3555 = vmatprep.subr.bf16.mxu0 %v2578
    %3556 = vmatpush2.bf16.msra.mxu0 %v2577
    %3557 = vmatprep.mubr.bf16.mxu0 %v708
    %3558 = vmatmul.mubr.bf16.gmra.mxu0 %v707
    %v3559 = vpop.f32.mrf.mxu0
    %v3560 = vadd.f32 %v3519, %v3559
    %v3561 = vpop.f32.mrf.mxu0
    %v3562 = vadd.f32 %v3521, %v3561
    %v3563 = vpop.f32.mrf.mxu0
    %v3564 = vpop.f32.mrf.mxu0
    %3565 = vdwg.mxu0
    %3566 = vmatprep.subr.bf16.mxu0 %v2698
    %3567 = vmatpush1.bf16.msra.mxu0 %v2697
    %3568 = vmatprep.subr.bf16.mxu0 %v2690
    %3569 = vmatpush1.bf16.msra.mxu0 %v2689
    %3570 = vmatprep.subr.bf16.mxu0 %v2682
    %3571 = vmatpush1.bf16.msra.mxu0 %v2681
    %3572 = vmatprep.subr.bf16.mxu0 %v2674
    %3573 = vmatpush1.bf16.msra.mxu0 %v2673
    %3574 = vmatprep.subr.bf16.mxu0 %v2666
    %3575 = vmatpush1.bf16.msra.mxu0 %v2665
    %3576 = vmatprep.subr.bf16.mxu0 %v2658
    %3577 = vmatpush1.bf16.msra.mxu0 %v2657
    %3578 = vmatprep.subr.bf16.mxu0 %v2650
    %3579 = vmatpush1.bf16.msra.mxu0 %v2649
    %3580 = vmatprep.subr.bf16.mxu0 %v2642
    %3581 = vmatpush1.bf16.msra.mxu0 %v2641
    %3582 = vmatprep.subr.bf16.mxu0 %v2762
    %3583 = vmatpush2.bf16.msra.mxu0 %v2761
    %3584 = vmatprep.subr.bf16.mxu0 %v2754
    %3585 = vmatpush2.bf16.msra.mxu0 %v2753
    %3586 = vmatprep.subr.bf16.mxu0 %v2746
    %3587 = vmatpush2.bf16.msra.mxu0 %v2745
    %3588 = vmatprep.subr.bf16.mxu0 %v2738
    %3589 = vmatpush2.bf16.msra.mxu0 %v2737
    %3590 = vmatprep.subr.bf16.mxu0 %v2730
    %3591 = vmatpush2.bf16.msra.mxu0 %v2729
    %3592 = vmatprep.subr.bf16.mxu0 %v2722
    %3593 = vmatpush2.bf16.msra.mxu0 %v2721
    %3594 = vmatprep.subr.bf16.mxu0 %v2714
    %3595 = vmatpush2.bf16.msra.mxu0 %v2713
    %3596 = vmatprep.subr.bf16.mxu0 %v2706
    %3597 = vmatpush2.bf16.msra.mxu0 %v2705
    %3598 = vmatprep.mubr.bf16.mxu0 %v710
    %3599 = vmatmul.mubr.bf16.gmra.mxu0 %v709
    %v3600 = vpop.f32.mrf.mxu0
    %v3601 = vadd.f32 %v3560, %v3600
    %v3602 = vpop.f32.mrf.mxu0
    %v3603 = vadd.f32 %v3562, %v3602
    %v3604 = vpop.f32.mrf.mxu0
    %v3605 = vpop.f32.mrf.mxu0
    %3606 = vdwg.mxu0
    %3607 = vmatprep.subr.bf16.mxu0 %v2316
    %3608 = vmatpush1.bf16.msra.mxu0 %v2315
    %3609 = vmatprep.subr.bf16.mxu0 %v2308
    %3610 = vmatpush1.bf16.msra.mxu0 %v2307
    %3611 = vmatprep.subr.bf16.mxu0 %v2300
    %3612 = vmatpush1.bf16.msra.mxu0 %v2299
    %3613 = vmatprep.subr.bf16.mxu0 %v2292
    %3614 = vmatpush1.bf16.msra.mxu0 %v2291
    %3615 = vmatprep.subr.bf16.mxu0 %v2284
    %3616 = vmatpush1.bf16.msra.mxu0 %v2283
    %3617 = vmatprep.subr.bf16.mxu0 %v2276
    %3618 = vmatpush1.bf16.msra.mxu0 %v2275
    %3619 = vmatprep.subr.bf16.mxu0 %v2268
    %3620 = vmatpush1.bf16.msra.mxu0 %v2267
    %3621 = vmatprep.subr.bf16.mxu0 %v2260
    %3622 = vmatpush1.bf16.msra.mxu0 %v2259
    %3623 = vmatprep.subr.bf16.mxu0 %v2380
    %3624 = vmatpush2.bf16.msra.mxu0 %v2379
    %3625 = vmatprep.subr.bf16.mxu0 %v2372
    %3626 = vmatpush2.bf16.msra.mxu0 %v2371
    %3627 = vmatprep.subr.bf16.mxu0 %v2364
    %3628 = vmatpush2.bf16.msra.mxu0 %v2363
    %3629 = vmatprep.subr.bf16.mxu0 %v2356
    %3630 = vmatpush2.bf16.msra.mxu0 %v2355
    %3631 = vmatprep.subr.bf16.mxu0 %v2348
    %3632 = vmatpush2.bf16.msra.mxu0 %v2347
    %3633 = vmatprep.subr.bf16.mxu0 %v2340
    %3634 = vmatpush2.bf16.msra.mxu0 %v2339
    %3635 = vmatprep.subr.bf16.mxu0 %v2332
    %3636 = vmatpush2.bf16.msra.mxu0 %v2331
    %3637 = vmatprep.subr.bf16.mxu0 %v2324
    %3638 = vmatpush2.bf16.msra.mxu0 %v2323
    %3639 = vmatprep.mubr.bf16.mxu0 %v704
    %3640 = vmatmul.mubr.bf16.gmra.mxu0 %v703
    %v3641 = vpop.f32.mrf.mxu0
    %v3642 = vadd.f32 %v670, %v3641
    %v3643 = vpop.f32.mrf.mxu0
    %v3644 = vadd.f32 %v674, %v3643
    %v3645 = vpop.f32.mrf.mxu0
    %v3646 = vpop.f32.mrf.mxu0
    %3647 = vdwg.mxu0
    %3648 = vmatprep.subr.bf16.mxu0 %v2444
    %3649 = vmatpush1.bf16.msra.mxu0 %v2443
    %3650 = vmatprep.subr.bf16.mxu0 %v2436
    %3651 = vmatpush1.bf16.msra.mxu0 %v2435
    %3652 = vmatprep.subr.bf16.mxu0 %v2428
    %3653 = vmatpush1.bf16.msra.mxu0 %v2427
    %3654 = vmatprep.subr.bf16.mxu0 %v2420
    %3655 = vmatpush1.bf16.msra.mxu0 %v2419
    %3656 = vmatprep.subr.bf16.mxu0 %v2412
    %3657 = vmatpush1.bf16.msra.mxu0 %v2411
    %3658 = vmatprep.subr.bf16.mxu0 %v2404
    %3659 = vmatpush1.bf16.msra.mxu0 %v2403
    %3660 = vmatprep.subr.bf16.mxu0 %v2396
    %3661 = vmatpush1.bf16.msra.mxu0 %v2395
    %3662 = vmatprep.subr.bf16.mxu0 %v2388
    %3663 = vmatpush1.bf16.msra.mxu0 %v2387
    %3664 = vmatprep.subr.bf16.mxu0 %v2508
    %3665 = vmatpush2.bf16.msra.mxu0 %v2507
    %3666 = vmatprep.subr.bf16.mxu0 %v2500
    %3667 = vmatpush2.bf16.msra.mxu0 %v2499
    %3668 = vmatprep.subr.bf16.mxu0 %v2492
    %3669 = vmatpush2.bf16.msra.mxu0 %v2491
    %3670 = vmatprep.subr.bf16.mxu0 %v2484
    %3671 = vmatpush2.bf16.msra.mxu0 %v2483
    %3672 = vmatprep.subr.bf16.mxu0 %v2476
    %3673 = vmatpush2.bf16.msra.mxu0 %v2475
    %3674 = vmatprep.subr.bf16.mxu0 %v2468
    %3675 = vmatpush2.bf16.msra.mxu0 %v2467
    %3676 = vmatprep.subr.bf16.mxu0 %v2460
    %3677 = vmatpush2.bf16.msra.mxu0 %v2459
    %3678 = vmatprep.subr.bf16.mxu0 %v2452
    %3679 = vmatpush2.bf16.msra.mxu0 %v2451
    %3680 = vmatprep.mubr.bf16.mxu0 %v706
    %3681 = vmatmul.mubr.bf16.gmra.mxu0 %v705
    %v3682 = vpop.f32.mrf.mxu0
    %v3683 = vadd.f32 %v3642, %v3682
    %v3684 = vpop.f32.mrf.mxu0
    %v3685 = vadd.f32 %v3644, %v3684
    %v3686 = vpop.f32.mrf.mxu0
    %v3687 = vpop.f32.mrf.mxu0
    %3688 = vdwg.mxu0
    %3689 = vmatprep.subr.bf16.mxu0 %v2572
    %3690 = vmatpush1.bf16.msra.mxu0 %v2571
    %3691 = vmatprep.subr.bf16.mxu0 %v2564
    %3692 = vmatpush1.bf16.msra.mxu0 %v2563
    %3693 = vmatprep.subr.bf16.mxu0 %v2556
    %3694 = vmatpush1.bf16.msra.mxu0 %v2555
    %3695 = vmatprep.subr.bf16.mxu0 %v2548
    %3696 = vmatpush1.bf16.msra.mxu0 %v2547
    %3697 = vmatprep.subr.bf16.mxu0 %v2540
    %3698 = vmatpush1.bf16.msra.mxu0 %v2539
    %3699 = vmatprep.subr.bf16.mxu0 %v2532
    %3700 = vmatpush1.bf16.msra.mxu0 %v2531
    %3701 = vmatprep.subr.bf16.mxu0 %v2524
    %3702 = vmatpush1.bf16.msra.mxu0 %v2523
    %3703 = vmatprep.subr.bf16.mxu0 %v2516
    %3704 = vmatpush1.bf16.msra.mxu0 %v2515
    %3705 = vmatprep.subr.bf16.mxu0 %v2636
    %3706 = vmatpush2.bf16.msra.mxu0 %v2635
    %3707 = vmatprep.subr.bf16.mxu0 %v2628
    %3708 = vmatpush2.bf16.msra.mxu0 %v2627
    %3709 = vmatprep.subr.bf16.mxu0 %v2620
    %3710 = vmatpush2.bf16.msra.mxu0 %v2619
    %3711 = vmatprep.subr.bf16.mxu0 %v2612
    %3712 = vmatpush2.bf16.msra.mxu0 %v2611
    %3713 = vmatprep.subr.bf16.mxu0 %v2604
    %3714 = vmatpush2.bf16.msra.mxu0 %v2603
    %3715 = vmatprep.subr.bf16.mxu0 %v2596
    %3716 = vmatpush2.bf16.msra.mxu0 %v2595
    %3717 = vmatprep.subr.bf16.mxu0 %v2588
    %3718 = vmatpush2.bf16.msra.mxu0 %v2587
    %3719 = vmatprep.subr.bf16.mxu0 %v2580
    %3720 = vmatpush2.bf16.msra.mxu0 %v2579
    %3721 = vmatprep.mubr.bf16.mxu0 %v708
    %3722 = vmatmul.mubr.bf16.gmra.mxu0 %v707
    %v3723 = vpop.f32.mrf.mxu0
    %v3724 = vadd.f32 %v3683, %v3723
    %v3725 = vpop.f32.mrf.mxu0
    %v3726 = vadd.f32 %v3685, %v3725
    %v3727 = vpop.f32.mrf.mxu0
    %v3728 = vpop.f32.mrf.mxu0
    %3729 = vdwg.mxu0
    %3730 = vmatprep.subr.bf16.mxu0 %v2700
    %3731 = vmatpush1.bf16.msra.mxu0 %v2699
    %3732 = vmatprep.subr.bf16.mxu0 %v2692
    %3733 = vmatpush1.bf16.msra.mxu0 %v2691
    %3734 = vmatprep.subr.bf16.mxu0 %v2684
    %3735 = vmatpush1.bf16.msra.mxu0 %v2683
    %3736 = vmatprep.subr.bf16.mxu0 %v2676
    %3737 = vmatpush1.bf16.msra.mxu0 %v2675
    %3738 = vmatprep.subr.bf16.mxu0 %v2668
    %3739 = vmatpush1.bf16.msra.mxu0 %v2667
    %3740 = vmatprep.subr.bf16.mxu0 %v2660
    %3741 = vmatpush1.bf16.msra.mxu0 %v2659
    %3742 = vmatprep.subr.bf16.mxu0 %v2652
    %3743 = vmatpush1.bf16.msra.mxu0 %v2651
    %3744 = vmatprep.subr.bf16.mxu0 %v2644
    %3745 = vmatpush1.bf16.msra.mxu0 %v2643
    %3746 = vmatprep.subr.bf16.mxu0 %v2764
    %3747 = vmatpush2.bf16.msra.mxu0 %v2763
    %3748 = vmatprep.subr.bf16.mxu0 %v2756
    %3749 = vmatpush2.bf16.msra.mxu0 %v2755
    %3750 = vmatprep.subr.bf16.mxu0 %v2748
    %3751 = vmatpush2.bf16.msra.mxu0 %v2747
    %3752 = vmatprep.subr.bf16.mxu0 %v2740
    %3753 = vmatpush2.bf16.msra.mxu0 %v2739
    %3754 = vmatprep.subr.bf16.mxu0 %v2732
    %3755 = vmatpush2.bf16.msra.mxu0 %v2731
    %3756 = vmatprep.subr.bf16.mxu0 %v2724
    %3757 = vmatpush2.bf16.msra.mxu0 %v2723
    %3758 = vmatprep.subr.bf16.mxu0 %v2716
    %3759 = vmatpush2.bf16.msra.mxu0 %v2715
    %3760 = vmatprep.subr.bf16.mxu0 %v2708
    %3761 = vmatpush2.bf16.msra.mxu0 %v2707
    %3762 = vmatprep.mubr.bf16.mxu0 %v710
    %3763 = vmatmul.mubr.bf16.gmra.mxu0 %v709
    %v3764 = vpop.f32.mrf.mxu0
    %v3765 = vadd.f32 %v3724, %v3764
    %v3766 = vpop.f32.mrf.mxu0
    %v3767 = vadd.f32 %v3726, %v3766
    %v3768 = vpop.f32.mrf.mxu0
    %v3769 = vpop.f32.mrf.mxu0
    %3770 = vdwg.mxu0
    %3771 = vmatprep.subr.bf16.mxu0 %v2318
    %3772 = vmatpush1.bf16.msra.mxu0 %v2317
    %3773 = vmatprep.subr.bf16.mxu0 %v2310
    %3774 = vmatpush1.bf16.msra.mxu0 %v2309
    %3775 = vmatprep.subr.bf16.mxu0 %v2302
    %3776 = vmatpush1.bf16.msra.mxu0 %v2301
    %3777 = vmatprep.subr.bf16.mxu0 %v2294
    %3778 = vmatpush1.bf16.msra.mxu0 %v2293
    %3779 = vmatprep.subr.bf16.mxu0 %v2286
    %3780 = vmatpush1.bf16.msra.mxu0 %v2285
    %3781 = vmatprep.subr.bf16.mxu0 %v2278
    %3782 = vmatpush1.bf16.msra.mxu0 %v2277
    %3783 = vmatprep.subr.bf16.mxu0 %v2270
    %3784 = vmatpush1.bf16.msra.mxu0 %v2269
    %3785 = vmatprep.subr.bf16.mxu0 %v2262
    %3786 = vmatpush1.bf16.msra.mxu0 %v2261
    %3787 = vmatprep.subr.bf16.mxu0 %v2382
    %3788 = vmatpush2.bf16.msra.mxu0 %v2381
    %3789 = vmatprep.subr.bf16.mxu0 %v2374
    %3790 = vmatpush2.bf16.msra.mxu0 %v2373
    %3791 = vmatprep.subr.bf16.mxu0 %v2366
    %3792 = vmatpush2.bf16.msra.mxu0 %v2365
    %3793 = vmatprep.subr.bf16.mxu0 %v2358
    %3794 = vmatpush2.bf16.msra.mxu0 %v2357
    %3795 = vmatprep.subr.bf16.mxu0 %v2350
    %3796 = vmatpush2.bf16.msra.mxu0 %v2349
    %3797 = vmatprep.subr.bf16.mxu0 %v2342
    %3798 = vmatpush2.bf16.msra.mxu0 %v2341
    %3799 = vmatprep.subr.bf16.mxu0 %v2334
    %3800 = vmatpush2.bf16.msra.mxu0 %v2333
    %3801 = vmatprep.subr.bf16.mxu0 %v2326
    %3802 = vmatpush2.bf16.msra.mxu0 %v2325
    %3803 = vmatprep.mubr.bf16.mxu0 %v704
    %3804 = vmatmul.mubr.bf16.gmra.mxu0 %v703
    %v3805 = vpop.f32.mrf.mxu0
    %v3806 = vadd.f32 %v678, %v3805
    %v3807 = vpop.f32.mrf.mxu0
    %v3808 = vadd.f32 %v682, %v3807
    %v3809 = vpop.f32.mrf.mxu0
    %v3810 = vpop.f32.mrf.mxu0
    %3811 = vdwg.mxu0
    %3812 = vmatprep.subr.bf16.mxu0 %v2446
    %3813 = vmatpush1.bf16.msra.mxu0 %v2445
    %3814 = vmatprep.subr.bf16.mxu0 %v2438
    %3815 = vmatpush1.bf16.msra.mxu0 %v2437
    %3816 = vmatprep.subr.bf16.mxu0 %v2430
    %3817 = vmatpush1.bf16.msra.mxu0 %v2429
    %3818 = vmatprep.subr.bf16.mxu0 %v2422
    %3819 = vmatpush1.bf16.msra.mxu0 %v2421
    %3820 = vmatprep.subr.bf16.mxu0 %v2414
    %3821 = vmatpush1.bf16.msra.mxu0 %v2413
    %3822 = vmatprep.subr.bf16.mxu0 %v2406
    %3823 = vmatpush1.bf16.msra.mxu0 %v2405
    %3824 = vmatprep.subr.bf16.mxu0 %v2398
    %3825 = vmatpush1.bf16.msra.mxu0 %v2397
    %3826 = vmatprep.subr.bf16.mxu0 %v2390
    %3827 = vmatpush1.bf16.msra.mxu0 %v2389
    %3828 = vmatprep.subr.bf16.mxu0 %v2510
    %3829 = vmatpush2.bf16.msra.mxu0 %v2509
    %3830 = vmatprep.subr.bf16.mxu0 %v2502
    %3831 = vmatpush2.bf16.msra.mxu0 %v2501
    %3832 = vmatprep.subr.bf16.mxu0 %v2494
    %3833 = vmatpush2.bf16.msra.mxu0 %v2493
    %3834 = vmatprep.subr.bf16.mxu0 %v2486
    %3835 = vmatpush2.bf16.msra.mxu0 %v2485
    %3836 = vmatprep.subr.bf16.mxu0 %v2478
    %3837 = vmatpush2.bf16.msra.mxu0 %v2477
    %3838 = vmatprep.subr.bf16.mxu0 %v2470
    %3839 = vmatpush2.bf16.msra.mxu0 %v2469
    %3840 = vmatprep.subr.bf16.mxu0 %v2462
    %3841 = vmatpush2.bf16.msra.mxu0 %v2461
    %3842 = vmatprep.subr.bf16.mxu0 %v2454
    %3843 = vmatpush2.bf16.msra.mxu0 %v2453
    %3844 = vmatprep.mubr.bf16.mxu0 %v706
    %3845 = vmatmul.mubr.bf16.gmra.mxu0 %v705
    %v3846 = vpop.f32.mrf.mxu0
    %v3847 = vadd.f32 %v3806, %v3846
    %v3848 = vpop.f32.mrf.mxu0
    %v3849 = vadd.f32 %v3808, %v3848
    %v3850 = vpop.f32.mrf.mxu0
    %v3851 = vpop.f32.mrf.mxu0
    %3852 = vdwg.mxu0
    %3853 = vmatprep.subr.bf16.mxu0 %v2574
    %3854 = vmatpush1.bf16.msra.mxu0 %v2573
    %3855 = vmatprep.subr.bf16.mxu0 %v2566
    %3856 = vmatpush1.bf16.msra.mxu0 %v2565
    %3857 = vmatprep.subr.bf16.mxu0 %v2558
    %3858 = vmatpush1.bf16.msra.mxu0 %v2557
    %3859 = vmatprep.subr.bf16.mxu0 %v2550
    %3860 = vmatpush1.bf16.msra.mxu0 %v2549
    %3861 = vmatprep.subr.bf16.mxu0 %v2542
    %3862 = vmatpush1.bf16.msra.mxu0 %v2541
    %3863 = vmatprep.subr.bf16.mxu0 %v2534
    %3864 = vmatpush1.bf16.msra.mxu0 %v2533
    %3865 = vmatprep.subr.bf16.mxu0 %v2526
    %3866 = vmatpush1.bf16.msra.mxu0 %v2525
    %3867 = vmatprep.subr.bf16.mxu0 %v2518
    %3868 = vmatpush1.bf16.msra.mxu0 %v2517
    %3869 = vmatprep.subr.bf16.mxu0 %v2638
    %3870 = vmatpush2.bf16.msra.mxu0 %v2637
    %3871 = vmatprep.subr.bf16.mxu0 %v2630
    %3872 = vmatpush2.bf16.msra.mxu0 %v2629
    %3873 = vmatprep.subr.bf16.mxu0 %v2622
    %3874 = vmatpush2.bf16.msra.mxu0 %v2621
    %3875 = vmatprep.subr.bf16.mxu0 %v2614
    %3876 = vmatpush2.bf16.msra.mxu0 %v2613
    %3877 = vmatprep.subr.bf16.mxu0 %v2606
    %3878 = vmatpush2.bf16.msra.mxu0 %v2605
    %3879 = vmatprep.subr.bf16.mxu0 %v2598
    %3880 = vmatpush2.bf16.msra.mxu0 %v2597
    %3881 = vmatprep.subr.bf16.mxu0 %v2590
    %3882 = vmatpush2.bf16.msra.mxu0 %v2589
    %3883 = vmatprep.subr.bf16.mxu0 %v2582
    %3884 = vmatpush2.bf16.msra.mxu0 %v2581
    %3885 = vmatprep.mubr.bf16.mxu0 %v708
    %3886 = vmatmul.mubr.bf16.gmra.mxu0 %v707
    %v3887 = vpop.f32.mrf.mxu0
    %v3888 = vadd.f32 %v3847, %v3887
    %v3889 = vpop.f32.mrf.mxu0
    %v3890 = vadd.f32 %v3849, %v3889
    %v3891 = vpop.f32.mrf.mxu0
    %v3892 = vpop.f32.mrf.mxu0
    %3893 = vdwg.mxu0
    %3894 = vmatprep.subr.bf16.mxu0 %v2702
    %3895 = vmatpush1.bf16.msra.mxu0 %v2701
    %3896 = vmatprep.subr.bf16.mxu0 %v2694
    %3897 = vmatpush1.bf16.msra.mxu0 %v2693
    %3898 = vmatprep.subr.bf16.mxu0 %v2686
    %3899 = vmatpush1.bf16.msra.mxu0 %v2685
    %3900 = vmatprep.subr.bf16.mxu0 %v2678
    %3901 = vmatpush1.bf16.msra.mxu0 %v2677
    %3902 = vmatprep.subr.bf16.mxu0 %v2670
    %3903 = vmatpush1.bf16.msra.mxu0 %v2669
    %3904 = vmatprep.subr.bf16.mxu0 %v2662
    %3905 = vmatpush1.bf16.msra.mxu0 %v2661
    %3906 = vmatprep.subr.bf16.mxu0 %v2654
    %3907 = vmatpush1.bf16.msra.mxu0 %v2653
    %3908 = vmatprep.subr.bf16.mxu0 %v2646
    %3909 = vmatpush1.bf16.msra.mxu0 %v2645
    %3910 = vmatprep.subr.bf16.mxu0 %v2766
    %3911 = vmatpush2.bf16.msra.mxu0 %v2765
    %3912 = vmatprep.subr.bf16.mxu0 %v2758
    %3913 = vmatpush2.bf16.msra.mxu0 %v2757
    %3914 = vmatprep.subr.bf16.mxu0 %v2750
    %3915 = vmatpush2.bf16.msra.mxu0 %v2749
    %3916 = vmatprep.subr.bf16.mxu0 %v2742
    %3917 = vmatpush2.bf16.msra.mxu0 %v2741
    %3918 = vmatprep.subr.bf16.mxu0 %v2734
    %3919 = vmatpush2.bf16.msra.mxu0 %v2733
    %3920 = vmatprep.subr.bf16.mxu0 %v2726
    %3921 = vmatpush2.bf16.msra.mxu0 %v2725
    %3922 = vmatprep.subr.bf16.mxu0 %v2718
    %3923 = vmatpush2.bf16.msra.mxu0 %v2717
    %3924 = vmatprep.subr.bf16.mxu0 %v2710
    %3925 = vmatpush2.bf16.msra.mxu0 %v2709
    %3926 = vmatprep.mubr.bf16.mxu0 %v710
    %3927 = vmatmul.mubr.bf16.gmra.mxu0 %v709
    %v3928 = vpop.f32.mrf.mxu0
    %v3929 = vadd.f32 %v3888, %v3928
    %v3930 = vpop.f32.mrf.mxu0
    %v3931 = vadd.f32 %v3890, %v3930
    %v3932 = vpop.f32.mrf.mxu0
    %v3933 = vpop.f32.mrf.mxu0
    %3934 = vdwg.mxu0
    %vm3935 = vcmp.gt.f32.partialorder %v3437, 0.0
    %vm3936 = vcmp.gt.f32.partialorder %v3439, 0.0
    %vm3937 = vcmp.gt.f32.partialorder %v3601, 0.0
    %vm3938 = vcmp.gt.f32.partialorder %v3603, 0.0
    %vm3939 = vcmp.gt.f32.partialorder %v3765, 0.0
    %vm3940 = vcmp.gt.f32.partialorder %v3767, 0.0
    %vm3941 = vcmp.gt.f32.partialorder %v3929, 0.0
    %vm3942 = vcmp.gt.f32.partialorder %v3931, 0.0
    %v3943 = vmul.f32 %v3437, 0.2
    %v3944 = vmul.f32 %v3439, 0.2
    %v3945 = vmul.f32 %v3601, 0.2
    %v3946 = vmul.f32 %v3603, 0.2
    %v3947 = vmul.f32 %v3765, 0.2
    %v3948 = vmul.f32 %v3767, 0.2
    %v3949 = vmul.f32 %v3929, 0.2
    %v3950 = vmul.f32 %v3931, 0.2
    %v3951 = vsel %vm3935, %v3437, %v3943
    %v3952 = vsel %vm3936, %v3439, %v3944
    %v3953 = vsel %vm3937, %v3601, %v3945
    %v3954 = vsel %vm3938, %v3603, %v3946
    %v3955 = vsel %vm3939, %v3765, %v3947
    %v3956 = vsel %vm3940, %v3767, %v3948
    %v3957 = vsel %vm3941, %v3929, %v3949
    %v3958 = vsel %vm3942, %v3931, %v3950
    %v3959 = vpack.c.bf16 %v3951, %v3951
    %v3960 = vpack.c.bf16 %v3952, %v3952
    %v3961 = vpack.c.bf16 %v3953, %v3953
    %v3962 = vpack.c.bf16 %v3954, %v3954
    %v3963 = vpack.c.bf16 %v3955, %v3955
    %v3964 = vpack.c.bf16 %v3956, %v3956
    %v3965 = vpack.c.bf16 %v3957, %v3957
    %v3966 = vpack.c.bf16 %v3958, %v3958
    %v3967 = vld [vmem:[#allocation8] sm:$0xff]
    %v3968 = vld [vmem:[#allocation8 + $0x8] sm:$0xff]
    %v3969 = vld [vmem:[#allocation8 + $0x10] sm:$0xff]
    %v3970 = vld [vmem:[#allocation8 + $0x18] sm:$0xff]
    %v3971 = vld [vmem:[#allocation8 + $0x20] sm:$0xff]
    %v3972 = vld [vmem:[#allocation8 + $0x28] sm:$0xff]
    %v3973 = vld [vmem:[#allocation8 + $0x30] sm:$0xff]
    %v3974 = vld [vmem:[#allocation8 + $0x38] sm:$0xff]
    %v3975 = vld [vmem:[#allocation8 + $0x40] sm:$0xff]
    %v3976 = vld [vmem:[#allocation8 + $0x48] sm:$0xff]
    %v3977 = vld [vmem:[#allocation8 + $0x50] sm:$0xff]
    %v3978 = vld [vmem:[#allocation8 + $0x58] sm:$0xff]
    %v3979 = vld [vmem:[#allocation8 + $0x60] sm:$0xff]
    %v3980 = vld [vmem:[#allocation8 + $0x68] sm:$0xff]
    %v3981 = vld [vmem:[#allocation8 + $0x70] sm:$0xff]
    %v3982 = vld [vmem:[#allocation8 + $0x78] sm:$0xff]
    %v3983 = vld [vmem:[#allocation8 + $0x80] sm:$0xff]
    %v3984 = vld [vmem:[#allocation8 + $0x88] sm:$0xff]
    %v3985 = vld [vmem:[#allocation8 + $0x90] sm:$0xff]
    %v3986 = vld [vmem:[#allocation8 + $0x98] sm:$0xff]
    %v3987 = vld [vmem:[#allocation8 + $0xa0] sm:$0xff]
    %v3988 = vld [vmem:[#allocation8 + $0xa8] sm:$0xff]
    %v3989 = vld [vmem:[#allocation8 + $0xb0] sm:$0xff]
    %v3990 = vld [vmem:[#allocation8 + $0xb8] sm:$0xff]
    %v3991 = vld [vmem:[#allocation8 + $0xc0] sm:$0xff]
    %v3992 = vld [vmem:[#allocation8 + $0xc8] sm:$0xff]
    %v3993 = vld [vmem:[#allocation8 + $0xd0] sm:$0xff]
    %v3994 = vld [vmem:[#allocation8 + $0xd8] sm:$0xff]
    %v3995 = vld [vmem:[#allocation8 + $0xe0] sm:$0xff]
    %v3996 = vld [vmem:[#allocation8 + $0xe8] sm:$0xff]
    %v3997 = vld [vmem:[#allocation8 + $0xf0] sm:$0xff]
    %v3998 = vld [vmem:[#allocation8 + $0xf8] sm:$0xff]
    %v3999 = vld [vmem:[#allocation8 + $0x100] sm:$0xff]
    %v4000 = vld [vmem:[#allocation8 + $0x108] sm:$0xff]
    %v4001 = vld [vmem:[#allocation8 + $0x110] sm:$0xff]
    %v4002 = vld [vmem:[#allocation8 + $0x118] sm:$0xff]
    %v4003 = vld [vmem:[#allocation8 + $0x120] sm:$0xff]
    %v4004 = vld [vmem:[#allocation8 + $0x128] sm:$0xff]
    %v4005 = vld [vmem:[#allocation8 + $0x130] sm:$0xff]
    %v4006 = vld [vmem:[#allocation8 + $0x138] sm:$0xff]
    %v4007 = vld [vmem:[#allocation8 + $0x140] sm:$0xff]
    %v4008 = vld [vmem:[#allocation8 + $0x148] sm:$0xff]
    %v4009 = vld [vmem:[#allocation8 + $0x150] sm:$0xff]
    %v4010 = vld [vmem:[#allocation8 + $0x158] sm:$0xff]
    %v4011 = vld [vmem:[#allocation8 + $0x160] sm:$0xff]
    %v4012 = vld [vmem:[#allocation8 + $0x168] sm:$0xff]
    %v4013 = vld [vmem:[#allocation8 + $0x170] sm:$0xff]
    %v4014 = vld [vmem:[#allocation8 + $0x178] sm:$0xff]
    %v4015 = vld [vmem:[#allocation8 + $0x180] sm:$0xff]
    %v4016 = vld [vmem:[#allocation8 + $0x188] sm:$0xff]
    %v4017 = vld [vmem:[#allocation8 + $0x190] sm:$0xff]
    %v4018 = vld [vmem:[#allocation8 + $0x198] sm:$0xff]
    %v4019 = vld [vmem:[#allocation8 + $0x1a0] sm:$0xff]
    %v4020 = vld [vmem:[#allocation8 + $0x1a8] sm:$0xff]
    %v4021 = vld [vmem:[#allocation8 + $0x1b0] sm:$0xff]
    %v4022 = vld [vmem:[#allocation8 + $0x1b8] sm:$0xff]
    %v4023 = vld [vmem:[#allocation8 + $0x1c0] sm:$0xff]
    %v4024 = vld [vmem:[#allocation8 + $0x1c8] sm:$0xff]
    %v4025 = vld [vmem:[#allocation8 + $0x1d0] sm:$0xff]
    %v4026 = vld [vmem:[#allocation8 + $0x1d8] sm:$0xff]
    %v4027 = vld [vmem:[#allocation8 + $0x1e0] sm:$0xff]
    %v4028 = vld [vmem:[#allocation8 + $0x1e8] sm:$0xff]
    %v4029 = vld [vmem:[#allocation8 + $0x1f0] sm:$0xff]
    %v4030 = vld [vmem:[#allocation8 + $0x1f8] sm:$0xff]
    %v4031 = vld [vmem:[#allocation8 + $0x200] sm:$0xff]
    %v4032 = vld [vmem:[#allocation8 + $0x208] sm:$0xff]
    %v4033 = vld [vmem:[#allocation8 + $0x210] sm:$0xff]
    %v4034 = vld [vmem:[#allocation8 + $0x218] sm:$0xff]
    %v4035 = vld [vmem:[#allocation8 + $0x220] sm:$0xff]
    %v4036 = vld [vmem:[#allocation8 + $0x228] sm:$0xff]
    %v4037 = vld [vmem:[#allocation8 + $0x230] sm:$0xff]
    %v4038 = vld [vmem:[#allocation8 + $0x238] sm:$0xff]
    %v4039 = vld [vmem:[#allocation8 + $0x240] sm:$0xff]
    %v4040 = vld [vmem:[#allocation8 + $0x248] sm:$0xff]
    %v4041 = vld [vmem:[#allocation8 + $0x250] sm:$0xff]
    %v4042 = vld [vmem:[#allocation8 + $0x258] sm:$0xff]
    %v4043 = vld [vmem:[#allocation8 + $0x260] sm:$0xff]
    %v4044 = vld [vmem:[#allocation8 + $0x268] sm:$0xff]
    %v4045 = vld [vmem:[#allocation8 + $0x270] sm:$0xff]
    %v4046 = vld [vmem:[#allocation8 + $0x278] sm:$0xff]
    %v4047 = vld [vmem:[#allocation8 + $0x280] sm:$0xff]
    %v4048 = vld [vmem:[#allocation8 + $0x288] sm:$0xff]
    %v4049 = vld [vmem:[#allocation8 + $0x290] sm:$0xff]
    %v4050 = vld [vmem:[#allocation8 + $0x298] sm:$0xff]
    %v4051 = vld [vmem:[#allocation8 + $0x2a0] sm:$0xff]
    %v4052 = vld [vmem:[#allocation8 + $0x2a8] sm:$0xff]
    %v4053 = vld [vmem:[#allocation8 + $0x2b0] sm:$0xff]
    %v4054 = vld [vmem:[#allocation8 + $0x2b8] sm:$0xff]
    %v4055 = vld [vmem:[#allocation8 + $0x2c0] sm:$0xff]
    %v4056 = vld [vmem:[#allocation8 + $0x2c8] sm:$0xff]
    %v4057 = vld [vmem:[#allocation8 + $0x2d0] sm:$0xff]
    %v4058 = vld [vmem:[#allocation8 + $0x2d8] sm:$0xff]
    %v4059 = vld [vmem:[#allocation8 + $0x2e0] sm:$0xff]
    %v4060 = vld [vmem:[#allocation8 + $0x2e8] sm:$0xff]
    %v4061 = vld [vmem:[#allocation8 + $0x2f0] sm:$0xff]
    %v4062 = vld [vmem:[#allocation8 + $0x2f8] sm:$0xff]
    %v4063 = vld [vmem:[#allocation8 + $0x300] sm:$0xff]
    %v4064 = vld [vmem:[#allocation8 + $0x308] sm:$0xff]
    %v4065 = vld [vmem:[#allocation8 + $0x310] sm:$0xff]
    %v4066 = vld [vmem:[#allocation8 + $0x318] sm:$0xff]
    %v4067 = vld [vmem:[#allocation8 + $0x320] sm:$0xff]
    %v4068 = vld [vmem:[#allocation8 + $0x328] sm:$0xff]
    %v4069 = vld [vmem:[#allocation8 + $0x330] sm:$0xff]
    %v4070 = vld [vmem:[#allocation8 + $0x338] sm:$0xff]
    %v4071 = vld [vmem:[#allocation8 + $0x340] sm:$0xff]
    %v4072 = vld [vmem:[#allocation8 + $0x348] sm:$0xff]
    %v4073 = vld [vmem:[#allocation8 + $0x350] sm:$0xff]
    %v4074 = vld [vmem:[#allocation8 + $0x358] sm:$0xff]
    %v4075 = vld [vmem:[#allocation8 + $0x360] sm:$0xff]
    %v4076 = vld [vmem:[#allocation8 + $0x368] sm:$0xff]
    %v4077 = vld [vmem:[#allocation8 + $0x370] sm:$0xff]
    %v4078 = vld [vmem:[#allocation8 + $0x378] sm:$0xff]
    %v4079 = vld [vmem:[#allocation8 + $0x380] sm:$0xff]
    %v4080 = vld [vmem:[#allocation8 + $0x388] sm:$0xff]
    %v4081 = vld [vmem:[#allocation8 + $0x390] sm:$0xff]
    %v4082 = vld [vmem:[#allocation8 + $0x398] sm:$0xff]
    %v4083 = vld [vmem:[#allocation8 + $0x3a0] sm:$0xff]
    %v4084 = vld [vmem:[#allocation8 + $0x3a8] sm:$0xff]
    %v4085 = vld [vmem:[#allocation8 + $0x3b0] sm:$0xff]
    %v4086 = vld [vmem:[#allocation8 + $0x3b8] sm:$0xff]
    %v4087 = vld [vmem:[#allocation8 + $0x3c0] sm:$0xff]
    %v4088 = vld [vmem:[#allocation8 + $0x3c8] sm:$0xff]
    %v4089 = vld [vmem:[#allocation8 + $0x3d0] sm:$0xff]
    %v4090 = vld [vmem:[#allocation8 + $0x3d8] sm:$0xff]
    %v4091 = vld [vmem:[#allocation8 + $0x3e0] sm:$0xff]
    %v4092 = vld [vmem:[#allocation8 + $0x3e8] sm:$0xff]
    %v4093 = vld [vmem:[#allocation8 + $0x3f0] sm:$0xff]
    %v4094 = vld [vmem:[#allocation8 + $0x3f8] sm:$0xff]
    %v4095 = vld [vmem:[#allocation8 + $0x400] sm:$0xff]
    %v4096 = vld [vmem:[#allocation8 + $0x408] sm:$0xff]
    %v4097 = vld [vmem:[#allocation8 + $0x410] sm:$0xff]
    %v4098 = vld [vmem:[#allocation8 + $0x418] sm:$0xff]
    %v4099 = vld [vmem:[#allocation8 + $0x420] sm:$0xff]
    %v4100 = vld [vmem:[#allocation8 + $0x428] sm:$0xff]
    %v4101 = vld [vmem:[#allocation8 + $0x430] sm:$0xff]
    %v4102 = vld [vmem:[#allocation8 + $0x438] sm:$0xff]
    %v4103 = vld [vmem:[#allocation8 + $0x440] sm:$0xff]
    %v4104 = vld [vmem:[#allocation8 + $0x448] sm:$0xff]
    %v4105 = vld [vmem:[#allocation8 + $0x450] sm:$0xff]
    %v4106 = vld [vmem:[#allocation8 + $0x458] sm:$0xff]
    %v4107 = vld [vmem:[#allocation8 + $0x460] sm:$0xff]
    %v4108 = vld [vmem:[#allocation8 + $0x468] sm:$0xff]
    %v4109 = vld [vmem:[#allocation8 + $0x470] sm:$0xff]
    %v4110 = vld [vmem:[#allocation8 + $0x478] sm:$0xff]
    %v4111 = vld [vmem:[#allocation8 + $0x480] sm:$0xff]
    %v4112 = vld [vmem:[#allocation8 + $0x488] sm:$0xff]
    %v4113 = vld [vmem:[#allocation8 + $0x490] sm:$0xff]
    %v4114 = vld [vmem:[#allocation8 + $0x498] sm:$0xff]
    %v4115 = vld [vmem:[#allocation8 + $0x4a0] sm:$0xff]
    %v4116 = vld [vmem:[#allocation8 + $0x4a8] sm:$0xff]
    %v4117 = vld [vmem:[#allocation8 + $0x4b0] sm:$0xff]
    %v4118 = vld [vmem:[#allocation8 + $0x4b8] sm:$0xff]
    %v4119 = vld [vmem:[#allocation8 + $0x4c0] sm:$0xff]
    %v4120 = vld [vmem:[#allocation8 + $0x4c8] sm:$0xff]
    %v4121 = vld [vmem:[#allocation8 + $0x4d0] sm:$0xff]
    %v4122 = vld [vmem:[#allocation8 + $0x4d8] sm:$0xff]
    %v4123 = vld [vmem:[#allocation8 + $0x4e0] sm:$0xff]
    %v4124 = vld [vmem:[#allocation8 + $0x4e8] sm:$0xff]
    %v4125 = vld [vmem:[#allocation8 + $0x4f0] sm:$0xff]
    %v4126 = vld [vmem:[#allocation8 + $0x4f8] sm:$0xff]
    %v4127 = vld [vmem:[#allocation8 + $0x500] sm:$0xff]
    %v4128 = vld [vmem:[#allocation8 + $0x508] sm:$0xff]
    %v4129 = vld [vmem:[#allocation8 + $0x510] sm:$0xff]
    %v4130 = vld [vmem:[#allocation8 + $0x518] sm:$0xff]
    %v4131 = vld [vmem:[#allocation8 + $0x520] sm:$0xff]
    %v4132 = vld [vmem:[#allocation8 + $0x528] sm:$0xff]
    %v4133 = vld [vmem:[#allocation8 + $0x530] sm:$0xff]
    %v4134 = vld [vmem:[#allocation8 + $0x538] sm:$0xff]
    %v4135 = vld [vmem:[#allocation8 + $0x540] sm:$0xff]
    %v4136 = vld [vmem:[#allocation8 + $0x548] sm:$0xff]
    %v4137 = vld [vmem:[#allocation8 + $0x550] sm:$0xff]
    %v4138 = vld [vmem:[#allocation8 + $0x558] sm:$0xff]
    %v4139 = vld [vmem:[#allocation8 + $0x560] sm:$0xff]
    %v4140 = vld [vmem:[#allocation8 + $0x568] sm:$0xff]
    %v4141 = vld [vmem:[#allocation8 + $0x570] sm:$0xff]
    %v4142 = vld [vmem:[#allocation8 + $0x578] sm:$0xff]
    %v4143 = vld [vmem:[#allocation8 + $0x580] sm:$0xff]
    %v4144 = vld [vmem:[#allocation8 + $0x588] sm:$0xff]
    %v4145 = vld [vmem:[#allocation8 + $0x590] sm:$0xff]
    %v4146 = vld [vmem:[#allocation8 + $0x598] sm:$0xff]
    %v4147 = vld [vmem:[#allocation8 + $0x5a0] sm:$0xff]
    %v4148 = vld [vmem:[#allocation8 + $0x5a8] sm:$0xff]
    %v4149 = vld [vmem:[#allocation8 + $0x5b0] sm:$0xff]
    %v4150 = vld [vmem:[#allocation8 + $0x5b8] sm:$0xff]
    %v4151 = vld [vmem:[#allocation8 + $0x5c0] sm:$0xff]
    %v4152 = vld [vmem:[#allocation8 + $0x5c8] sm:$0xff]
    %v4153 = vld [vmem:[#allocation8 + $0x5d0] sm:$0xff]
    %v4154 = vld [vmem:[#allocation8 + $0x5d8] sm:$0xff]
    %v4155 = vld [vmem:[#allocation8 + $0x5e0] sm:$0xff]
    %v4156 = vld [vmem:[#allocation8 + $0x5e8] sm:$0xff]
    %v4157 = vld [vmem:[#allocation8 + $0x5f0] sm:$0xff]
    %v4158 = vld [vmem:[#allocation8 + $0x5f8] sm:$0xff]
    %v4159 = vld [vmem:[#allocation8 + $0x600] sm:$0xff]
    %v4160 = vld [vmem:[#allocation8 + $0x608] sm:$0xff]
    %v4161 = vld [vmem:[#allocation8 + $0x610] sm:$0xff]
    %v4162 = vld [vmem:[#allocation8 + $0x618] sm:$0xff]
    %v4163 = vld [vmem:[#allocation8 + $0x620] sm:$0xff]
    %v4164 = vld [vmem:[#allocation8 + $0x628] sm:$0xff]
    %v4165 = vld [vmem:[#allocation8 + $0x630] sm:$0xff]
    %v4166 = vld [vmem:[#allocation8 + $0x638] sm:$0xff]
    %v4167 = vld [vmem:[#allocation8 + $0x640] sm:$0xff]
    %v4168 = vld [vmem:[#allocation8 + $0x648] sm:$0xff]
    %v4169 = vld [vmem:[#allocation8 + $0x650] sm:$0xff]
    %v4170 = vld [vmem:[#allocation8 + $0x658] sm:$0xff]
    %v4171 = vld [vmem:[#allocation8 + $0x660] sm:$0xff]
    %v4172 = vld [vmem:[#allocation8 + $0x668] sm:$0xff]
    %v4173 = vld [vmem:[#allocation8 + $0x670] sm:$0xff]
    %v4174 = vld [vmem:[#allocation8 + $0x678] sm:$0xff]
    %v4175 = vld [vmem:[#allocation8 + $0x680] sm:$0xff]
    %v4176 = vld [vmem:[#allocation8 + $0x688] sm:$0xff]
    %v4177 = vld [vmem:[#allocation8 + $0x690] sm:$0xff]
    %v4178 = vld [vmem:[#allocation8 + $0x698] sm:$0xff]
    %v4179 = vld [vmem:[#allocation8 + $0x6a0] sm:$0xff]
    %v4180 = vld [vmem:[#allocation8 + $0x6a8] sm:$0xff]
    %v4181 = vld [vmem:[#allocation8 + $0x6b0] sm:$0xff]
    %v4182 = vld [vmem:[#allocation8 + $0x6b8] sm:$0xff]
    %v4183 = vld [vmem:[#allocation8 + $0x6c0] sm:$0xff]
    %v4184 = vld [vmem:[#allocation8 + $0x6c8] sm:$0xff]
    %v4185 = vld [vmem:[#allocation8 + $0x6d0] sm:$0xff]
    %v4186 = vld [vmem:[#allocation8 + $0x6d8] sm:$0xff]
    %v4187 = vld [vmem:[#allocation8 + $0x6e0] sm:$0xff]
    %v4188 = vld [vmem:[#allocation8 + $0x6e8] sm:$0xff]
    %v4189 = vld [vmem:[#allocation8 + $0x6f0] sm:$0xff]
    %v4190 = vld [vmem:[#allocation8 + $0x6f8] sm:$0xff]
    %v4191 = vld [vmem:[#allocation8 + $0x700] sm:$0xff]
    %v4192 = vld [vmem:[#allocation8 + $0x708] sm:$0xff]
    %v4193 = vld [vmem:[#allocation8 + $0x710] sm:$0xff]
    %v4194 = vld [vmem:[#allocation8 + $0x718] sm:$0xff]
    %v4195 = vld [vmem:[#allocation8 + $0x720] sm:$0xff]
    %v4196 = vld [vmem:[#allocation8 + $0x728] sm:$0xff]
    %v4197 = vld [vmem:[#allocation8 + $0x730] sm:$0xff]
    %v4198 = vld [vmem:[#allocation8 + $0x738] sm:$0xff]
    %v4199 = vld [vmem:[#allocation8 + $0x740] sm:$0xff]
    %v4200 = vld [vmem:[#allocation8 + $0x748] sm:$0xff]
    %v4201 = vld [vmem:[#allocation8 + $0x750] sm:$0xff]
    %v4202 = vld [vmem:[#allocation8 + $0x758] sm:$0xff]
    %v4203 = vld [vmem:[#allocation8 + $0x760] sm:$0xff]
    %v4204 = vld [vmem:[#allocation8 + $0x768] sm:$0xff]
    %v4205 = vld [vmem:[#allocation8 + $0x770] sm:$0xff]
    %v4206 = vld [vmem:[#allocation8 + $0x778] sm:$0xff]
    %v4207 = vld [vmem:[#allocation8 + $0x780] sm:$0xff]
    %v4208 = vld [vmem:[#allocation8 + $0x788] sm:$0xff]
    %v4209 = vld [vmem:[#allocation8 + $0x790] sm:$0xff]
    %v4210 = vld [vmem:[#allocation8 + $0x798] sm:$0xff]
    %v4211 = vld [vmem:[#allocation8 + $0x7a0] sm:$0xff]
    %v4212 = vld [vmem:[#allocation8 + $0x7a8] sm:$0xff]
    %v4213 = vld [vmem:[#allocation8 + $0x7b0] sm:$0xff]
    %v4214 = vld [vmem:[#allocation8 + $0x7b8] sm:$0xff]
    %v4215 = vld [vmem:[#allocation8 + $0x7c0] sm:$0xff]
    %v4216 = vld [vmem:[#allocation8 + $0x7c8] sm:$0xff]
    %v4217 = vld [vmem:[#allocation8 + $0x7d0] sm:$0xff]
    %v4218 = vld [vmem:[#allocation8 + $0x7d8] sm:$0xff]
    %v4219 = vld [vmem:[#allocation8 + $0x7e0] sm:$0xff]
    %v4220 = vld [vmem:[#allocation8 + $0x7e8] sm:$0xff]
    %v4221 = vld [vmem:[#allocation8 + $0x7f0] sm:$0xff]
    %v4222 = vld [vmem:[#allocation8 + $0x7f8] sm:$0xff]
    %v4223 = vld [vmem:[#allocation10] sm:$0xf]
    %v4225 = vlaneseq
    %v4226 = vshrl.u32 %v4225, 7
    %v4227 = vsub.s32 0, %v4226
    %v4228 = vrot.slane %v4223, %v4227
    %v4229 = vlaneseq
    %v4230 = vshrl.u32 %v4229, 7
    %v4231 = vsub.s32 1, %v4230
    %v4232 = vrot.slane %v4223, %v4231
    %v4233 = vlaneseq
    %v4234 = vshrl.u32 %v4233, 7
    %v4235 = vsub.s32 2, %v4234
    %v4236 = vrot.slane %v4223, %v4235
    %v4237 = vlaneseq
    %v4238 = vshrl.u32 %v4237, 7
    %v4239 = vsub.s32 3, %v4238
    %v4240 = vrot.slane %v4223, %v4239
    %v4501 = vunpack.c.l.b16 %v3967
    %v4502 = vunpack.c.h.b16 %v3967
    %v4503 = vunpack.c.l.b16 %v3968
    %v4504 = vunpack.c.h.b16 %v3968
    %v4505 = vunpack.c.l.b16 %v3969
    %v4506 = vunpack.c.h.b16 %v3969
    %v4507 = vunpack.c.l.b16 %v3970
    %v4508 = vunpack.c.h.b16 %v3970
    %v4509 = vunpack.c.l.b16 %v3971
    %v4510 = vunpack.c.h.b16 %v3971
    %v4511 = vunpack.c.l.b16 %v3972
    %v4512 = vunpack.c.h.b16 %v3972
    %v4513 = vunpack.c.l.b16 %v3973
    %v4514 = vunpack.c.h.b16 %v3973
    %v4515 = vunpack.c.l.b16 %v3974
    %v4516 = vunpack.c.h.b16 %v3974
    %v4517 = vunpack.c.l.b16 %v3975
    %v4518 = vunpack.c.h.b16 %v3975
    %v4519 = vunpack.c.l.b16 %v3976
    %v4520 = vunpack.c.h.b16 %v3976
    %v4521 = vunpack.c.l.b16 %v3977
    %v4522 = vunpack.c.h.b16 %v3977
    %v4523 = vunpack.c.l.b16 %v3978
    %v4524 = vunpack.c.h.b16 %v3978
    %v4525 = vunpack.c.l.b16 %v3979
    %v4526 = vunpack.c.h.b16 %v3979
    %v4527 = vunpack.c.l.b16 %v3980
    %v4528 = vunpack.c.h.b16 %v3980
    %v4529 = vunpack.c.l.b16 %v3981
    %v4530 = vunpack.c.h.b16 %v3981
    %v4531 = vunpack.c.l.b16 %v3982
    %v4532 = vunpack.c.h.b16 %v3982
    %v4533 = vunpack.c.l.b16 %v3983
    %v4534 = vunpack.c.h.b16 %v3983
    %v4535 = vunpack.c.l.b16 %v3984
    %v4536 = vunpack.c.h.b16 %v3984
    %v4537 = vunpack.c.l.b16 %v3985
    %v4538 = vunpack.c.h.b16 %v3985
    %v4539 = vunpack.c.l.b16 %v3986
    %v4540 = vunpack.c.h.b16 %v3986
    %v4541 = vunpack.c.l.b16 %v3987
    %v4542 = vunpack.c.h.b16 %v3987
    %v4543 = vunpack.c.l.b16 %v3988
    %v4544 = vunpack.c.h.b16 %v3988
    %v4545 = vunpack.c.l.b16 %v3989
    %v4546 = vunpack.c.h.b16 %v3989
    %v4547 = vunpack.c.l.b16 %v3990
    %v4548 = vunpack.c.h.b16 %v3990
    %v4549 = vunpack.c.l.b16 %v3991
    %v4550 = vunpack.c.h.b16 %v3991
    %v4551 = vunpack.c.l.b16 %v3992
    %v4552 = vunpack.c.h.b16 %v3992
    %v4553 = vunpack.c.l.b16 %v3993
    %v4554 = vunpack.c.h.b16 %v3993
    %v4555 = vunpack.c.l.b16 %v3994
    %v4556 = vunpack.c.h.b16 %v3994
    %v4557 = vunpack.c.l.b16 %v3995
    %v4558 = vunpack.c.h.b16 %v3995
    %v4559 = vunpack.c.l.b16 %v3996
    %v4560 = vunpack.c.h.b16 %v3996
    %v4561 = vunpack.c.l.b16 %v3997
    %v4562 = vunpack.c.h.b16 %v3997
    %v4563 = vunpack.c.l.b16 %v3998
    %v4564 = vunpack.c.h.b16 %v3998
    %v4565 = vunpack.c.l.b16 %v3999
    %v4566 = vunpack.c.h.b16 %v3999
    %v4567 = vunpack.c.l.b16 %v4000
    %v4568 = vunpack.c.h.b16 %v4000
    %v4569 = vunpack.c.l.b16 %v4001
    %v4570 = vunpack.c.h.b16 %v4001
    %v4571 = vunpack.c.l.b16 %v4002
    %v4572 = vunpack.c.h.b16 %v4002
    %v4573 = vunpack.c.l.b16 %v4003
    %v4574 = vunpack.c.h.b16 %v4003
    %v4575 = vunpack.c.l.b16 %v4004
    %v4576 = vunpack.c.h.b16 %v4004
    %v4577 = vunpack.c.l.b16 %v4005
    %v4578 = vunpack.c.h.b16 %v4005
    %v4579 = vunpack.c.l.b16 %v4006
    %v4580 = vunpack.c.h.b16 %v4006
    %v4581 = vunpack.c.l.b16 %v4007
    %v4582 = vunpack.c.h.b16 %v4007
    %v4583 = vunpack.c.l.b16 %v4008
    %v4584 = vunpack.c.h.b16 %v4008
    %v4585 = vunpack.c.l.b16 %v4009
    %v4586 = vunpack.c.h.b16 %v4009
    %v4587 = vunpack.c.l.b16 %v4010
    %v4588 = vunpack.c.h.b16 %v4010
    %v4589 = vunpack.c.l.b16 %v4011
    %v4590 = vunpack.c.h.b16 %v4011
    %v4591 = vunpack.c.l.b16 %v4012
    %v4592 = vunpack.c.h.b16 %v4012
    %v4593 = vunpack.c.l.b16 %v4013
    %v4594 = vunpack.c.h.b16 %v4013
    %v4595 = vunpack.c.l.b16 %v4014
    %v4596 = vunpack.c.h.b16 %v4014
    %v4597 = vunpack.c.l.b16 %v4015
    %v4598 = vunpack.c.h.b16 %v4015
    %v4599 = vunpack.c.l.b16 %v4016
    %v4600 = vunpack.c.h.b16 %v4016
    %v4601 = vunpack.c.l.b16 %v4017
    %v4602 = vunpack.c.h.b16 %v4017
    %v4603 = vunpack.c.l.b16 %v4018
    %v4604 = vunpack.c.h.b16 %v4018
    %v4605 = vunpack.c.l.b16 %v4019
    %v4606 = vunpack.c.h.b16 %v4019
    %v4607 = vunpack.c.l.b16 %v4020
    %v4608 = vunpack.c.h.b16 %v4020
    %v4609 = vunpack.c.l.b16 %v4021
    %v4610 = vunpack.c.h.b16 %v4021
    %v4611 = vunpack.c.l.b16 %v4022
    %v4612 = vunpack.c.h.b16 %v4022
    %v4613 = vunpack.c.l.b16 %v4023
    %v4614 = vunpack.c.h.b16 %v4023
    %v4615 = vunpack.c.l.b16 %v4024
    %v4616 = vunpack.c.h.b16 %v4024
    %v4617 = vunpack.c.l.b16 %v4025
    %v4618 = vunpack.c.h.b16 %v4025
    %v4619 = vunpack.c.l.b16 %v4026
    %v4620 = vunpack.c.h.b16 %v4026
    %v4621 = vunpack.c.l.b16 %v4027
    %v4622 = vunpack.c.h.b16 %v4027
    %v4623 = vunpack.c.l.b16 %v4028
    %v4624 = vunpack.c.h.b16 %v4028
    %v4625 = vunpack.c.l.b16 %v4029
    %v4626 = vunpack.c.h.b16 %v4029
    %v4627 = vunpack.c.l.b16 %v4030
    %v4628 = vunpack.c.h.b16 %v4030
    %v4629 = vunpack.c.l.b16 %v4031
    %v4630 = vunpack.c.h.b16 %v4031
    %v4631 = vunpack.c.l.b16 %v4032
    %v4632 = vunpack.c.h.b16 %v4032
    %v4633 = vunpack.c.l.b16 %v4033
    %v4634 = vunpack.c.h.b16 %v4033
    %v4635 = vunpack.c.l.b16 %v4034
    %v4636 = vunpack.c.h.b16 %v4034
    %v4637 = vunpack.c.l.b16 %v4035
    %v4638 = vunpack.c.h.b16 %v4035
    %v4639 = vunpack.c.l.b16 %v4036
    %v4640 = vunpack.c.h.b16 %v4036
    %v4641 = vunpack.c.l.b16 %v4037
    %v4642 = vunpack.c.h.b16 %v4037
    %v4643 = vunpack.c.l.b16 %v4038
    %v4644 = vunpack.c.h.b16 %v4038
    %v4645 = vunpack.c.l.b16 %v4039
    %v4646 = vunpack.c.h.b16 %v4039
    %v4647 = vunpack.c.l.b16 %v4040
    %v4648 = vunpack.c.h.b16 %v4040
    %v4649 = vunpack.c.l.b16 %v4041
    %v4650 = vunpack.c.h.b16 %v4041
    %v4651 = vunpack.c.l.b16 %v4042
    %v4652 = vunpack.c.h.b16 %v4042
    %v4653 = vunpack.c.l.b16 %v4043
    %v4654 = vunpack.c.h.b16 %v4043
    %v4655 = vunpack.c.l.b16 %v4044
    %v4656 = vunpack.c.h.b16 %v4044
    %v4657 = vunpack.c.l.b16 %v4045
    %v4658 = vunpack.c.h.b16 %v4045
    %v4659 = vunpack.c.l.b16 %v4046
    %v4660 = vunpack.c.h.b16 %v4046
    %v4661 = vunpack.c.l.b16 %v4047
    %v4662 = vunpack.c.h.b16 %v4047
    %v4663 = vunpack.c.l.b16 %v4048
    %v4664 = vunpack.c.h.b16 %v4048
    %v4665 = vunpack.c.l.b16 %v4049
    %v4666 = vunpack.c.h.b16 %v4049
    %v4667 = vunpack.c.l.b16 %v4050
    %v4668 = vunpack.c.h.b16 %v4050
    %v4669 = vunpack.c.l.b16 %v4051
    %v4670 = vunpack.c.h.b16 %v4051
    %v4671 = vunpack.c.l.b16 %v4052
    %v4672 = vunpack.c.h.b16 %v4052
    %v4673 = vunpack.c.l.b16 %v4053
    %v4674 = vunpack.c.h.b16 %v4053
    %v4675 = vunpack.c.l.b16 %v4054
    %v4676 = vunpack.c.h.b16 %v4054
    %v4677 = vunpack.c.l.b16 %v4055
    %v4678 = vunpack.c.h.b16 %v4055
    %v4679 = vunpack.c.l.b16 %v4056
    %v4680 = vunpack.c.h.b16 %v4056
    %v4681 = vunpack.c.l.b16 %v4057
    %v4682 = vunpack.c.h.b16 %v4057
    %v4683 = vunpack.c.l.b16 %v4058
    %v4684 = vunpack.c.h.b16 %v4058
    %v4685 = vunpack.c.l.b16 %v4059
    %v4686 = vunpack.c.h.b16 %v4059
    %v4687 = vunpack.c.l.b16 %v4060
    %v4688 = vunpack.c.h.b16 %v4060
    %v4689 = vunpack.c.l.b16 %v4061
    %v4690 = vunpack.c.h.b16 %v4061
    %v4691 = vunpack.c.l.b16 %v4062
    %v4692 = vunpack.c.h.b16 %v4062
    %v4693 = vunpack.c.l.b16 %v4063
    %v4694 = vunpack.c.h.b16 %v4063
    %v4695 = vunpack.c.l.b16 %v4064
    %v4696 = vunpack.c.h.b16 %v4064
    %v4697 = vunpack.c.l.b16 %v4065
    %v4698 = vunpack.c.h.b16 %v4065
    %v4699 = vunpack.c.l.b16 %v4066
    %v4700 = vunpack.c.h.b16 %v4066
    %v4701 = vunpack.c.l.b16 %v4067
    %v4702 = vunpack.c.h.b16 %v4067
    %v4703 = vunpack.c.l.b16 %v4068
    %v4704 = vunpack.c.h.b16 %v4068
    %v4705 = vunpack.c.l.b16 %v4069
    %v4706 = vunpack.c.h.b16 %v4069
    %v4707 = vunpack.c.l.b16 %v4070
    %v4708 = vunpack.c.h.b16 %v4070
    %v4709 = vunpack.c.l.b16 %v4071
    %v4710 = vunpack.c.h.b16 %v4071
    %v4711 = vunpack.c.l.b16 %v4072
    %v4712 = vunpack.c.h.b16 %v4072
    %v4713 = vunpack.c.l.b16 %v4073
    %v4714 = vunpack.c.h.b16 %v4073
    %v4715 = vunpack.c.l.b16 %v4074
    %v4716 = vunpack.c.h.b16 %v4074
    %v4717 = vunpack.c.l.b16 %v4075
    %v4718 = vunpack.c.h.b16 %v4075
    %v4719 = vunpack.c.l.b16 %v4076
    %v4720 = vunpack.c.h.b16 %v4076
    %v4721 = vunpack.c.l.b16 %v4077
    %v4722 = vunpack.c.h.b16 %v4077
    %v4723 = vunpack.c.l.b16 %v4078
    %v4724 = vunpack.c.h.b16 %v4078
    %v4725 = vunpack.c.l.b16 %v4079
    %v4726 = vunpack.c.h.b16 %v4079
    %v4727 = vunpack.c.l.b16 %v4080
    %v4728 = vunpack.c.h.b16 %v4080
    %v4729 = vunpack.c.l.b16 %v4081
    %v4730 = vunpack.c.h.b16 %v4081
    %v4731 = vunpack.c.l.b16 %v4082
    %v4732 = vunpack.c.h.b16 %v4082
    %v4733 = vunpack.c.l.b16 %v4083
    %v4734 = vunpack.c.h.b16 %v4083
    %v4735 = vunpack.c.l.b16 %v4084
    %v4736 = vunpack.c.h.b16 %v4084
    %v4737 = vunpack.c.l.b16 %v4085
    %v4738 = vunpack.c.h.b16 %v4085
    %v4739 = vunpack.c.l.b16 %v4086
    %v4740 = vunpack.c.h.b16 %v4086
    %v4741 = vunpack.c.l.b16 %v4087
    %v4742 = vunpack.c.h.b16 %v4087
    %v4743 = vunpack.c.l.b16 %v4088
    %v4744 = vunpack.c.h.b16 %v4088
    %v4745 = vunpack.c.l.b16 %v4089
    %v4746 = vunpack.c.h.b16 %v4089
    %v4747 = vunpack.c.l.b16 %v4090
    %v4748 = vunpack.c.h.b16 %v4090
    %v4749 = vunpack.c.l.b16 %v4091
    %v4750 = vunpack.c.h.b16 %v4091
    %v4751 = vunpack.c.l.b16 %v4092
    %v4752 = vunpack.c.h.b16 %v4092
    %v4753 = vunpack.c.l.b16 %v4093
    %v4754 = vunpack.c.h.b16 %v4093
    %v4755 = vunpack.c.l.b16 %v4094
    %v4756 = vunpack.c.h.b16 %v4094
    %v4757 = vunpack.c.l.b16 %v4095
    %v4758 = vunpack.c.h.b16 %v4095
    %v4759 = vunpack.c.l.b16 %v4096
    %v4760 = vunpack.c.h.b16 %v4096
    %v4761 = vunpack.c.l.b16 %v4097
    %v4762 = vunpack.c.h.b16 %v4097
    %v4763 = vunpack.c.l.b16 %v4098
    %v4764 = vunpack.c.h.b16 %v4098
    %v4765 = vunpack.c.l.b16 %v4099
    %v4766 = vunpack.c.h.b16 %v4099
    %v4767 = vunpack.c.l.b16 %v4100
    %v4768 = vunpack.c.h.b16 %v4100
    %v4769 = vunpack.c.l.b16 %v4101
    %v4770 = vunpack.c.h.b16 %v4101
    %v4771 = vunpack.c.l.b16 %v4102
    %v4772 = vunpack.c.h.b16 %v4102
    %v4773 = vunpack.c.l.b16 %v4103
    %v4774 = vunpack.c.h.b16 %v4103
    %v4775 = vunpack.c.l.b16 %v4104
    %v4776 = vunpack.c.h.b16 %v4104
    %v4777 = vunpack.c.l.b16 %v4105
    %v4778 = vunpack.c.h.b16 %v4105
    %v4779 = vunpack.c.l.b16 %v4106
    %v4780 = vunpack.c.h.b16 %v4106
    %v4781 = vunpack.c.l.b16 %v4107
    %v4782 = vunpack.c.h.b16 %v4107
    %v4783 = vunpack.c.l.b16 %v4108
    %v4784 = vunpack.c.h.b16 %v4108
    %v4785 = vunpack.c.l.b16 %v4109
    %v4786 = vunpack.c.h.b16 %v4109
    %v4787 = vunpack.c.l.b16 %v4110
    %v4788 = vunpack.c.h.b16 %v4110
    %v4789 = vunpack.c.l.b16 %v4111
    %v4790 = vunpack.c.h.b16 %v4111
    %v4791 = vunpack.c.l.b16 %v4112
    %v4792 = vunpack.c.h.b16 %v4112
    %v4793 = vunpack.c.l.b16 %v4113
    %v4794 = vunpack.c.h.b16 %v4113
    %v4795 = vunpack.c.l.b16 %v4114
    %v4796 = vunpack.c.h.b16 %v4114
    %v4797 = vunpack.c.l.b16 %v4115
    %v4798 = vunpack.c.h.b16 %v4115
    %v4799 = vunpack.c.l.b16 %v4116
    %v4800 = vunpack.c.h.b16 %v4116
    %v4801 = vunpack.c.l.b16 %v4117
    %v4802 = vunpack.c.h.b16 %v4117
    %v4803 = vunpack.c.l.b16 %v4118
    %v4804 = vunpack.c.h.b16 %v4118
    %v4805 = vunpack.c.l.b16 %v4119
    %v4806 = vunpack.c.h.b16 %v4119
    %v4807 = vunpack.c.l.b16 %v4120
    %v4808 = vunpack.c.h.b16 %v4120
    %v4809 = vunpack.c.l.b16 %v4121
    %v4810 = vunpack.c.h.b16 %v4121
    %v4811 = vunpack.c.l.b16 %v4122
    %v4812 = vunpack.c.h.b16 %v4122
    %v4813 = vunpack.c.l.b16 %v4123
    %v4814 = vunpack.c.h.b16 %v4123
    %v4815 = vunpack.c.l.b16 %v4124
    %v4816 = vunpack.c.h.b16 %v4124
    %v4817 = vunpack.c.l.b16 %v4125
    %v4818 = vunpack.c.h.b16 %v4125
    %v4819 = vunpack.c.l.b16 %v4126
    %v4820 = vunpack.c.h.b16 %v4126
    %v4821 = vunpack.c.l.b16 %v4127
    %v4822 = vunpack.c.h.b16 %v4127
    %v4823 = vunpack.c.l.b16 %v4128
    %v4824 = vunpack.c.h.b16 %v4128
    %v4825 = vunpack.c.l.b16 %v4129
    %v4826 = vunpack.c.h.b16 %v4129
    %v4827 = vunpack.c.l.b16 %v4130
    %v4828 = vunpack.c.h.b16 %v4130
    %v4829 = vunpack.c.l.b16 %v4131
    %v4830 = vunpack.c.h.b16 %v4131
    %v4831 = vunpack.c.l.b16 %v4132
    %v4832 = vunpack.c.h.b16 %v4132
    %v4833 = vunpack.c.l.b16 %v4133
    %v4834 = vunpack.c.h.b16 %v4133
    %v4835 = vunpack.c.l.b16 %v4134
    %v4836 = vunpack.c.h.b16 %v4134
    %v4837 = vunpack.c.l.b16 %v4135
    %v4838 = vunpack.c.h.b16 %v4135
    %v4839 = vunpack.c.l.b16 %v4136
    %v4840 = vunpack.c.h.b16 %v4136
    %v4841 = vunpack.c.l.b16 %v4137
    %v4842 = vunpack.c.h.b16 %v4137
    %v4843 = vunpack.c.l.b16 %v4138
    %v4844 = vunpack.c.h.b16 %v4138
    %v4845 = vunpack.c.l.b16 %v4139
    %v4846 = vunpack.c.h.b16 %v4139
    %v4847 = vunpack.c.l.b16 %v4140
    %v4848 = vunpack.c.h.b16 %v4140
    %v4849 = vunpack.c.l.b16 %v4141
    %v4850 = vunpack.c.h.b16 %v4141
    %v4851 = vunpack.c.l.b16 %v4142
    %v4852 = vunpack.c.h.b16 %v4142
    %v4853 = vunpack.c.l.b16 %v4143
    %v4854 = vunpack.c.h.b16 %v4143
    %v4855 = vunpack.c.l.b16 %v4144
    %v4856 = vunpack.c.h.b16 %v4144
    %v4857 = vunpack.c.l.b16 %v4145
    %v4858 = vunpack.c.h.b16 %v4145
    %v4859 = vunpack.c.l.b16 %v4146
    %v4860 = vunpack.c.h.b16 %v4146
    %v4861 = vunpack.c.l.b16 %v4147
    %v4862 = vunpack.c.h.b16 %v4147
    %v4863 = vunpack.c.l.b16 %v4148
    %v4864 = vunpack.c.h.b16 %v4148
    %v4865 = vunpack.c.l.b16 %v4149
    %v4866 = vunpack.c.h.b16 %v4149
    %v4867 = vunpack.c.l.b16 %v4150
    %v4868 = vunpack.c.h.b16 %v4150
    %v4869 = vunpack.c.l.b16 %v4151
    %v4870 = vunpack.c.h.b16 %v4151
    %v4871 = vunpack.c.l.b16 %v4152
    %v4872 = vunpack.c.h.b16 %v4152
    %v4873 = vunpack.c.l.b16 %v4153
    %v4874 = vunpack.c.h.b16 %v4153
    %v4875 = vunpack.c.l.b16 %v4154
    %v4876 = vunpack.c.h.b16 %v4154
    %v4877 = vunpack.c.l.b16 %v4155
    %v4878 = vunpack.c.h.b16 %v4155
    %v4879 = vunpack.c.l.b16 %v4156
    %v4880 = vunpack.c.h.b16 %v4156
    %v4881 = vunpack.c.l.b16 %v4157
    %v4882 = vunpack.c.h.b16 %v4157
    %v4883 = vunpack.c.l.b16 %v4158
    %v4884 = vunpack.c.h.b16 %v4158
    %v4885 = vunpack.c.l.b16 %v4159
    %v4886 = vunpack.c.h.b16 %v4159
    %v4887 = vunpack.c.l.b16 %v4160
    %v4888 = vunpack.c.h.b16 %v4160
    %v4889 = vunpack.c.l.b16 %v4161
    %v4890 = vunpack.c.h.b16 %v4161
    %v4891 = vunpack.c.l.b16 %v4162
    %v4892 = vunpack.c.h.b16 %v4162
    %v4893 = vunpack.c.l.b16 %v4163
    %v4894 = vunpack.c.h.b16 %v4163
    %v4895 = vunpack.c.l.b16 %v4164
    %v4896 = vunpack.c.h.b16 %v4164
    %v4897 = vunpack.c.l.b16 %v4165
    %v4898 = vunpack.c.h.b16 %v4165
    %v4899 = vunpack.c.l.b16 %v4166
    %v4900 = vunpack.c.h.b16 %v4166
    %v4901 = vunpack.c.l.b16 %v4167
    %v4902 = vunpack.c.h.b16 %v4167
    %v4903 = vunpack.c.l.b16 %v4168
    %v4904 = vunpack.c.h.b16 %v4168
    %v4905 = vunpack.c.l.b16 %v4169
    %v4906 = vunpack.c.h.b16 %v4169
    %v4907 = vunpack.c.l.b16 %v4170
    %v4908 = vunpack.c.h.b16 %v4170
    %v4909 = vunpack.c.l.b16 %v4171
    %v4910 = vunpack.c.h.b16 %v4171
    %v4911 = vunpack.c.l.b16 %v4172
    %v4912 = vunpack.c.h.b16 %v4172
    %v4913 = vunpack.c.l.b16 %v4173
    %v4914 = vunpack.c.h.b16 %v4173
    %v4915 = vunpack.c.l.b16 %v4174
    %v4916 = vunpack.c.h.b16 %v4174
    %v4917 = vunpack.c.l.b16 %v4175
    %v4918 = vunpack.c.h.b16 %v4175
    %v4919 = vunpack.c.l.b16 %v4176
    %v4920 = vunpack.c.h.b16 %v4176
    %v4921 = vunpack.c.l.b16 %v4177
    %v4922 = vunpack.c.h.b16 %v4177
    %v4923 = vunpack.c.l.b16 %v4178
    %v4924 = vunpack.c.h.b16 %v4178
    %v4925 = vunpack.c.l.b16 %v4179
    %v4926 = vunpack.c.h.b16 %v4179
    %v4927 = vunpack.c.l.b16 %v4180
    %v4928 = vunpack.c.h.b16 %v4180
    %v4929 = vunpack.c.l.b16 %v4181
    %v4930 = vunpack.c.h.b16 %v4181
    %v4931 = vunpack.c.l.b16 %v4182
    %v4932 = vunpack.c.h.b16 %v4182
    %v4933 = vunpack.c.l.b16 %v4183
    %v4934 = vunpack.c.h.b16 %v4183
    %v4935 = vunpack.c.l.b16 %v4184
    %v4936 = vunpack.c.h.b16 %v4184
    %v4937 = vunpack.c.l.b16 %v4185
    %v4938 = vunpack.c.h.b16 %v4185
    %v4939 = vunpack.c.l.b16 %v4186
    %v4940 = vunpack.c.h.b16 %v4186
    %v4941 = vunpack.c.l.b16 %v4187
    %v4942 = vunpack.c.h.b16 %v4187
    %v4943 = vunpack.c.l.b16 %v4188
    %v4944 = vunpack.c.h.b16 %v4188
    %v4945 = vunpack.c.l.b16 %v4189
    %v4946 = vunpack.c.h.b16 %v4189
    %v4947 = vunpack.c.l.b16 %v4190
    %v4948 = vunpack.c.h.b16 %v4190
    %v4949 = vunpack.c.l.b16 %v4191
    %v4950 = vunpack.c.h.b16 %v4191
    %v4951 = vunpack.c.l.b16 %v4192
    %v4952 = vunpack.c.h.b16 %v4192
    %v4953 = vunpack.c.l.b16 %v4193
    %v4954 = vunpack.c.h.b16 %v4193
    %v4955 = vunpack.c.l.b16 %v4194
    %v4956 = vunpack.c.h.b16 %v4194
    %v4957 = vunpack.c.l.b16 %v4195
    %v4958 = vunpack.c.h.b16 %v4195
    %v4959 = vunpack.c.l.b16 %v4196
    %v4960 = vunpack.c.h.b16 %v4196
    %v4961 = vunpack.c.l.b16 %v4197
    %v4962 = vunpack.c.h.b16 %v4197
    %v4963 = vunpack.c.l.b16 %v4198
    %v4964 = vunpack.c.h.b16 %v4198
    %v4965 = vunpack.c.l.b16 %v4199
    %v4966 = vunpack.c.h.b16 %v4199
    %v4967 = vunpack.c.l.b16 %v4200
    %v4968 = vunpack.c.h.b16 %v4200
    %v4969 = vunpack.c.l.b16 %v4201
    %v4970 = vunpack.c.h.b16 %v4201
    %v4971 = vunpack.c.l.b16 %v4202
    %v4972 = vunpack.c.h.b16 %v4202
    %v4973 = vunpack.c.l.b16 %v4203
    %v4974 = vunpack.c.h.b16 %v4203
    %v4975 = vunpack.c.l.b16 %v4204
    %v4976 = vunpack.c.h.b16 %v4204
    %v4977 = vunpack.c.l.b16 %v4205
    %v4978 = vunpack.c.h.b16 %v4205
    %v4979 = vunpack.c.l.b16 %v4206
    %v4980 = vunpack.c.h.b16 %v4206
    %v4981 = vunpack.c.l.b16 %v4207
    %v4982 = vunpack.c.h.b16 %v4207
    %v4983 = vunpack.c.l.b16 %v4208
    %v4984 = vunpack.c.h.b16 %v4208
    %v4985 = vunpack.c.l.b16 %v4209
    %v4986 = vunpack.c.h.b16 %v4209
    %v4987 = vunpack.c.l.b16 %v4210
    %v4988 = vunpack.c.h.b16 %v4210
    %v4989 = vunpack.c.l.b16 %v4211
    %v4990 = vunpack.c.h.b16 %v4211
    %v4991 = vunpack.c.l.b16 %v4212
    %v4992 = vunpack.c.h.b16 %v4212
    %v4993 = vunpack.c.l.b16 %v4213
    %v4994 = vunpack.c.h.b16 %v4213
    %v4995 = vunpack.c.l.b16 %v4214
    %v4996 = vunpack.c.h.b16 %v4214
    %v4997 = vunpack.c.l.b16 %v4215
    %v4998 = vunpack.c.h.b16 %v4215
    %v4999 = vunpack.c.l.b16 %v4216
    %v5000 = vunpack.c.h.b16 %v4216
    %v5001 = vunpack.c.l.b16 %v4217
    %v5002 = vunpack.c.h.b16 %v4217
    %v5003 = vunpack.c.l.b16 %v4218
    %v5004 = vunpack.c.h.b16 %v4218
    %v5005 = vunpack.c.l.b16 %v4219
    %v5006 = vunpack.c.h.b16 %v4219
    %v5007 = vunpack.c.l.b16 %v4220
    %v5008 = vunpack.c.h.b16 %v4220
    %v5009 = vunpack.c.l.b16 %v4221
    %v5010 = vunpack.c.h.b16 %v4221
    %v5011 = vunpack.c.l.b16 %v4222
    %v5012 = vunpack.c.h.b16 %v4222
    %v5013 = vpack.c.b16 %v4505, %v4501
    %v5014 = vpack.c.b16 %v4506, %v4502
    %v5015 = vpack.c.b16 %v4507, %v4503
    %v5016 = vpack.c.b16 %v4508, %v4504
    %v5017 = vpack.c.b16 %v4513, %v4509
    %v5018 = vpack.c.b16 %v4514, %v4510
    %v5019 = vpack.c.b16 %v4515, %v4511
    %v5020 = vpack.c.b16 %v4516, %v4512
    %v5021 = vpack.c.b16 %v4521, %v4517
    %v5022 = vpack.c.b16 %v4522, %v4518
    %v5023 = vpack.c.b16 %v4523, %v4519
    %v5024 = vpack.c.b16 %v4524, %v4520
    %v5025 = vpack.c.b16 %v4529, %v4525
    %v5026 = vpack.c.b16 %v4530, %v4526
    %v5027 = vpack.c.b16 %v4531, %v4527
    %v5028 = vpack.c.b16 %v4532, %v4528
    %v5029 = vpack.c.b16 %v4537, %v4533
    %v5030 = vpack.c.b16 %v4538, %v4534
    %v5031 = vpack.c.b16 %v4539, %v4535
    %v5032 = vpack.c.b16 %v4540, %v4536
    %v5033 = vpack.c.b16 %v4545, %v4541
    %v5034 = vpack.c.b16 %v4546, %v4542
    %v5035 = vpack.c.b16 %v4547, %v4543
    %v5036 = vpack.c.b16 %v4548, %v4544
    %v5037 = vpack.c.b16 %v4553, %v4549
    %v5038 = vpack.c.b16 %v4554, %v4550
    %v5039 = vpack.c.b16 %v4555, %v4551
    %v5040 = vpack.c.b16 %v4556, %v4552
    %v5041 = vpack.c.b16 %v4561, %v4557
    %v5042 = vpack.c.b16 %v4562, %v4558
    %v5043 = vpack.c.b16 %v4563, %v4559
    %v5044 = vpack.c.b16 %v4564, %v4560
    %v5045 = vpack.c.b16 %v4569, %v4565
    %v5046 = vpack.c.b16 %v4570, %v4566
    %v5047 = vpack.c.b16 %v4571, %v4567
    %v5048 = vpack.c.b16 %v4572, %v4568
    %v5049 = vpack.c.b16 %v4577, %v4573
    %v5050 = vpack.c.b16 %v4578, %v4574
    %v5051 = vpack.c.b16 %v4579, %v4575
    %v5052 = vpack.c.b16 %v4580, %v4576
    %v5053 = vpack.c.b16 %v4585, %v4581
    %v5054 = vpack.c.b16 %v4586, %v4582
    %v5055 = vpack.c.b16 %v4587, %v4583
    %v5056 = vpack.c.b16 %v4588, %v4584
    %v5057 = vpack.c.b16 %v4593, %v4589
    %v5058 = vpack.c.b16 %v4594, %v4590
    %v5059 = vpack.c.b16 %v4595, %v4591
    %v5060 = vpack.c.b16 %v4596, %v4592
    %v5061 = vpack.c.b16 %v4601, %v4597
    %v5062 = vpack.c.b16 %v4602, %v4598
    %v5063 = vpack.c.b16 %v4603, %v4599
    %v5064 = vpack.c.b16 %v4604, %v4600
    %v5065 = vpack.c.b16 %v4609, %v4605
    %v5066 = vpack.c.b16 %v4610, %v4606
    %v5067 = vpack.c.b16 %v4611, %v4607
    %v5068 = vpack.c.b16 %v4612, %v4608
    %v5069 = vpack.c.b16 %v4617, %v4613
    %v5070 = vpack.c.b16 %v4618, %v4614
    %v5071 = vpack.c.b16 %v4619, %v4615
    %v5072 = vpack.c.b16 %v4620, %v4616
    %v5073 = vpack.c.b16 %v4625, %v4621
    %v5074 = vpack.c.b16 %v4626, %v4622
    %v5075 = vpack.c.b16 %v4627, %v4623
    %v5076 = vpack.c.b16 %v4628, %v4624
    %v5077 = vpack.c.b16 %v4633, %v4629
    %v5078 = vpack.c.b16 %v4634, %v4630
    %v5079 = vpack.c.b16 %v4635, %v4631
    %v5080 = vpack.c.b16 %v4636, %v4632
    %v5081 = vpack.c.b16 %v4641, %v4637
    %v5082 = vpack.c.b16 %v4642, %v4638
    %v5083 = vpack.c.b16 %v4643, %v4639
    %v5084 = vpack.c.b16 %v4644, %v4640
    %v5085 = vpack.c.b16 %v4649, %v4645
    %v5086 = vpack.c.b16 %v4650, %v4646
    %v5087 = vpack.c.b16 %v4651, %v4647
    %v5088 = vpack.c.b16 %v4652, %v4648
    %v5089 = vpack.c.b16 %v4657, %v4653
    %v5090 = vpack.c.b16 %v4658, %v4654
    %v5091 = vpack.c.b16 %v4659, %v4655
    %v5092 = vpack.c.b16 %v4660, %v4656
    %v5093 = vpack.c.b16 %v4665, %v4661
    %v5094 = vpack.c.b16 %v4666, %v4662
    %v5095 = vpack.c.b16 %v4667, %v4663
    %v5096 = vpack.c.b16 %v4668, %v4664
    %v5097 = vpack.c.b16 %v4673, %v4669
    %v5098 = vpack.c.b16 %v4674, %v4670
    %v5099 = vpack.c.b16 %v4675, %v4671
    %v5100 = vpack.c.b16 %v4676, %v4672
    %v5101 = vpack.c.b16 %v4681, %v4677
    %v5102 = vpack.c.b16 %v4682, %v4678
    %v5103 = vpack.c.b16 %v4683, %v4679
    %v5104 = vpack.c.b16 %v4684, %v4680
    %v5105 = vpack.c.b16 %v4689, %v4685
    %v5106 = vpack.c.b16 %v4690, %v4686
    %v5107 = vpack.c.b16 %v4691, %v4687
    %v5108 = vpack.c.b16 %v4692, %v4688
    %v5109 = vpack.c.b16 %v4697, %v4693
    %v5110 = vpack.c.b16 %v4698, %v4694
    %v5111 = vpack.c.b16 %v4699, %v4695
    %v5112 = vpack.c.b16 %v4700, %v4696
    %v5113 = vpack.c.b16 %v4705, %v4701
    %v5114 = vpack.c.b16 %v4706, %v4702
    %v5115 = vpack.c.b16 %v4707, %v4703
    %v5116 = vpack.c.b16 %v4708, %v4704
    %v5117 = vpack.c.b16 %v4713, %v4709
    %v5118 = vpack.c.b16 %v4714, %v4710
    %v5119 = vpack.c.b16 %v4715, %v4711
    %v5120 = vpack.c.b16 %v4716, %v4712
    %v5121 = vpack.c.b16 %v4721, %v4717
    %v5122 = vpack.c.b16 %v4722, %v4718
    %v5123 = vpack.c.b16 %v4723, %v4719
    %v5124 = vpack.c.b16 %v4724, %v4720
    %v5125 = vpack.c.b16 %v4729, %v4725
    %v5126 = vpack.c.b16 %v4730, %v4726
    %v5127 = vpack.c.b16 %v4731, %v4727
    %v5128 = vpack.c.b16 %v4732, %v4728
    %v5129 = vpack.c.b16 %v4737, %v4733
    %v5130 = vpack.c.b16 %v4738, %v4734
    %v5131 = vpack.c.b16 %v4739, %v4735
    %v5132 = vpack.c.b16 %v4740, %v4736
    %v5133 = vpack.c.b16 %v4745, %v4741
    %v5134 = vpack.c.b16 %v4746, %v4742
    %v5135 = vpack.c.b16 %v4747, %v4743
    %v5136 = vpack.c.b16 %v4748, %v4744
    %v5137 = vpack.c.b16 %v4753, %v4749
    %v5138 = vpack.c.b16 %v4754, %v4750
    %v5139 = vpack.c.b16 %v4755, %v4751
    %v5140 = vpack.c.b16 %v4756, %v4752
    %v5141 = vpack.c.b16 %v4761, %v4757
    %v5142 = vpack.c.b16 %v4762, %v4758
    %v5143 = vpack.c.b16 %v4763, %v4759
    %v5144 = vpack.c.b16 %v4764, %v4760
    %v5145 = vpack.c.b16 %v4769, %v4765
    %v5146 = vpack.c.b16 %v4770, %v4766
    %v5147 = vpack.c.b16 %v4771, %v4767
    %v5148 = vpack.c.b16 %v4772, %v4768
    %v5149 = vpack.c.b16 %v4777, %v4773
    %v5150 = vpack.c.b16 %v4778, %v4774
    %v5151 = vpack.c.b16 %v4779, %v4775
    %v5152 = vpack.c.b16 %v4780, %v4776
    %v5153 = vpack.c.b16 %v4785, %v4781
    %v5154 = vpack.c.b16 %v4786, %v4782
    %v5155 = vpack.c.b16 %v4787, %v4783
    %v5156 = vpack.c.b16 %v4788, %v4784
    %v5157 = vpack.c.b16 %v4793, %v4789
    %v5158 = vpack.c.b16 %v4794, %v4790
    %v5159 = vpack.c.b16 %v4795, %v4791
    %v5160 = vpack.c.b16 %v4796, %v4792
    %v5161 = vpack.c.b16 %v4801, %v4797
    %v5162 = vpack.c.b16 %v4802, %v4798
    %v5163 = vpack.c.b16 %v4803, %v4799
    %v5164 = vpack.c.b16 %v4804, %v4800
    %v5165 = vpack.c.b16 %v4809, %v4805
    %v5166 = vpack.c.b16 %v4810, %v4806
    %v5167 = vpack.c.b16 %v4811, %v4807
    %v5168 = vpack.c.b16 %v4812, %v4808
    %v5169 = vpack.c.b16 %v4817, %v4813
    %v5170 = vpack.c.b16 %v4818, %v4814
    %v5171 = vpack.c.b16 %v4819, %v4815
    %v5172 = vpack.c.b16 %v4820, %v4816
    %v5173 = vpack.c.b16 %v4825, %v4821
    %v5174 = vpack.c.b16 %v4826, %v4822
    %v5175 = vpack.c.b16 %v4827, %v4823
    %v5176 = vpack.c.b16 %v4828, %v4824
    %v5177 = vpack.c.b16 %v4833, %v4829
    %v5178 = vpack.c.b16 %v4834, %v4830
    %v5179 = vpack.c.b16 %v4835, %v4831
    %v5180 = vpack.c.b16 %v4836, %v4832
    %v5181 = vpack.c.b16 %v4841, %v4837
    %v5182 = vpack.c.b16 %v4842, %v4838
    %v5183 = vpack.c.b16 %v4843, %v4839
    %v5184 = vpack.c.b16 %v4844, %v4840
    %v5185 = vpack.c.b16 %v4849, %v4845
    %v5186 = vpack.c.b16 %v4850, %v4846
    %v5187 = vpack.c.b16 %v4851, %v4847
    %v5188 = vpack.c.b16 %v4852, %v4848
    %v5189 = vpack.c.b16 %v4857, %v4853
    %v5190 = vpack.c.b16 %v4858, %v4854
    %v5191 = vpack.c.b16 %v4859, %v4855
    %v5192 = vpack.c.b16 %v4860, %v4856
    %v5193 = vpack.c.b16 %v4865, %v4861
    %v5194 = vpack.c.b16 %v4866, %v4862
    %v5195 = vpack.c.b16 %v4867, %v4863
    %v5196 = vpack.c.b16 %v4868, %v4864
    %v5197 = vpack.c.b16 %v4873, %v4869
    %v5198 = vpack.c.b16 %v4874, %v4870
    %v5199 = vpack.c.b16 %v4875, %v4871
    %v5200 = vpack.c.b16 %v4876, %v4872
    %v5201 = vpack.c.b16 %v4881, %v4877
    %v5202 = vpack.c.b16 %v4882, %v4878
    %v5203 = vpack.c.b16 %v4883, %v4879
    %v5204 = vpack.c.b16 %v4884, %v4880
    %v5205 = vpack.c.b16 %v4889, %v4885
    %v5206 = vpack.c.b16 %v4890, %v4886
    %v5207 = vpack.c.b16 %v4891, %v4887
    %v5208 = vpack.c.b16 %v4892, %v4888
    %v5209 = vpack.c.b16 %v4897, %v4893
    %v5210 = vpack.c.b16 %v4898, %v4894
    %v5211 = vpack.c.b16 %v4899, %v4895
    %v5212 = vpack.c.b16 %v4900, %v4896
    %v5213 = vpack.c.b16 %v4905, %v4901
    %v5214 = vpack.c.b16 %v4906, %v4902
    %v5215 = vpack.c.b16 %v4907, %v4903
    %v5216 = vpack.c.b16 %v4908, %v4904
    %v5217 = vpack.c.b16 %v4913, %v4909
    %v5218 = vpack.c.b16 %v4914, %v4910
    %v5219 = vpack.c.b16 %v4915, %v4911
    %v5220 = vpack.c.b16 %v4916, %v4912
    %v5221 = vpack.c.b16 %v4921, %v4917
    %v5222 = vpack.c.b16 %v4922, %v4918
    %v5223 = vpack.c.b16 %v4923, %v4919
    %v5224 = vpack.c.b16 %v4924, %v4920
    %v5225 = vpack.c.b16 %v4929, %v4925
    %v5226 = vpack.c.b16 %v4930, %v4926
    %v5227 = vpack.c.b16 %v4931, %v4927
    %v5228 = vpack.c.b16 %v4932, %v4928
    %v5229 = vpack.c.b16 %v4937, %v4933
    %v5230 = vpack.c.b16 %v4938, %v4934
    %v5231 = vpack.c.b16 %v4939, %v4935
    %v5232 = vpack.c.b16 %v4940, %v4936
    %v5233 = vpack.c.b16 %v4945, %v4941
    %v5234 = vpack.c.b16 %v4946, %v4942
    %v5235 = vpack.c.b16 %v4947, %v4943
    %v5236 = vpack.c.b16 %v4948, %v4944
    %v5237 = vpack.c.b16 %v4953, %v4949
    %v5238 = vpack.c.b16 %v4954, %v4950
    %v5239 = vpack.c.b16 %v4955, %v4951
    %v5240 = vpack.c.b16 %v4956, %v4952
    %v5241 = vpack.c.b16 %v4961, %v4957
    %v5242 = vpack.c.b16 %v4962, %v4958
    %v5243 = vpack.c.b16 %v4963, %v4959
    %v5244 = vpack.c.b16 %v4964, %v4960
    %v5245 = vpack.c.b16 %v4969, %v4965
    %v5246 = vpack.c.b16 %v4970, %v4966
    %v5247 = vpack.c.b16 %v4971, %v4967
    %v5248 = vpack.c.b16 %v4972, %v4968
    %v5249 = vpack.c.b16 %v4977, %v4973
    %v5250 = vpack.c.b16 %v4978, %v4974
    %v5251 = vpack.c.b16 %v4979, %v4975
    %v5252 = vpack.c.b16 %v4980, %v4976
    %v5253 = vpack.c.b16 %v4985, %v4981
    %v5254 = vpack.c.b16 %v4986, %v4982
    %v5255 = vpack.c.b16 %v4987, %v4983
    %v5256 = vpack.c.b16 %v4988, %v4984
    %v5257 = vpack.c.b16 %v4993, %v4989
    %v5258 = vpack.c.b16 %v4994, %v4990
    %v5259 = vpack.c.b16 %v4995, %v4991
    %v5260 = vpack.c.b16 %v4996, %v4992
    %v5261 = vpack.c.b16 %v5001, %v4997
    %v5262 = vpack.c.b16 %v5002, %v4998
    %v5263 = vpack.c.b16 %v5003, %v4999
    %v5264 = vpack.c.b16 %v5004, %v5000
    %v5265 = vpack.c.b16 %v5009, %v5005
    %v5266 = vpack.c.b16 %v5010, %v5006
    %v5267 = vpack.c.b16 %v5011, %v5007
    %v5268 = vpack.c.b16 %v5012, %v5008
    %5525 = vmatprep.subr.bf16.mxu0 %v5042
    %5526 = vmatpush1.bf16.msra.mxu0 %v5041
    %5527 = vmatprep.subr.bf16.mxu0 %v5038
    %5528 = vmatpush1.bf16.msra.mxu0 %v5037
    %5529 = vmatprep.subr.bf16.mxu0 %v5034
    %5530 = vmatpush1.bf16.msra.mxu0 %v5033
    %5531 = vmatprep.subr.bf16.mxu0 %v5030
    %5532 = vmatpush1.bf16.msra.mxu0 %v5029
    %5533 = vmatprep.subr.bf16.mxu0 %v5026
    %5534 = vmatpush1.bf16.msra.mxu0 %v5025
    %5535 = vmatprep.subr.bf16.mxu0 %v5022
    %5536 = vmatpush1.bf16.msra.mxu0 %v5021
    %5537 = vmatprep.subr.bf16.mxu0 %v5018
    %5538 = vmatpush1.bf16.msra.mxu0 %v5017
    %5539 = vmatprep.subr.bf16.mxu0 %v5014
    %5540 = vmatpush1.bf16.msra.mxu0 %v5013
    %5541 = vmatprep.subr.bf16.mxu0 %v5074
    %5542 = vmatpush2.bf16.msra.mxu0 %v5073
    %5543 = vmatprep.subr.bf16.mxu0 %v5070
    %5544 = vmatpush2.bf16.msra.mxu0 %v5069
    %5545 = vmatprep.subr.bf16.mxu0 %v5066
    %5546 = vmatpush2.bf16.msra.mxu0 %v5065
    %5547 = vmatprep.subr.bf16.mxu0 %v5062
    %5548 = vmatpush2.bf16.msra.mxu0 %v5061
    %5549 = vmatprep.subr.bf16.mxu0 %v5058
    %5550 = vmatpush2.bf16.msra.mxu0 %v5057
    %5551 = vmatprep.subr.bf16.mxu0 %v5054
    %5552 = vmatpush2.bf16.msra.mxu0 %v5053
    %5553 = vmatprep.subr.bf16.mxu0 %v5050
    %5554 = vmatpush2.bf16.msra.mxu0 %v5049
    %5555 = vmatprep.subr.bf16.mxu0 %v5046
    %5556 = vmatpush2.bf16.msra.mxu0 %v5045
    %5557 = vmatprep.mubr.bf16.mxu0 %v3960
    %5558 = vmatmul.mubr.bf16.gmra.mxu0 %v3959
    %v5559 = vpop.f32.mrf.mxu0
    %v5560 = vadd.f32 %v4228, %v5559
    %v5561 = vpop.f32.mrf.mxu0
    %v5562 = vadd.f32 %v4232, %v5561
    %v5563 = vpop.f32.mrf.mxu0
    %v5564 = vpop.f32.mrf.mxu0
    %5565 = vdwg.mxu0
    %5566 = vmatprep.subr.bf16.mxu0 %v5106
    %5567 = vmatpush1.bf16.msra.mxu0 %v5105
    %5568 = vmatprep.subr.bf16.mxu0 %v5102
    %5569 = vmatpush1.bf16.msra.mxu0 %v5101
    %5570 = vmatprep.subr.bf16.mxu0 %v5098
    %5571 = vmatpush1.bf16.msra.mxu0 %v5097
    %5572 = vmatprep.subr.bf16.mxu0 %v5094
    %5573 = vmatpush1.bf16.msra.mxu0 %v5093
    %5574 = vmatprep.subr.bf16.mxu0 %v5090
    %5575 = vmatpush1.bf16.msra.mxu0 %v5089
    %5576 = vmatprep.subr.bf16.mxu0 %v5086
    %5577 = vmatpush1.bf16.msra.mxu0 %v5085
    %5578 = vmatprep.subr.bf16.mxu0 %v5082
    %5579 = vmatpush1.bf16.msra.mxu0 %v5081
    %5580 = vmatprep.subr.bf16.mxu0 %v5078
    %5581 = vmatpush1.bf16.msra.mxu0 %v5077
    %5582 = vmatprep.subr.bf16.mxu0 %v5138
    %5583 = vmatpush2.bf16.msra.mxu0 %v5137
    %5584 = vmatprep.subr.bf16.mxu0 %v5134
    %5585 = vmatpush2.bf16.msra.mxu0 %v5133
    %5586 = vmatprep.subr.bf16.mxu0 %v5130
    %5587 = vmatpush2.bf16.msra.mxu0 %v5129
    %5588 = vmatprep.subr.bf16.mxu0 %v5126
    %5589 = vmatpush2.bf16.msra.mxu0 %v5125
    %5590 = vmatprep.subr.bf16.mxu0 %v5122
    %5591 = vmatpush2.bf16.msra.mxu0 %v5121
    %5592 = vmatprep.subr.bf16.mxu0 %v5118
    %5593 = vmatpush2.bf16.msra.mxu0 %v5117
    %5594 = vmatprep.subr.bf16.mxu0 %v5114
    %5595 = vmatpush2.bf16.msra.mxu0 %v5113
    %5596 = vmatprep.subr.bf16.mxu0 %v5110
    %5597 = vmatpush2.bf16.msra.mxu0 %v5109
    %5598 = vmatprep.mubr.bf16.mxu0 %v3962
    %5599 = vmatmul.mubr.bf16.gmra.mxu0 %v3961
    %v5600 = vpop.f32.mrf.mxu0
    %v5601 = vadd.f32 %v5560, %v5600
    %v5602 = vpop.f32.mrf.mxu0
    %v5603 = vadd.f32 %v5562, %v5602
    %v5604 = vpop.f32.mrf.mxu0
    %v5605 = vpop.f32.mrf.mxu0
    %5606 = vdwg.mxu0
    %5607 = vmatprep.subr.bf16.mxu0 %v5170
    %5608 = vmatpush1.bf16.msra.mxu0 %v5169
    %5609 = vmatprep.subr.bf16.mxu0 %v5166
    %5610 = vmatpush1.bf16.msra.mxu0 %v5165
    %5611 = vmatprep.subr.bf16.mxu0 %v5162
    %5612 = vmatpush1.bf16.msra.mxu0 %v5161
    %5613 = vmatprep.subr.bf16.mxu0 %v5158
    %5614 = vmatpush1.bf16.msra.mxu0 %v5157
    %5615 = vmatprep.subr.bf16.mxu0 %v5154
    %5616 = vmatpush1.bf16.msra.mxu0 %v5153
    %5617 = vmatprep.subr.bf16.mxu0 %v5150
    %5618 = vmatpush1.bf16.msra.mxu0 %v5149
    %5619 = vmatprep.subr.bf16.mxu0 %v5146
    %5620 = vmatpush1.bf16.msra.mxu0 %v5145
    %5621 = vmatprep.subr.bf16.mxu0 %v5142
    %5622 = vmatpush1.bf16.msra.mxu0 %v5141
    %5623 = vmatprep.subr.bf16.mxu0 %v5202
    %5624 = vmatpush2.bf16.msra.mxu0 %v5201
    %5625 = vmatprep.subr.bf16.mxu0 %v5198
    %5626 = vmatpush2.bf16.msra.mxu0 %v5197
    %5627 = vmatprep.subr.bf16.mxu0 %v5194
    %5628 = vmatpush2.bf16.msra.mxu0 %v5193
    %5629 = vmatprep.subr.bf16.mxu0 %v5190
    %5630 = vmatpush2.bf16.msra.mxu0 %v5189
    %5631 = vmatprep.subr.bf16.mxu0 %v5186
    %5632 = vmatpush2.bf16.msra.mxu0 %v5185
    %5633 = vmatprep.subr.bf16.mxu0 %v5182
    %5634 = vmatpush2.bf16.msra.mxu0 %v5181
    %5635 = vmatprep.subr.bf16.mxu0 %v5178
    %5636 = vmatpush2.bf16.msra.mxu0 %v5177
    %5637 = vmatprep.subr.bf16.mxu0 %v5174
    %5638 = vmatpush2.bf16.msra.mxu0 %v5173
    %5639 = vmatprep.mubr.bf16.mxu0 %v3964
    %5640 = vmatmul.mubr.bf16.gmra.mxu0 %v3963
    %v5641 = vpop.f32.mrf.mxu0
    %v5642 = vadd.f32 %v5601, %v5641
    %v5643 = vpop.f32.mrf.mxu0
    %v5644 = vadd.f32 %v5603, %v5643
    %v5645 = vpop.f32.mrf.mxu0
    %v5646 = vpop.f32.mrf.mxu0
    %5647 = vdwg.mxu0
    %5648 = vmatprep.subr.bf16.mxu0 %v5234
    %5649 = vmatpush1.bf16.msra.mxu0 %v5233
    %5650 = vmatprep.subr.bf16.mxu0 %v5230
    %5651 = vmatpush1.bf16.msra.mxu0 %v5229
    %5652 = vmatprep.subr.bf16.mxu0 %v5226
    %5653 = vmatpush1.bf16.msra.mxu0 %v5225
    %5654 = vmatprep.subr.bf16.mxu0 %v5222
    %5655 = vmatpush1.bf16.msra.mxu0 %v5221
    %5656 = vmatprep.subr.bf16.mxu0 %v5218
    %5657 = vmatpush1.bf16.msra.mxu0 %v5217
    %5658 = vmatprep.subr.bf16.mxu0 %v5214
    %5659 = vmatpush1.bf16.msra.mxu0 %v5213
    %5660 = vmatprep.subr.bf16.mxu0 %v5210
    %5661 = vmatpush1.bf16.msra.mxu0 %v5209
    %5662 = vmatprep.subr.bf16.mxu0 %v5206
    %5663 = vmatpush1.bf16.msra.mxu0 %v5205
    %5664 = vmatprep.subr.bf16.mxu0 %v5266
    %5665 = vmatpush2.bf16.msra.mxu0 %v5265
    %5666 = vmatprep.subr.bf16.mxu0 %v5262
    %5667 = vmatpush2.bf16.msra.mxu0 %v5261
    %5668 = vmatprep.subr.bf16.mxu0 %v5258
    %5669 = vmatpush2.bf16.msra.mxu0 %v5257
    %5670 = vmatprep.subr.bf16.mxu0 %v5254
    %5671 = vmatpush2.bf16.msra.mxu0 %v5253
    %5672 = vmatprep.subr.bf16.mxu0 %v5250
    %5673 = vmatpush2.bf16.msra.mxu0 %v5249
    %5674 = vmatprep.subr.bf16.mxu0 %v5246
    %5675 = vmatpush2.bf16.msra.mxu0 %v5245
    %5676 = vmatprep.subr.bf16.mxu0 %v5242
    %5677 = vmatpush2.bf16.msra.mxu0 %v5241
    %5678 = vmatprep.subr.bf16.mxu0 %v5238
    %5679 = vmatpush2.bf16.msra.mxu0 %v5237
    %5680 = vmatprep.mubr.bf16.mxu0 %v3966
    %5681 = vmatmul.mubr.bf16.gmra.mxu0 %v3965
    %v5682 = vpop.f32.mrf.mxu0
    %v5683 = vadd.f32 %v5642, %v5682
    %v5684 = vpop.f32.mrf.mxu0
    %v5685 = vadd.f32 %v5644, %v5684
    %v5686 = vpop.f32.mrf.mxu0
    %v5687 = vpop.f32.mrf.mxu0
    %5688 = vdwg.mxu0
    %5689 = vmatprep.subr.bf16.mxu0 %v5044
    %5690 = vmatpush1.bf16.msra.mxu0 %v5043
    %5691 = vmatprep.subr.bf16.mxu0 %v5040
    %5692 = vmatpush1.bf16.msra.mxu0 %v5039
    %5693 = vmatprep.subr.bf16.mxu0 %v5036
    %5694 = vmatpush1.bf16.msra.mxu0 %v5035
    %5695 = vmatprep.subr.bf16.mxu0 %v5032
    %5696 = vmatpush1.bf16.msra.mxu0 %v5031
    %5697 = vmatprep.subr.bf16.mxu0 %v5028
    %5698 = vmatpush1.bf16.msra.mxu0 %v5027
    %5699 = vmatprep.subr.bf16.mxu0 %v5024
    %5700 = vmatpush1.bf16.msra.mxu0 %v5023
    %5701 = vmatprep.subr.bf16.mxu0 %v5020
    %5702 = vmatpush1.bf16.msra.mxu0 %v5019
    %5703 = vmatprep.subr.bf16.mxu0 %v5016
    %5704 = vmatpush1.bf16.msra.mxu0 %v5015
    %5705 = vmatprep.subr.bf16.mxu0 %v5076
    %5706 = vmatpush2.bf16.msra.mxu0 %v5075
    %5707 = vmatprep.subr.bf16.mxu0 %v5072
    %5708 = vmatpush2.bf16.msra.mxu0 %v5071
    %5709 = vmatprep.subr.bf16.mxu0 %v5068
    %5710 = vmatpush2.bf16.msra.mxu0 %v5067
    %5711 = vmatprep.subr.bf16.mxu0 %v5064
    %5712 = vmatpush2.bf16.msra.mxu0 %v5063
    %5713 = vmatprep.subr.bf16.mxu0 %v5060
    %5714 = vmatpush2.bf16.msra.mxu0 %v5059
    %5715 = vmatprep.subr.bf16.mxu0 %v5056
    %5716 = vmatpush2.bf16.msra.mxu0 %v5055
    %5717 = vmatprep.subr.bf16.mxu0 %v5052
    %5718 = vmatpush2.bf16.msra.mxu0 %v5051
    %5719 = vmatprep.subr.bf16.mxu0 %v5048
    %5720 = vmatpush2.bf16.msra.mxu0 %v5047
    %5721 = vmatprep.mubr.bf16.mxu0 %v3960
    %5722 = vmatmul.mubr.bf16.gmra.mxu0 %v3959
    %v5723 = vpop.f32.mrf.mxu0
    %v5724 = vadd.f32 %v4236, %v5723
    %v5725 = vpop.f32.mrf.mxu0
    %v5726 = vadd.f32 %v4240, %v5725
    %v5727 = vpop.f32.mrf.mxu0
    %v5728 = vpop.f32.mrf.mxu0
    %5729 = vdwg.mxu0
    %5730 = vmatprep.subr.bf16.mxu0 %v5108
    %5731 = vmatpush1.bf16.msra.mxu0 %v5107
    %5732 = vmatprep.subr.bf16.mxu0 %v5104
    %5733 = vmatpush1.bf16.msra.mxu0 %v5103
    %5734 = vmatprep.subr.bf16.mxu0 %v5100
    %5735 = vmatpush1.bf16.msra.mxu0 %v5099
    %5736 = vmatprep.subr.bf16.mxu0 %v5096
    %5737 = vmatpush1.bf16.msra.mxu0 %v5095
    %5738 = vmatprep.subr.bf16.mxu0 %v5092
    %5739 = vmatpush1.bf16.msra.mxu0 %v5091
    %5740 = vmatprep.subr.bf16.mxu0 %v5088
    %5741 = vmatpush1.bf16.msra.mxu0 %v5087
    %5742 = vmatprep.subr.bf16.mxu0 %v5084
    %5743 = vmatpush1.bf16.msra.mxu0 %v5083
    %5744 = vmatprep.subr.bf16.mxu0 %v5080
    %5745 = vmatpush1.bf16.msra.mxu0 %v5079
    %5746 = vmatprep.subr.bf16.mxu0 %v5140
    %5747 = vmatpush2.bf16.msra.mxu0 %v5139
    %5748 = vmatprep.subr.bf16.mxu0 %v5136
    %5749 = vmatpush2.bf16.msra.mxu0 %v5135
    %5750 = vmatprep.subr.bf16.mxu0 %v5132
    %5751 = vmatpush2.bf16.msra.mxu0 %v5131
    %5752 = vmatprep.subr.bf16.mxu0 %v5128
    %5753 = vmatpush2.bf16.msra.mxu0 %v5127
    %5754 = vmatprep.subr.bf16.mxu0 %v5124
    %5755 = vmatpush2.bf16.msra.mxu0 %v5123
    %5756 = vmatprep.subr.bf16.mxu0 %v5120
    %5757 = vmatpush2.bf16.msra.mxu0 %v5119
    %5758 = vmatprep.subr.bf16.mxu0 %v5116
    %5759 = vmatpush2.bf16.msra.mxu0 %v5115
    %5760 = vmatprep.subr.bf16.mxu0 %v5112
    %5761 = vmatpush2.bf16.msra.mxu0 %v5111
    %5762 = vmatprep.mubr.bf16.mxu0 %v3962
    %5763 = vmatmul.mubr.bf16.gmra.mxu0 %v3961
    %v5764 = vpop.f32.mrf.mxu0
    %v5765 = vadd.f32 %v5724, %v5764
    %v5766 = vpop.f32.mrf.mxu0
    %v5767 = vadd.f32 %v5726, %v5766
    %v5768 = vpop.f32.mrf.mxu0
    %v5769 = vpop.f32.mrf.mxu0
    %5770 = vdwg.mxu0
    %5771 = vmatprep.subr.bf16.mxu0 %v5172
    %5772 = vmatpush1.bf16.msra.mxu0 %v5171
    %5773 = vmatprep.subr.bf16.mxu0 %v5168
    %5774 = vmatpush1.bf16.msra.mxu0 %v5167
    %5775 = vmatprep.subr.bf16.mxu0 %v5164
    %5776 = vmatpush1.bf16.msra.mxu0 %v5163
    %5777 = vmatprep.subr.bf16.mxu0 %v5160
    %5778 = vmatpush1.bf16.msra.mxu0 %v5159
    %5779 = vmatprep.subr.bf16.mxu0 %v5156
    %5780 = vmatpush1.bf16.msra.mxu0 %v5155
    %5781 = vmatprep.subr.bf16.mxu0 %v5152
    %5782 = vmatpush1.bf16.msra.mxu0 %v5151
    %5783 = vmatprep.subr.bf16.mxu0 %v5148
    %5784 = vmatpush1.bf16.msra.mxu0 %v5147
    %5785 = vmatprep.subr.bf16.mxu0 %v5144
    %5786 = vmatpush1.bf16.msra.mxu0 %v5143
    %5787 = vmatprep.subr.bf16.mxu0 %v5204
    %5788 = vmatpush2.bf16.msra.mxu0 %v5203
    %5789 = vmatprep.subr.bf16.mxu0 %v5200
    %5790 = vmatpush2.bf16.msra.mxu0 %v5199
    %5791 = vmatprep.subr.bf16.mxu0 %v5196
    %5792 = vmatpush2.bf16.msra.mxu0 %v5195
    %5793 = vmatprep.subr.bf16.mxu0 %v5192
    %5794 = vmatpush2.bf16.msra.mxu0 %v5191
    %5795 = vmatprep.subr.bf16.mxu0 %v5188
    %5796 = vmatpush2.bf16.msra.mxu0 %v5187
    %5797 = vmatprep.subr.bf16.mxu0 %v5184
    %5798 = vmatpush2.bf16.msra.mxu0 %v5183
    %5799 = vmatprep.subr.bf16.mxu0 %v5180
    %5800 = vmatpush2.bf16.msra.mxu0 %v5179
    %5801 = vmatprep.subr.bf16.mxu0 %v5176
    %5802 = vmatpush2.bf16.msra.mxu0 %v5175
    %5803 = vmatprep.mubr.bf16.mxu0 %v3964
    %5804 = vmatmul.mubr.bf16.gmra.mxu0 %v3963
    %v5805 = vpop.f32.mrf.mxu0
    %v5806 = vadd.f32 %v5765, %v5805
    %v5807 = vpop.f32.mrf.mxu0
    %v5808 = vadd.f32 %v5767, %v5807
    %v5809 = vpop.f32.mrf.mxu0
    %v5810 = vpop.f32.mrf.mxu0
    %5811 = vdwg.mxu0
    %5812 = vmatprep.subr.bf16.mxu0 %v5236
    %5813 = vmatpush1.bf16.msra.mxu0 %v5235
    %5814 = vmatprep.subr.bf16.mxu0 %v5232
    %5815 = vmatpush1.bf16.msra.mxu0 %v5231
    %5816 = vmatprep.subr.bf16.mxu0 %v5228
    %5817 = vmatpush1.bf16.msra.mxu0 %v5227
    %5818 = vmatprep.subr.bf16.mxu0 %v5224
    %5819 = vmatpush1.bf16.msra.mxu0 %v5223
    %5820 = vmatprep.subr.bf16.mxu0 %v5220
    %5821 = vmatpush1.bf16.msra.mxu0 %v5219
    %5822 = vmatprep.subr.bf16.mxu0 %v5216
    %5823 = vmatpush1.bf16.msra.mxu0 %v5215
    %5824 = vmatprep.subr.bf16.mxu0 %v5212
    %5825 = vmatpush1.bf16.msra.mxu0 %v5211
    %5826 = vmatprep.subr.bf16.mxu0 %v5208
    %5827 = vmatpush1.bf16.msra.mxu0 %v5207
    %5828 = vmatprep.subr.bf16.mxu0 %v5268
    %5829 = vmatpush2.bf16.msra.mxu0 %v5267
    %5830 = vmatprep.subr.bf16.mxu0 %v5264
    %5831 = vmatpush2.bf16.msra.mxu0 %v5263
    %5832 = vmatprep.subr.bf16.mxu0 %v5260
    %5833 = vmatpush2.bf16.msra.mxu0 %v5259
    %5834 = vmatprep.subr.bf16.mxu0 %v5256
    %5835 = vmatpush2.bf16.msra.mxu0 %v5255
    %5836 = vmatprep.subr.bf16.mxu0 %v5252
    %5837 = vmatpush2.bf16.msra.mxu0 %v5251
    %5838 = vmatprep.subr.bf16.mxu0 %v5248
    %5839 = vmatpush2.bf16.msra.mxu0 %v5247
    %5840 = vmatprep.subr.bf16.mxu0 %v5244
    %5841 = vmatpush2.bf16.msra.mxu0 %v5243
    %5842 = vmatprep.subr.bf16.mxu0 %v5240
    %5843 = vmatpush2.bf16.msra.mxu0 %v5239
    %5844 = vmatprep.mubr.bf16.mxu0 %v3966
    %5845 = vmatmul.mubr.bf16.gmra.mxu0 %v3965
    %v5846 = vpop.f32.mrf.mxu0
    %v5847 = vadd.f32 %v5806, %v5846
    %v5848 = vpop.f32.mrf.mxu0
    %v5849 = vadd.f32 %v5808, %v5848
    %v5850 = vpop.f32.mrf.mxu0
    %v5851 = vpop.f32.mrf.mxu0
    %5852 = vdwg.mxu0
    %vm5853 = vcmp.gt.f32.partialorder %v5683, 0.0
    %vm5854 = vcmp.gt.f32.partialorder %v5685, 0.0
    %vm5855 = vcmp.gt.f32.partialorder %v5847, 0.0
    %vm5856 = vcmp.gt.f32.partialorder %v5849, 0.0
    %v5857 = vmul.f32 %v5683, 0.2
    %v5858 = vmul.f32 %v5685, 0.2
    %v5859 = vmul.f32 %v5847, 0.2
    %v5860 = vmul.f32 %v5849, 0.2
    %v5861 = vsel %vm5853, %v5683, %v5857
    %v5862 = vsel %vm5854, %v5685, %v5858
    %v5863 = vsel %vm5855, %v5847, %v5859
    %v5864 = vsel %vm5856, %v5849, %v5860
    %v5865 = vpack.c.bf16 %v5861, %v5861
    %v5866 = vpack.c.bf16 %v5862, %v5862
    %v5867 = vpack.c.bf16 %v5863, %v5863
    %v5868 = vpack.c.bf16 %v5864, %v5864
    %v5869 = vld [vmem:[#allocation11] sm:$0xff]
    %v5870 = vld [vmem:[#allocation11 + $0x8] sm:$0xff]
    %v5871 = vld [vmem:[#allocation11 + $0x10] sm:$0xff]
    %v5872 = vld [vmem:[#allocation11 + $0x18] sm:$0xff]
    %v5873 = vld [vmem:[#allocation11 + $0x20] sm:$0xff]
    %v5874 = vld [vmem:[#allocation11 + $0x28] sm:$0xff]
    %v5875 = vld [vmem:[#allocation11 + $0x30] sm:$0xff]
    %v5876 = vld [vmem:[#allocation11 + $0x38] sm:$0xff]
    %v5877 = vld [vmem:[#allocation11 + $0x40] sm:$0xff]
    %v5878 = vld [vmem:[#allocation11 + $0x48] sm:$0xff]
    %v5879 = vld [vmem:[#allocation11 + $0x50] sm:$0xff]
    %v5880 = vld [vmem:[#allocation11 + $0x58] sm:$0xff]
    %v5881 = vld [vmem:[#allocation11 + $0x60] sm:$0xff]
    %v5882 = vld [vmem:[#allocation11 + $0x68] sm:$0xff]
    %v5883 = vld [vmem:[#allocation11 + $0x70] sm:$0xff]
    %v5884 = vld [vmem:[#allocation11 + $0x78] sm:$0xff]
    %v5885 = vld [vmem:[#allocation11 + $0x80] sm:$0xff]
    %v5886 = vld [vmem:[#allocation11 + $0x88] sm:$0xff]
    %v5887 = vld [vmem:[#allocation11 + $0x90] sm:$0xff]
    %v5888 = vld [vmem:[#allocation11 + $0x98] sm:$0xff]
    %v5889 = vld [vmem:[#allocation11 + $0xa0] sm:$0xff]
    %v5890 = vld [vmem:[#allocation11 + $0xa8] sm:$0xff]
    %v5891 = vld [vmem:[#allocation11 + $0xb0] sm:$0xff]
    %v5892 = vld [vmem:[#allocation11 + $0xb8] sm:$0xff]
    %v5893 = vld [vmem:[#allocation11 + $0xc0] sm:$0xff]
    %v5894 = vld [vmem:[#allocation11 + $0xc8] sm:$0xff]
    %v5895 = vld [vmem:[#allocation11 + $0xd0] sm:$0xff]
    %v5896 = vld [vmem:[#allocation11 + $0xd8] sm:$0xff]
    %v5897 = vld [vmem:[#allocation11 + $0xe0] sm:$0xff]
    %v5898 = vld [vmem:[#allocation11 + $0xe8] sm:$0xff]
    %v5899 = vld [vmem:[#allocation11 + $0xf0] sm:$0xff]
    %v5900 = vld [vmem:[#allocation11 + $0xf8] sm:$0xff]
    %v5901 = vld [vmem:[#allocation11 + $0x100] sm:$0xff]
    %v5902 = vld [vmem:[#allocation11 + $0x108] sm:$0xff]
    %v5903 = vld [vmem:[#allocation11 + $0x110] sm:$0xff]
    %v5904 = vld [vmem:[#allocation11 + $0x118] sm:$0xff]
    %v5905 = vld [vmem:[#allocation11 + $0x120] sm:$0xff]
    %v5906 = vld [vmem:[#allocation11 + $0x128] sm:$0xff]
    %v5907 = vld [vmem:[#allocation11 + $0x130] sm:$0xff]
    %v5908 = vld [vmem:[#allocation11 + $0x138] sm:$0xff]
    %v5909 = vld [vmem:[#allocation11 + $0x140] sm:$0xff]
    %v5910 = vld [vmem:[#allocation11 + $0x148] sm:$0xff]
    %v5911 = vld [vmem:[#allocation11 + $0x150] sm:$0xff]
    %v5912 = vld [vmem:[#allocation11 + $0x158] sm:$0xff]
    %v5913 = vld [vmem:[#allocation11 + $0x160] sm:$0xff]
    %v5914 = vld [vmem:[#allocation11 + $0x168] sm:$0xff]
    %v5915 = vld [vmem:[#allocation11 + $0x170] sm:$0xff]
    %v5916 = vld [vmem:[#allocation11 + $0x178] sm:$0xff]
    %v5917 = vld [vmem:[#allocation11 + $0x180] sm:$0xff]
    %v5918 = vld [vmem:[#allocation11 + $0x188] sm:$0xff]
    %v5919 = vld [vmem:[#allocation11 + $0x190] sm:$0xff]
    %v5920 = vld [vmem:[#allocation11 + $0x198] sm:$0xff]
    %v5921 = vld [vmem:[#allocation11 + $0x1a0] sm:$0xff]
    %v5922 = vld [vmem:[#allocation11 + $0x1a8] sm:$0xff]
    %v5923 = vld [vmem:[#allocation11 + $0x1b0] sm:$0xff]
    %v5924 = vld [vmem:[#allocation11 + $0x1b8] sm:$0xff]
    %v5925 = vld [vmem:[#allocation11 + $0x1c0] sm:$0xff]
    %v5926 = vld [vmem:[#allocation11 + $0x1c8] sm:$0xff]
    %v5927 = vld [vmem:[#allocation11 + $0x1d0] sm:$0xff]
    %v5928 = vld [vmem:[#allocation11 + $0x1d8] sm:$0xff]
    %v5929 = vld [vmem:[#allocation11 + $0x1e0] sm:$0xff]
    %v5930 = vld [vmem:[#allocation11 + $0x1e8] sm:$0xff]
    %v5931 = vld [vmem:[#allocation11 + $0x1f0] sm:$0xff]
    %v5932 = vld [vmem:[#allocation11 + $0x1f8] sm:$0xff]
    %v5933 = vld [vmem:[#allocation13] sm:$0x3]
    %v5935 = vlaneseq
    %v5936 = vshrl.u32 %v5935, 7
    %v5937 = vsub.s32 0, %v5936
    %v5938 = vrot.slane %v5933, %v5937
    %v5939 = vlaneseq
    %v5940 = vshrl.u32 %v5939, 7
    %v5941 = vsub.s32 1, %v5940
    %v5942 = vrot.slane %v5933, %v5941
    %v6009 = vunpack.c.l.b16 %v5869
    %v6010 = vunpack.c.h.b16 %v5869
    %v6011 = vunpack.c.l.b16 %v5870
    %v6012 = vunpack.c.h.b16 %v5870
    %v6013 = vunpack.c.l.b16 %v5871
    %v6014 = vunpack.c.h.b16 %v5871
    %v6015 = vunpack.c.l.b16 %v5872
    %v6016 = vunpack.c.h.b16 %v5872
    %v6017 = vunpack.c.l.b16 %v5873
    %v6018 = vunpack.c.h.b16 %v5873
    %v6019 = vunpack.c.l.b16 %v5874
    %v6020 = vunpack.c.h.b16 %v5874
    %v6021 = vunpack.c.l.b16 %v5875
    %v6022 = vunpack.c.h.b16 %v5875
    %v6023 = vunpack.c.l.b16 %v5876
    %v6024 = vunpack.c.h.b16 %v5876
    %v6025 = vunpack.c.l.b16 %v5877
    %v6026 = vunpack.c.h.b16 %v5877
    %v6027 = vunpack.c.l.b16 %v5878
    %v6028 = vunpack.c.h.b16 %v5878
    %v6029 = vunpack.c.l.b16 %v5879
    %v6030 = vunpack.c.h.b16 %v5879
    %v6031 = vunpack.c.l.b16 %v5880
    %v6032 = vunpack.c.h.b16 %v5880
    %v6033 = vunpack.c.l.b16 %v5881
    %v6034 = vunpack.c.h.b16 %v5881
    %v6035 = vunpack.c.l.b16 %v5882
    %v6036 = vunpack.c.h.b16 %v5882
    %v6037 = vunpack.c.l.b16 %v5883
    %v6038 = vunpack.c.h.b16 %v5883
    %v6039 = vunpack.c.l.b16 %v5884
    %v6040 = vunpack.c.h.b16 %v5884
    %v6041 = vunpack.c.l.b16 %v5885
    %v6042 = vunpack.c.h.b16 %v5885
    %v6043 = vunpack.c.l.b16 %v5886
    %v6044 = vunpack.c.h.b16 %v5886
    %v6045 = vunpack.c.l.b16 %v5887
    %v6046 = vunpack.c.h.b16 %v5887
    %v6047 = vunpack.c.l.b16 %v5888
    %v6048 = vunpack.c.h.b16 %v5888
    %v6049 = vunpack.c.l.b16 %v5889
    %v6050 = vunpack.c.h.b16 %v5889
    %v6051 = vunpack.c.l.b16 %v5890
    %v6052 = vunpack.c.h.b16 %v5890
    %v6053 = vunpack.c.l.b16 %v5891
    %v6054 = vunpack.c.h.b16 %v5891
    %v6055 = vunpack.c.l.b16 %v5892
    %v6056 = vunpack.c.h.b16 %v5892
    %v6057 = vunpack.c.l.b16 %v5893
    %v6058 = vunpack.c.h.b16 %v5893
    %v6059 = vunpack.c.l.b16 %v5894
    %v6060 = vunpack.c.h.b16 %v5894
    %v6061 = vunpack.c.l.b16 %v5895
    %v6062 = vunpack.c.h.b16 %v5895
    %v6063 = vunpack.c.l.b16 %v5896
    %v6064 = vunpack.c.h.b16 %v5896
    %v6065 = vunpack.c.l.b16 %v5897
    %v6066 = vunpack.c.h.b16 %v5897
    %v6067 = vunpack.c.l.b16 %v5898
    %v6068 = vunpack.c.h.b16 %v5898
    %v6069 = vunpack.c.l.b16 %v5899
    %v6070 = vunpack.c.h.b16 %v5899
    %v6071 = vunpack.c.l.b16 %v5900
    %v6072 = vunpack.c.h.b16 %v5900
    %v6073 = vunpack.c.l.b16 %v5901
    %v6074 = vunpack.c.h.b16 %v5901
    %v6075 = vunpack.c.l.b16 %v5902
    %v6076 = vunpack.c.h.b16 %v5902
    %v6077 = vunpack.c.l.b16 %v5903
    %v6078 = vunpack.c.h.b16 %v5903
    %v6079 = vunpack.c.l.b16 %v5904
    %v6080 = vunpack.c.h.b16 %v5904
    %v6081 = vunpack.c.l.b16 %v5905
    %v6082 = vunpack.c.h.b16 %v5905
    %v6083 = vunpack.c.l.b16 %v5906
    %v6084 = vunpack.c.h.b16 %v5906
    %v6085 = vunpack.c.l.b16 %v5907
    %v6086 = vunpack.c.h.b16 %v5907
    %v6087 = vunpack.c.l.b16 %v5908
    %v6088 = vunpack.c.h.b16 %v5908
    %v6089 = vunpack.c.l.b16 %v5909
    %v6090 = vunpack.c.h.b16 %v5909
    %v6091 = vunpack.c.l.b16 %v5910
    %v6092 = vunpack.c.h.b16 %v5910
    %v6093 = vunpack.c.l.b16 %v5911
    %v6094 = vunpack.c.h.b16 %v5911
    %v6095 = vunpack.c.l.b16 %v5912
    %v6096 = vunpack.c.h.b16 %v5912
    %v6097 = vunpack.c.l.b16 %v5913
    %v6098 = vunpack.c.h.b16 %v5913
    %v6099 = vunpack.c.l.b16 %v5914
    %v6100 = vunpack.c.h.b16 %v5914
    %v6101 = vunpack.c.l.b16 %v5915
    %v6102 = vunpack.c.h.b16 %v5915
    %v6103 = vunpack.c.l.b16 %v5916
    %v6104 = vunpack.c.h.b16 %v5916
    %v6105 = vunpack.c.l.b16 %v5917
    %v6106 = vunpack.c.h.b16 %v5917
    %v6107 = vunpack.c.l.b16 %v5918
    %v6108 = vunpack.c.h.b16 %v5918
    %v6109 = vunpack.c.l.b16 %v5919
    %v6110 = vunpack.c.h.b16 %v5919
    %v6111 = vunpack.c.l.b16 %v5920
    %v6112 = vunpack.c.h.b16 %v5920
    %v6113 = vunpack.c.l.b16 %v5921
    %v6114 = vunpack.c.h.b16 %v5921
    %v6115 = vunpack.c.l.b16 %v5922
    %v6116 = vunpack.c.h.b16 %v5922
    %v6117 = vunpack.c.l.b16 %v5923
    %v6118 = vunpack.c.h.b16 %v5923
    %v6119 = vunpack.c.l.b16 %v5924
    %v6120 = vunpack.c.h.b16 %v5924
    %v6121 = vunpack.c.l.b16 %v5925
    %v6122 = vunpack.c.h.b16 %v5925
    %v6123 = vunpack.c.l.b16 %v5926
    %v6124 = vunpack.c.h.b16 %v5926
    %v6125 = vunpack.c.l.b16 %v5927
    %v6126 = vunpack.c.h.b16 %v5927
    %v6127 = vunpack.c.l.b16 %v5928
    %v6128 = vunpack.c.h.b16 %v5928
    %v6129 = vunpack.c.l.b16 %v5929
    %v6130 = vunpack.c.h.b16 %v5929
    %v6131 = vunpack.c.l.b16 %v5930
    %v6132 = vunpack.c.h.b16 %v5930
    %v6133 = vunpack.c.l.b16 %v5931
    %v6134 = vunpack.c.h.b16 %v5931
    %v6135 = vunpack.c.l.b16 %v5932
    %v6136 = vunpack.c.h.b16 %v5932
    %v6137 = vpack.c.b16 %v6011, %v6009
    %v6138 = vpack.c.b16 %v6012, %v6010
    %v6139 = vpack.c.b16 %v6015, %v6013
    %v6140 = vpack.c.b16 %v6016, %v6014
    %v6141 = vpack.c.b16 %v6019, %v6017
    %v6142 = vpack.c.b16 %v6020, %v6018
    %v6143 = vpack.c.b16 %v6023, %v6021
    %v6144 = vpack.c.b16 %v6024, %v6022
    %v6145 = vpack.c.b16 %v6027, %v6025
    %v6146 = vpack.c.b16 %v6028, %v6026
    %v6147 = vpack.c.b16 %v6031, %v6029
    %v6148 = vpack.c.b16 %v6032, %v6030
    %v6149 = vpack.c.b16 %v6035, %v6033
    %v6150 = vpack.c.b16 %v6036, %v6034
    %v6151 = vpack.c.b16 %v6039, %v6037
    %v6152 = vpack.c.b16 %v6040, %v6038
    %v6153 = vpack.c.b16 %v6043, %v6041
    %v6154 = vpack.c.b16 %v6044, %v6042
    %v6155 = vpack.c.b16 %v6047, %v6045
    %v6156 = vpack.c.b16 %v6048, %v6046
    %v6157 = vpack.c.b16 %v6051, %v6049
    %v6158 = vpack.c.b16 %v6052, %v6050
    %v6159 = vpack.c.b16 %v6055, %v6053
    %v6160 = vpack.c.b16 %v6056, %v6054
    %v6161 = vpack.c.b16 %v6059, %v6057
    %v6162 = vpack.c.b16 %v6060, %v6058
    %v6163 = vpack.c.b16 %v6063, %v6061
    %v6164 = vpack.c.b16 %v6064, %v6062
    %v6165 = vpack.c.b16 %v6067, %v6065
    %v6166 = vpack.c.b16 %v6068, %v6066
    %v6167 = vpack.c.b16 %v6071, %v6069
    %v6168 = vpack.c.b16 %v6072, %v6070
    %v6169 = vpack.c.b16 %v6075, %v6073
    %v6170 = vpack.c.b16 %v6076, %v6074
    %v6171 = vpack.c.b16 %v6079, %v6077
    %v6172 = vpack.c.b16 %v6080, %v6078
    %v6173 = vpack.c.b16 %v6083, %v6081
    %v6174 = vpack.c.b16 %v6084, %v6082
    %v6175 = vpack.c.b16 %v6087, %v6085
    %v6176 = vpack.c.b16 %v6088, %v6086
    %v6177 = vpack.c.b16 %v6091, %v6089
    %v6178 = vpack.c.b16 %v6092, %v6090
    %v6179 = vpack.c.b16 %v6095, %v6093
    %v6180 = vpack.c.b16 %v6096, %v6094
    %v6181 = vpack.c.b16 %v6099, %v6097
    %v6182 = vpack.c.b16 %v6100, %v6098
    %v6183 = vpack.c.b16 %v6103, %v6101
    %v6184 = vpack.c.b16 %v6104, %v6102
    %v6185 = vpack.c.b16 %v6107, %v6105
    %v6186 = vpack.c.b16 %v6108, %v6106
    %v6187 = vpack.c.b16 %v6111, %v6109
    %v6188 = vpack.c.b16 %v6112, %v6110
    %v6189 = vpack.c.b16 %v6115, %v6113
    %v6190 = vpack.c.b16 %v6116, %v6114
    %v6191 = vpack.c.b16 %v6119, %v6117
    %v6192 = vpack.c.b16 %v6120, %v6118
    %v6193 = vpack.c.b16 %v6123, %v6121
    %v6194 = vpack.c.b16 %v6124, %v6122
    %v6195 = vpack.c.b16 %v6127, %v6125
    %v6196 = vpack.c.b16 %v6128, %v6126
    %v6197 = vpack.c.b16 %v6131, %v6129
    %v6198 = vpack.c.b16 %v6132, %v6130
    %v6199 = vpack.c.b16 %v6135, %v6133
    %v6200 = vpack.c.b16 %v6136, %v6134
    %6265 = vmatprep.subr.bf16.mxu0 %v6152
    %6266 = vmatpush1.bf16.msra.mxu0 %v6151
    %6267 = vmatprep.subr.bf16.mxu0 %v6150
    %6268 = vmatpush1.bf16.msra.mxu0 %v6149
    %6269 = vmatprep.subr.bf16.mxu0 %v6148
    %6270 = vmatpush1.bf16.msra.mxu0 %v6147
    %6271 = vmatprep.subr.bf16.mxu0 %v6146
    %6272 = vmatpush1.bf16.msra.mxu0 %v6145
    %6273 = vmatprep.subr.bf16.mxu0 %v6144
    %6274 = vmatpush1.bf16.msra.mxu0 %v6143
    %6275 = vmatprep.subr.bf16.mxu0 %v6142
    %6276 = vmatpush1.bf16.msra.mxu0 %v6141
    %6277 = vmatprep.subr.bf16.mxu0 %v6140
    %6278 = vmatpush1.bf16.msra.mxu0 %v6139
    %6279 = vmatprep.subr.bf16.mxu0 %v6138
    %6280 = vmatpush1.bf16.msra.mxu0 %v6137
    %6281 = vmatprep.subr.bf16.mxu0 %v6168
    %6282 = vmatpush2.bf16.msra.mxu0 %v6167
    %6283 = vmatprep.subr.bf16.mxu0 %v6166
    %6284 = vmatpush2.bf16.msra.mxu0 %v6165
    %6285 = vmatprep.subr.bf16.mxu0 %v6164
    %6286 = vmatpush2.bf16.msra.mxu0 %v6163
    %6287 = vmatprep.subr.bf16.mxu0 %v6162
    %6288 = vmatpush2.bf16.msra.mxu0 %v6161
    %6289 = vmatprep.subr.bf16.mxu0 %v6160
    %6290 = vmatpush2.bf16.msra.mxu0 %v6159
    %6291 = vmatprep.subr.bf16.mxu0 %v6158
    %6292 = vmatpush2.bf16.msra.mxu0 %v6157
    %6293 = vmatprep.subr.bf16.mxu0 %v6156
    %6294 = vmatpush2.bf16.msra.mxu0 %v6155
    %6295 = vmatprep.subr.bf16.mxu0 %v6154
    %6296 = vmatpush2.bf16.msra.mxu0 %v6153
    %6297 = vmatprep.mubr.bf16.mxu0 %v5866
    %6298 = vmatmul.mubr.bf16.gmra.mxu0 %v5865
    %v6299 = vpop.f32.mrf.mxu0
    %v6300 = vadd.f32 %v5938, %v6299
    %v6301 = vpop.f32.mrf.mxu0
    %v6302 = vadd.f32 %v5942, %v6301
    %v6303 = vpop.f32.mrf.mxu0
    %v6304 = vpop.f32.mrf.mxu0
    %6305 = vdwg.mxu0
    %6306 = vmatprep.subr.bf16.mxu0 %v6184
    %6307 = vmatpush1.bf16.msra.mxu0 %v6183
    %6308 = vmatprep.subr.bf16.mxu0 %v6182
    %6309 = vmatpush1.bf16.msra.mxu0 %v6181
    %6310 = vmatprep.subr.bf16.mxu0 %v6180
    %6311 = vmatpush1.bf16.msra.mxu0 %v6179
    %6312 = vmatprep.subr.bf16.mxu0 %v6178
    %6313 = vmatpush1.bf16.msra.mxu0 %v6177
    %6314 = vmatprep.subr.bf16.mxu0 %v6176
    %6315 = vmatpush1.bf16.msra.mxu0 %v6175
    %6316 = vmatprep.subr.bf16.mxu0 %v6174
    %6317 = vmatpush1.bf16.msra.mxu0 %v6173
    %6318 = vmatprep.subr.bf16.mxu0 %v6172
    %6319 = vmatpush1.bf16.msra.mxu0 %v6171
    %6320 = vmatprep.subr.bf16.mxu0 %v6170
    %6321 = vmatpush1.bf16.msra.mxu0 %v6169
    %6322 = vmatprep.subr.bf16.mxu0 %v6200
    %6323 = vmatpush2.bf16.msra.mxu0 %v6199
    %6324 = vmatprep.subr.bf16.mxu0 %v6198
    %6325 = vmatpush2.bf16.msra.mxu0 %v6197
    %6326 = vmatprep.subr.bf16.mxu0 %v6196
    %6327 = vmatpush2.bf16.msra.mxu0 %v6195
    %6328 = vmatprep.subr.bf16.mxu0 %v6194
    %6329 = vmatpush2.bf16.msra.mxu0 %v6193
    %6330 = vmatprep.subr.bf16.mxu0 %v6192
    %6331 = vmatpush2.bf16.msra.mxu0 %v6191
    %6332 = vmatprep.subr.bf16.mxu0 %v6190
    %6333 = vmatpush2.bf16.msra.mxu0 %v6189
    %6334 = vmatprep.subr.bf16.mxu0 %v6188
    %6335 = vmatpush2.bf16.msra.mxu0 %v6187
    %6336 = vmatprep.subr.bf16.mxu0 %v6186
    %6337 = vmatpush2.bf16.msra.mxu0 %v6185
    %6338 = vmatprep.mubr.bf16.mxu0 %v5868
    %6339 = vmatmul.mubr.bf16.gmra.mxu0 %v5867
    %v6340 = vpop.f32.mrf.mxu0
    %v6341 = vadd.f32 %v6300, %v6340
    %v6342 = vpop.f32.mrf.mxu0
    %v6343 = vadd.f32 %v6302, %v6342
    %v6344 = vpop.f32.mrf.mxu0
    %v6345 = vpop.f32.mrf.mxu0
    %6346 = vdwg.mxu0
    %vm6347 = vcmp.gt.f32.partialorder %v6341, 0.0
    %vm6348 = vcmp.gt.f32.partialorder %v6343, 0.0
    %v6349 = vmul.f32 %v6341, 0.2
    %v6350 = vmul.f32 %v6343, 0.2
    %v6351 = vsel %vm6347, %v6341, %v6349
    %v6352 = vsel %vm6348, %v6343, %v6350
    %v6353 = vld [vmem:[#allocation14] sm:$0x3]
    %v6355 = vlaneseq
    %v6356 = vshrl.u32 %v6355, 7
    %v6357 = vsub.s32 0, %v6356
    %v6358 = vrot.slane %v6353, %v6357
    %v6359 = vlaneseq
    %v6360 = vshrl.u32 %v6359, 7
    %v6361 = vsub.s32 1, %v6360
    %v6362 = vrot.slane %v6353, %v6361
    %v6365 = vmul.f32 %v6351, %v6358
    %v6366 = vmul.f32 %v6352, %v6362
    %v6367 = vadd.f32 %v6365, %v6366
    %6368 = vadd.xlane.f32.xlu0 %v6367
    %v6369 = vpop.xlane.xlu0 %6368
    %v6370 = vld [vmem:[#allocation2] sm:$0x1]
    %v6372 = vlaneseq
    %v6373 = vshrl.u32 %v6372, 7
    %v6374 = vsub.s32 0, %v6373
    %v6375 = vrot.slane %v6370, %v6374
    %v6377 = vadd.f32 %v6369, %v6375
    %vm6378 = vcmp.gt.f32.partialorder %v6377, 0.0
    %v6379 = vmul.f32 %v6377, 0.2
    %v6380 = vsel %vm6378, %v6377, %v6379
    %v6381 = vsub.f32 0.0, %v6380
    %v6382 = vmul.f32 %v6381, 1.442695
    %v6383 = vpow.pop %v6382
    %v6384 = vadd.f32 %v6383, 1.0
    %v6385 = vrcp.pop %v6384
    %vm6386 = vcmask 7168
    %6387 = vst.msk [vmem:[%s9] sm:$0xff] %vm6386, %v6385
    // Predicated region
    $region70: #{tpu_custom_call.1} parent=1 // pred_check
      _
    $region71: #{tpu_custom_call.1} parent=1 // pred_check_branch
      %6389 = sbr.rel (0) target = $region73
    $region72: #{tpu_custom_call.1} parent=1 // pred_region
      _
    $region73: #{tpu_custom_call.1} parent=1 // pred_fallthru
      _
    // Predicated region
    $region74: #{tpu_custom_call.1} parent=1 // pred_check
      _
    $region75: #{tpu_custom_call.1} parent=1 // pred_check_branch
      %6391 = sbr.rel (0) target = $region77
    $region76: #{tpu_custom_call.1} parent=1 // pred_region
      _
    $region77: #{tpu_custom_call.1} parent=1 // pred_fallthru
      _
    %6392 = vsyncpa [#allocation4], 1
    %6393 = vsyncpa [#allocation6], 1
    %6394 = vsyncpa [#allocation9], 1
    %6395 = vsyncpa [#allocation12], 1
    %6396 = vsyncpa [#allocation15], 1

</llo_original>
